<compile_context>
chip_gen: v7x
topology: tpu7x:2x2x1
jax: 0.10.0
libtpu: 0.0.40
codegen_flags: <defaults>
</compile_context>

<pallas_src>
import jax
import jax.numpy as jnp
from jax.experimental import pallas as pl
from jax.experimental.pallas import tpu as pltpu


def _round_up(x, m):
    return (x + m - 1) // m * m


def q_critic_kernel(s_ref, a_ref, w1_ref, b1_ref, w2_ref, b2_ref,
                    w3_ref, b3_ref, q_ref, sa_ref):
    cd = w1_ref.dtype                       # MXU operand dtype (bf16 default)
    sd = s_ref.shape[1]

    # ---- Layer 1 (fused): build [block_b, sa_dim] in VMEM with two static
    # lane-slice stores (in-kernel VPU cast, no HBM concat), then a single
    # K=sa_dim MXU dot with f32 accumulation.
    sa_ref[:, :sd] = s_ref[...].astype(cd)
    sa_ref[:, sd:] = a_ref[...].astype(cd)
    h1 = jnp.dot(sa_ref[...], w1_ref[...], preferred_element_type=jnp.float32)
    h1 = jnp.maximum(h1 + b1_ref[...], 0.0)          # f32 bias + relu (VPU)

    # ---- Layer 2 (N padded to a multiple of 128 -> unmasked MXU passes).
    h2 = jnp.dot(h1.astype(cd), w2_ref[...], preferred_element_type=jnp.float32)
    h2 = jnp.maximum(h2 + b2_ref[...], 0.0)          # f32 bias + relu (VPU)

    # ---- Layer 3 (out_features == 1): VPU multiply + XLU lane reduce instead
    # of a 1-column MXU matmul; b3 is an SMEM scalar.  Padded w3 lanes are 0.
    q = jnp.sum(h2 * w3_ref[...], axis=-1) + b3_ref[0]    # [block_b] f32
    # Lane-dense store: [1, block_b] tile (batch maps to lanes, unmasked vst).
    q_ref[...] = q[None, :].astype(q_ref.dtype)


def q_critic_forward(state, action, params, *, block_b=2048,
                     compute_dtype=jnp.bfloat16):
    """state: [B, state_dim], action: [B, action_dim] -> q: [B, 1] (float32)."""
    w1, b1, w2, b2, w3, b3 = params
    B, state_dim = state.shape
    action_dim = action.shape[1]
    sa_dim = state_dim + action_dim
    hid1 = w1.shape[1]
    hid2 = w2.shape[1]

    # Zero-pad hidden widths to multiples of 128 lanes (exact: relu(0)=0 and
    # the padded w3 entries are 0, so q is bit-identical in f32).
    hid1_p = _round_up(hid1, 128)
    hid2_p = _round_up(hid2, 128)

    cd = compute_dtype
    # Resident weights: MXU operands in `cd`, biases / final row weight in f32.
    w1c = jnp.pad(w1, ((0, 0), (0, hid1_p - hid1))).astype(cd)           # [sa, h1p]
    b1f = jnp.pad(b1.reshape(1, -1), ((0, 0), (0, hid1_p - hid1))).astype(jnp.float32)
    w2c = jnp.pad(w2, ((0, hid1_p - hid1), (0, hid2_p - hid2))).astype(cd)
    b2f = jnp.pad(b2.reshape(1, -1), ((0, 0), (0, hid2_p - hid2))).astype(jnp.float32)
    w3r = jnp.pad(w3.reshape(1, -1), ((0, 0), (0, hid2_p - hid2))).astype(jnp.float32)
    b3s = b3.reshape(-1).astype(jnp.float32)          # scalar -> SMEM

    # Batch tiling: multiples of 128 so output stores are lane-dense.
    block_b = _round_up(max(1, min(block_b, B)), 128)
    if B % block_b != 0:
        # Prefer a smaller 128-multiple tile that divides B exactly (avoids
        # the jnp.pad HBM copies and a partially wasted final tile).
        for cand in range(block_b - 128, 127, -128):
            if B % cand == 0 and cand * 4 >= block_b:
                block_b = cand
                break
    B_pad = _round_up(B, block_b)
    if B_pad != B:
        state = jnp.pad(state, ((0, B_pad - B), (0, 0)))
        action = jnp.pad(action, ((0, B_pad - B), (0, 0)))

    grid = (B_pad // block_b,)

    def resident(arr):
        nd = arr.ndim
        return pl.BlockSpec(arr.shape, lambda i, _nd=nd: (0,) * _nd)

    # TODO(synk): on v7x, if xprof shows only one TensorCore busy, switch this
    # grid axis to pltpu.CORE_PARALLEL (plain "parallel" may not shard 2 TCs).
    q = pl.pallas_call(
        q_critic_kernel,
        out_shape=jax.ShapeDtypeStruct((1, B_pad), jnp.float32),
        grid=grid,
        in_specs=[
            pl.BlockSpec((block_b, state_dim), lambda i: (i, 0)),   # streams
            pl.BlockSpec((block_b, action_dim), lambda i: (i, 0)),  # streams
            resident(w1c), resident(b1f),                           # VMEM-resident
            resident(w2c), resident(b2f), resident(w3r),
            pl.BlockSpec(memory_space=pltpu.MemorySpace.SMEM),      # b3 scalar
        ],
        out_specs=pl.BlockSpec((1, block_b), lambda i: (0, i)),     # lane-dense
        scratch_shapes=[pltpu.VMEM((block_b, sa_dim), cd)],         # fused sa tile
        compiler_params=pltpu.CompilerParams(
            dimension_semantics=("parallel",),
            vmem_limit_bytes=32 * 1024 * 1024),
    )(state, action, w1c, b1f, w2c, b2f, w3r, b3s)

    return q.reshape(B_pad, 1)[:B]


def init_params(key, state_dim, action_dim, net_width):
    """Deterministic PyTorch-like init: U(-1/sqrt(fan_in), 1/sqrt(fan_in))."""
    dims = [(state_dim + action_dim, net_width), (net_width, 300), (300, 1)]
    params = []
    for i, (fan_in, fan_out) in enumerate(dims):
        kw, kb, key = jax.random.split(jax.random.fold_in(key, i), 3)
        bound = 1.0 / jnp.sqrt(fan_in)
        w = jax.random.uniform(kw, (fan_in, fan_out), jnp.float32, -bound, bound)
        b = jax.random.uniform(kb, (1, fan_out), jnp.float32, -bound, bound)
        params += [w, b]
    return tuple(params)


def q_critic_ref(state, action, params):
    w1, b1, w2, b2, w3, b3 = params
    sa = jnp.concatenate([state, action], axis=1)
    h1 = jnp.maximum(sa @ w1 + b1, 0.0)
    h2 = jnp.maximum(h1 @ w2 + b2, 0.0)
    return h2 @ w3 + b3


if __name__ == "__main__":
    # batch not a multiple of 128 -> exercises the padding path.
    batch, state_dim, action_dim, net_width = 200, 16, 16, 128

    key = jax.random.PRNGKey(0)
    k_s, k_a, k_p = jax.random.split(key, 3)
    state = jax.random.normal(k_s, (batch, state_dim), jnp.float32)
    action = jax.random.normal(k_a, (batch, action_dim), jnp.float32)
    params = init_params(k_p, state_dim, action_dim, net_width)

    q_ref_val = q_critic_ref(state, action, params)

    # Default path: bf16 MXU operands, f32 accumulation/epilogue, hid2->384,
    # single 256-row tile (block_b clamped to round_up(B,128)).
    q_bf16 = q_critic_forward(state, action, params)
    q_bf16 = jax.block_until_ready(q_bf16)
    assert q_bf16.shape == (batch, 1), q_bf16.shape
    assert jnp.allclose(q_bf16, q_ref_val, atol=5e-2, rtol=5e-2)

    # f32 path (tight tolerance), block_b=128 -> grid=(2,) exercises multi-tile.
    q_f32 = q_critic_forward(state, action, params, block_b=128,
                             compute_dtype=jnp.float32)
    q_f32 = jax.block_until_ready(q_f32)
    assert q_f32.shape == (batch, 1), q_f32.shape
    assert jnp.allclose(q_f32, q_ref_val, atol=1e-4, rtol=1e-4)

    print("KERNEL_OK")
</pallas_src>

<mosaic_0001>
module attributes {stable_mosaic.version = 11 : i64} {
  func.func @q_critic_kernel(%arg0: i32, %arg1: memref<256x16xf32, #tpu.memory_space<vmem>>, %arg2: memref<256x16xf32, #tpu.memory_space<vmem>>, %arg3: memref<32x128xbf16, #tpu.memory_space<vmem>>, %arg4: memref<1x128xf32, #tpu.memory_space<vmem>>, %arg5: memref<128x384xbf16, #tpu.memory_space<vmem>>, %arg6: memref<1x384xf32, #tpu.memory_space<vmem>>, %arg7: memref<1x384xf32, #tpu.memory_space<vmem>>, %arg8: memref<1xf32, #tpu.memory_space<smem>>, %arg9: memref<1x256xf32, #tpu.memory_space<vmem>>, %arg10: memref<256x32xbf16, #tpu.memory_space<vmem>>) attributes {dimension_semantics = [#tpu.dimension_semantics<parallel>], iteration_bounds = array<i64: 1>, scalar_prefetch = 0 : i64, scratch_operands = 1 : i64, tpu.core_type = #tpu.core_type<tc>, window_params = [{transform_indices = @transform_0, window_bounds = array<i64: 256, 16>}, {transform_indices = @transform_1, window_bounds = array<i64: 256, 16>}, {pipeline_mode = #tpu.pipeline_mode<synchronous>, transform_indices = @transform_2, window_bounds = array<i64: 32, 128>}, {pipeline_mode = #tpu.pipeline_mode<synchronous>, transform_indices = @transform_3, window_bounds = array<i64: 1, 128>}, {pipeline_mode = #tpu.pipeline_mode<synchronous>, transform_indices = @transform_4, window_bounds = array<i64: 128, 384>}, {pipeline_mode = #tpu.pipeline_mode<synchronous>, transform_indices = @transform_5, window_bounds = array<i64: 1, 384>}, {pipeline_mode = #tpu.pipeline_mode<synchronous>, transform_indices = @transform_6, window_bounds = array<i64: 1, 384>}, {transform_indices = @transform_7, window_bounds = array<i64: 1>}, {transform_indices = @transform_8, window_bounds = array<i64: 1, 256>}]} {
    %c0 = arith.constant 0 : index
    %c0_0 = arith.constant 0 : index
    %0 = vector.load %arg1[%c0, %c0_0] : memref<256x16xf32, #tpu.memory_space<vmem>>, vector<256x16xf32>
    %1 = arith.truncf %0 : vector<256x16xf32> to vector<256x16xbf16>
    %c0_1 = arith.constant 0 : index
    %c0_2 = arith.constant 0 : index
    %2 = vector.load %arg10[%c0_1, %c0_2] : memref<256x32xbf16, #tpu.memory_space<vmem>>, vector<256x16xbf16>
    tpu.vector_store %arg10[%c0_1, %c0_2], %1 {strides = array<i32>} : memref<256x32xbf16, #tpu.memory_space<vmem>>, vector<256x16xbf16>,
    %c0_3 = arith.constant 0 : index
    %c0_4 = arith.constant 0 : index
    %3 = vector.load %arg2[%c0_3, %c0_4] : memref<256x16xf32, #tpu.memory_space<vmem>>, vector<256x16xf32>
    %4 = arith.truncf %3 : vector<256x16xf32> to vector<256x16xbf16>
    %c0_5 = arith.constant 0 : index
    %c16 = arith.constant 16 : index
    %5 = vector.load %arg10[%c0_5, %c16] : memref<256x32xbf16, #tpu.memory_space<vmem>>, vector<256x16xbf16>
    tpu.vector_store %arg10[%c0_5, %c16], %4 {strides = array<i32>} : memref<256x32xbf16, #tpu.memory_space<vmem>>, vector<256x16xbf16>,
    %c0_6 = arith.constant 0 : index
    %c0_7 = arith.constant 0 : index
    %6 = vector.load %arg10[%c0_6, %c0_7] : memref<256x32xbf16, #tpu.memory_space<vmem>>, vector<256x32xbf16>
    %c0_8 = arith.constant 0 : index
    %c0_9 = arith.constant 0 : index
    %7 = vector.load %arg3[%c0_8, %c0_9] : memref<32x128xbf16, #tpu.memory_space<vmem>>, vector<32x128xbf16>
    %cst = arith.constant dense<0.000000e+00> : vector<256x128xf32>
    %8 = tpu.matmul %6, %7, %cst {dimension_numbers = #tpu.dot_dimension_numbers<[1], [0], [0], [1], [0, 0, 1, 1], [], []>} : vector<256x32xbf16>, vector<32x128xbf16>, vector<256x128xf32> -> vector<256x128xf32>
    %c0_10 = arith.constant 0 : index
    %c0_11 = arith.constant 0 : index
    %9 = vector.load %arg4[%c0_10, %c0_11] : memref<1x128xf32, #tpu.memory_space<vmem>>, vector<1x128xf32>
    %10 = vector.broadcast %9 : vector<1x128xf32> to vector<256x128xf32>
    %11 = arith.addf %8, %10 : vector<256x128xf32>
    %cst_12 = arith.constant 0.000000e+00 : f32
    %12 = vector.broadcast %cst_12 : f32 to vector<256x128xf32>
    %13 = arith.maximumf %11, %12 : vector<256x128xf32>
    %14 = arith.truncf %13 : vector<256x128xf32> to vector<256x128xbf16>
    %c0_13 = arith.constant 0 : index
    %c0_14 = arith.constant 0 : index
    %15 = vector.load %arg5[%c0_13, %c0_14] : memref<128x384xbf16, #tpu.memory_space<vmem>>, vector<128x384xbf16>
    %cst_15 = arith.constant dense<0.000000e+00> : vector<256x384xf32>
    %16 = tpu.matmul %14, %15, %cst_15 {dimension_numbers = #tpu.dot_dimension_numbers<[1], [0], [0], [1], [0, 0, 1, 1], [], []>} : vector<256x128xbf16>, vector<128x384xbf16>, vector<256x384xf32> -> vector<256x384xf32>
    %c0_16 = arith.constant 0 : index
    %c0_17 = arith.constant 0 : index
    %17 = vector.load %arg6[%c0_16, %c0_17] : memref<1x384xf32, #tpu.memory_space<vmem>>, vector<1x384xf32>
    %18 = vector.broadcast %17 : vector<1x384xf32> to vector<256x384xf32>
    %19 = arith.addf %16, %18 : vector<256x384xf32>
    %cst_18 = arith.constant 0.000000e+00 : f32
    %20 = vector.broadcast %cst_18 : f32 to vector<256x384xf32>
    %21 = arith.maximumf %19, %20 : vector<256x384xf32>
    %c0_19 = arith.constant 0 : index
    %c0_20 = arith.constant 0 : index
    %22 = vector.load %arg7[%c0_19, %c0_20] : memref<1x384xf32, #tpu.memory_space<vmem>>, vector<1x384xf32>
    %23 = vector.broadcast %22 : vector<1x384xf32> to vector<256x384xf32>
    %24 = arith.mulf %21, %23 : vector<256x384xf32>
    %cst_21 = arith.constant dense<0.000000e+00> : vector<256xf32>
    %25 = vector.multi_reduction <add>, %24, %cst_21 [1] : vector<256x384xf32> to vector<256xf32>
    %c0_22 = arith.constant 0 : index
    %26 = memref.load %arg8[%c0_22] : memref<1xf32, #tpu.memory_space<smem>>
    %27 = vector.broadcast %26 : f32 to vector<256xf32>
    %28 = arith.addf %25, %27 : vector<256xf32>
    %29 = vector.shape_cast %28 : vector<256xf32> to vector<1x256xf32>
    %c0_23 = arith.constant 0 : index
    %c0_24 = arith.constant 0 : index
    %30 = vector.load %arg9[%c0_23, %c0_24] : memref<1x256xf32, #tpu.memory_space<vmem>>, vector<1x256xf32>
    tpu.vector_store %arg9[%c0_23, %c0_24], %29 {strides = array<i32>} : memref<1x256xf32, #tpu.memory_space<vmem>>, vector<1x256xf32>,
    return
  }
  func.func @transform_0(%arg0: i32) -> (i32, i32) {
    %c0_i32 = arith.constant 0 : i32
    %c0_i32_0 = arith.constant 0 : i32
    return %arg0, %c0_i32 : i32, i32
  }
  func.func @transform_1(%arg0: i32) -> (i32, i32) {
    %c0_i32 = arith.constant 0 : i32
    %c0_i32_0 = arith.constant 0 : i32
    return %arg0, %c0_i32 : i32, i32
  }
  func.func @transform_2(%arg0: i32) -> (i32, i32) {
    %c0_i32 = arith.constant 0 : i32
    %c0_i32_0 = arith.constant 0 : i32
    %c0_i32_1 = arith.constant 0 : i32
    return %c0_i32, %c0_i32_0 : i32, i32
  }
  func.func @transform_3(%arg0: i32) -> (i32, i32) {
    %c0_i32 = arith.constant 0 : i32
    %c0_i32_0 = arith.constant 0 : i32
    %c0_i32_1 = arith.constant 0 : i32
    return %c0_i32, %c0_i32_0 : i32, i32
  }
  func.func @transform_4(%arg0: i32) -> (i32, i32) {
    %c0_i32 = arith.constant 0 : i32
    %c0_i32_0 = arith.constant 0 : i32
    %c0_i32_1 = arith.constant 0 : i32
    return %c0_i32, %c0_i32_0 : i32, i32
  }
  func.func @transform_5(%arg0: i32) -> (i32, i32) {
    %c0_i32 = arith.constant 0 : i32
    %c0_i32_0 = arith.constant 0 : i32
    %c0_i32_1 = arith.constant 0 : i32
    return %c0_i32, %c0_i32_0 : i32, i32
  }
  func.func @transform_6(%arg0: i32) -> (i32, i32) {
    %c0_i32 = arith.constant 0 : i32
    %c0_i32_0 = arith.constant 0 : i32
    %c0_i32_1 = arith.constant 0 : i32
    return %c0_i32, %c0_i32_0 : i32, i32
  }
  func.func @transform_7(%arg0: i32) -> i32 {
    %c0_i32 = arith.constant 0 : i32
    %c0_i32_0 = arith.constant 0 : i32
    return %c0_i32 : i32
  }
  func.func @transform_8(%arg0: i32) -> (i32, i32) {
    %c0_i32 = arith.constant 0 : i32
    %c0_i32_0 = arith.constant 0 : i32
    return %c0_i32, %arg0 : i32, i32
  }
}

</mosaic_0001>

<llo_original>
// kernel: tpu_custom_call.1
$region0: #{tpu_custom_call.1}
  #allocation0 [shape = 'u32[]', space=smem, size = 0x4, offset = 0x4, fixed_abs, tag = 'smem constant byte address 0x4 - core index']
  #allocation1 [shape = 'u32[144,128]{1,0:T(1,128)}', space=vmem, size = 0x12000, scoped, tag = 'internal scratch']
  #allocation2 [shape = 'bf16[256,32]{1,0:T(16,128)(2,1)}', space=vmem, size = 0x10000, scoped, tag = 'scratch operand']
  #allocation3 [shape = 'f32[1]{0:T(128)S(6)}', space=smem, size = 0x200, scoped, tag = 'scoped memory for tpu_custom_call.1']
  %s0 = inlined_call_operand.vmem [shape: f32[256,16], index: 0, kind: input, shape index: {}]
  %s1 = inlined_call_operand.vmem [shape: f32[256,16], index: 1, kind: input, shape index: {}]
  %s2 = inlined_call_operand.vmem [shape: bf16[32,128], index: 2, kind: input, shape index: {}]
  %s3 = inlined_call_operand.vmem [shape: f32[1,128], index: 3, kind: input, shape index: {}]
  %s4 = inlined_call_operand.vmem [shape: bf16[128,384], index: 4, kind: input, shape index: {}]
  %s5 = inlined_call_operand.vmem [shape: f32[1,384], index: 5, kind: input, shape index: {}]
  %s6 = inlined_call_operand.vmem [shape: f32[1,384], index: 6, kind: input, shape index: {}]
  %s7 = inlined_call_operand.<no memory space> [shape: f32[1], index: 7, kind: input, shape index: {}]
  %s8 = inlined_call_operand.hbm [shape: f32[1,256], index: 8, kind: output, shape index: {}]
  %s9 = sld [smem:[#allocation0]]
  $region42: #{tpu_custom_call.1} parent=0
    _
  %s11 = ssub.s32 1, %s9
  %s12 = scalar_select 0, %s11, %s9
  %13 = sst [smem:[#allocation3]] %s7
  $region1: #{tpu_custom_call.1} parent=0
    #allocation4 [shape = 'u8[1024]{0}', space=vmem, size = 0x400, scoped, tag = 'output window, operand 0, single buffered']
    #allocation5 [shape = 's32[1]{0}', space=sflag, size = 0x4, scoped, tag = 'scoped memory for tpu_custom_call.1']
    %14 = vsyncpa [#allocation5], 0
    // Predicated region
    $region2: #{tpu_custom_call.1} parent=1 // pred_check
      _
    $region3: #{tpu_custom_call.1} parent=1 // pred_check_branch
      %16 = sbr.rel (0) target = $region5
    $region4: #{tpu_custom_call.1} parent=1 // pred_region
      _
    $region5: #{tpu_custom_call.1} parent=1 // pred_fallthru
      _
    // Predicated region
    $region6: #{tpu_custom_call.1} parent=1 // pred_check
      _
    $region7: #{tpu_custom_call.1} parent=1 // pred_check_branch
      %18 = sbr.rel (0) target = $region9
    $region8: #{tpu_custom_call.1} parent=1 // pred_region
      _
    $region9: #{tpu_custom_call.1} parent=1 // pred_fallthru
      _
    // Predicated region
    $region10: #{tpu_custom_call.1} parent=1 // pred_check
      _
    $region11: #{tpu_custom_call.1} parent=1 // pred_check_branch
      %20 = sbr.rel (0) target = $region13
    $region12: #{tpu_custom_call.1} parent=1 // pred_region
      _
    $region13: #{tpu_custom_call.1} parent=1 // pred_fallthru
      _
    // Predicated region
    $region14: #{tpu_custom_call.1} parent=1 // pred_check
      _
    $region15: #{tpu_custom_call.1} parent=1 // pred_check_branch
      %22 = sbr.rel (0) target = $region17
    $region16: #{tpu_custom_call.1} parent=1 // pred_region
      _
    $region17: #{tpu_custom_call.1} parent=1 // pred_fallthru
      _
    // Predicated region
    $region18: #{tpu_custom_call.1} parent=1 // pred_check
      _
    $region19: #{tpu_custom_call.1} parent=1 // pred_check_branch
      %24 = sbr.rel (0) target = $region21
    $region20: #{tpu_custom_call.1} parent=1 // pred_region
      _
    $region21: #{tpu_custom_call.1} parent=1 // pred_fallthru
      _
    // Predicated region
    $region22: #{tpu_custom_call.1} parent=1 // pred_check
      _
    $region23: #{tpu_custom_call.1} parent=1 // pred_check_branch
      %26 = sbr.rel (0) target = $region25
    $region24: #{tpu_custom_call.1} parent=1 // pred_region
      _
    $region25: #{tpu_custom_call.1} parent=1 // pred_fallthru
      _
    // Predicated region
    $region26: #{tpu_custom_call.1} parent=1 // pred_check
      _
    $region27: #{tpu_custom_call.1} parent=1 // pred_check_branch
      %28 = sbr.rel (0) target = $region29
    $region28: #{tpu_custom_call.1} parent=1 // pred_region
      _
    $region29: #{tpu_custom_call.1} parent=1 // pred_fallthru
      _
    // Predicated region
    $region30: #{tpu_custom_call.1} parent=1 // pred_check
      _
    $region31: #{tpu_custom_call.1} parent=1 // pred_check_branch
      %30 = sbr.rel (0) target = $region33
    $region32: #{tpu_custom_call.1} parent=1 // pred_region
      _
    $region33: #{tpu_custom_call.1} parent=1 // pred_fallthru
      _
    %v32 = vld [vmem:[%s0] sm:$0xff]
    %v33 = vld [vmem:[%s0 + $0x8] sm:$0xff]
    %v34 = vld [vmem:[%s0 + $0x10] sm:$0xff]
    %v35 = vld [vmem:[%s0 + $0x18] sm:$0xff]
    %v36 = vld [vmem:[%s0 + $0x20] sm:$0xff]
    %v37 = vld [vmem:[%s0 + $0x28] sm:$0xff]
    %v38 = vld [vmem:[%s0 + $0x30] sm:$0xff]
    %v39 = vld [vmem:[%s0 + $0x38] sm:$0xff]
    %v40 = vld [vmem:[%s0 + $0x40] sm:$0xff]
    %v41 = vld [vmem:[%s0 + $0x48] sm:$0xff]
    %v42 = vld [vmem:[%s0 + $0x50] sm:$0xff]
    %v43 = vld [vmem:[%s0 + $0x58] sm:$0xff]
    %v44 = vld [vmem:[%s0 + $0x60] sm:$0xff]
    %v45 = vld [vmem:[%s0 + $0x68] sm:$0xff]
    %v46 = vld [vmem:[%s0 + $0x70] sm:$0xff]
    %v47 = vld [vmem:[%s0 + $0x78] sm:$0xff]
    %v48 = vld [vmem:[%s0 + $0x80] sm:$0xff]
    %v49 = vld [vmem:[%s0 + $0x88] sm:$0xff]
    %v50 = vld [vmem:[%s0 + $0x90] sm:$0xff]
    %v51 = vld [vmem:[%s0 + $0x98] sm:$0xff]
    %v52 = vld [vmem:[%s0 + $0xa0] sm:$0xff]
    %v53 = vld [vmem:[%s0 + $0xa8] sm:$0xff]
    %v54 = vld [vmem:[%s0 + $0xb0] sm:$0xff]
    %v55 = vld [vmem:[%s0 + $0xb8] sm:$0xff]
    %v56 = vld [vmem:[%s0 + $0xc0] sm:$0xff]
    %v57 = vld [vmem:[%s0 + $0xc8] sm:$0xff]
    %v58 = vld [vmem:[%s0 + $0xd0] sm:$0xff]
    %v59 = vld [vmem:[%s0 + $0xd8] sm:$0xff]
    %v60 = vld [vmem:[%s0 + $0xe0] sm:$0xff]
    %v61 = vld [vmem:[%s0 + $0xe8] sm:$0xff]
    %v62 = vld [vmem:[%s0 + $0xf0] sm:$0xff]
    %v63 = vld [vmem:[%s0 + $0xf8] sm:$0xff]
    %v64 = vpack.c.bf16 %v33, %v32
    %v65 = vpack.c.bf16 %v35, %v34
    %v66 = vpack.c.bf16 %v37, %v36
    %v67 = vpack.c.bf16 %v39, %v38
    %v68 = vpack.c.bf16 %v41, %v40
    %v69 = vpack.c.bf16 %v43, %v42
    %v70 = vpack.c.bf16 %v45, %v44
    %v71 = vpack.c.bf16 %v47, %v46
    %v72 = vpack.c.bf16 %v49, %v48
    %v73 = vpack.c.bf16 %v51, %v50
    %v74 = vpack.c.bf16 %v53, %v52
    %v75 = vpack.c.bf16 %v55, %v54
    %v76 = vpack.c.bf16 %v57, %v56
    %v77 = vpack.c.bf16 %v59, %v58
    %v78 = vpack.c.bf16 %v61, %v60
    %v79 = vpack.c.bf16 %v63, %v62
    %vm80 = vcmask 130048
    %81 = vst.msk [vmem:[#allocation2] sm:$0xff] %vm80, %v64
    %82 = vst.msk [vmem:[#allocation2 + $0x8] sm:$0xff] %vm80, %v65
    %83 = vst.msk [vmem:[#allocation2 + $0x10] sm:$0xff] %vm80, %v66
    %84 = vst.msk [vmem:[#allocation2 + $0x18] sm:$0xff] %vm80, %v67
    %85 = vst.msk [vmem:[#allocation2 + $0x20] sm:$0xff] %vm80, %v68
    %86 = vst.msk [vmem:[#allocation2 + $0x28] sm:$0xff] %vm80, %v69
    %87 = vst.msk [vmem:[#allocation2 + $0x30] sm:$0xff] %vm80, %v70
    %88 = vst.msk [vmem:[#allocation2 + $0x38] sm:$0xff] %vm80, %v71
    %89 = vst.msk [vmem:[#allocation2 + $0x40] sm:$0xff] %vm80, %v72
    %90 = vst.msk [vmem:[#allocation2 + $0x48] sm:$0xff] %vm80, %v73
    %91 = vst.msk [vmem:[#allocation2 + $0x50] sm:$0xff] %vm80, %v74
    %92 = vst.msk [vmem:[#allocation2 + $0x58] sm:$0xff] %vm80, %v75
    %93 = vst.msk [vmem:[#allocation2 + $0x60] sm:$0xff] %vm80, %v76
    %94 = vst.msk [vmem:[#allocation2 + $0x68] sm:$0xff] %vm80, %v77
    %95 = vst.msk [vmem:[#allocation2 + $0x70] sm:$0xff] %vm80, %v78
    %96 = vst.msk [vmem:[#allocation2 + $0x78] sm:$0xff] %vm80, %v79
    %v97 = vld [vmem:[%s1] sm:$0xff]
    %v98 = vld [vmem:[%s1 + $0x8] sm:$0xff]
    %v99 = vld [vmem:[%s1 + $0x10] sm:$0xff]
    %v100 = vld [vmem:[%s1 + $0x18] sm:$0xff]
    %v101 = vld [vmem:[%s1 + $0x20] sm:$0xff]
    %v102 = vld [vmem:[%s1 + $0x28] sm:$0xff]
    %v103 = vld [vmem:[%s1 + $0x30] sm:$0xff]
    %v104 = vld [vmem:[%s1 + $0x38] sm:$0xff]
    %v105 = vld [vmem:[%s1 + $0x40] sm:$0xff]
    %v106 = vld [vmem:[%s1 + $0x48] sm:$0xff]
    %v107 = vld [vmem:[%s1 + $0x50] sm:$0xff]
    %v108 = vld [vmem:[%s1 + $0x58] sm:$0xff]
    %v109 = vld [vmem:[%s1 + $0x60] sm:$0xff]
    %v110 = vld [vmem:[%s1 + $0x68] sm:$0xff]
    %v111 = vld [vmem:[%s1 + $0x70] sm:$0xff]
    %v112 = vld [vmem:[%s1 + $0x78] sm:$0xff]
    %v113 = vld [vmem:[%s1 + $0x80] sm:$0xff]
    %v114 = vld [vmem:[%s1 + $0x88] sm:$0xff]
    %v115 = vld [vmem:[%s1 + $0x90] sm:$0xff]
    %v116 = vld [vmem:[%s1 + $0x98] sm:$0xff]
    %v117 = vld [vmem:[%s1 + $0xa0] sm:$0xff]
    %v118 = vld [vmem:[%s1 + $0xa8] sm:$0xff]
    %v119 = vld [vmem:[%s1 + $0xb0] sm:$0xff]
    %v120 = vld [vmem:[%s1 + $0xb8] sm:$0xff]
    %v121 = vld [vmem:[%s1 + $0xc0] sm:$0xff]
    %v122 = vld [vmem:[%s1 + $0xc8] sm:$0xff]
    %v123 = vld [vmem:[%s1 + $0xd0] sm:$0xff]
    %v124 = vld [vmem:[%s1 + $0xd8] sm:$0xff]
    %v125 = vld [vmem:[%s1 + $0xe0] sm:$0xff]
    %v126 = vld [vmem:[%s1 + $0xe8] sm:$0xff]
    %v127 = vld [vmem:[%s1 + $0xf0] sm:$0xff]
    %v128 = vld [vmem:[%s1 + $0xf8] sm:$0xff]
    %v129 = vpack.c.bf16 %v98, %v97
    %v130 = vpack.c.bf16 %v100, %v99
    %v131 = vpack.c.bf16 %v102, %v101
    %v132 = vpack.c.bf16 %v104, %v103
    %v133 = vpack.c.bf16 %v106, %v105
    %v134 = vpack.c.bf16 %v108, %v107
    %v135 = vpack.c.bf16 %v110, %v109
    %v136 = vpack.c.bf16 %v112, %v111
    %v137 = vpack.c.bf16 %v114, %v113
    %v138 = vpack.c.bf16 %v116, %v115
    %v139 = vpack.c.bf16 %v118, %v117
    %v140 = vpack.c.bf16 %v120, %v119
    %v141 = vpack.c.bf16 %v122, %v121
    %v142 = vpack.c.bf16 %v124, %v123
    %v143 = vpack.c.bf16 %v126, %v125
    %v144 = vpack.c.bf16 %v128, %v127
    %161 = vrot.lane.b32.xlu0 %v129, 16
    %v162 = vpop.permute.xlu0 %161
    %163 = vrot.lane.b32.xlu0 %v130, 16
    %v164 = vpop.permute.xlu0 %163
    %165 = vrot.lane.b32.xlu0 %v131, 16
    %v166 = vpop.permute.xlu0 %165
    %167 = vrot.lane.b32.xlu0 %v132, 16
    %v168 = vpop.permute.xlu0 %167
    %169 = vrot.lane.b32.xlu0 %v133, 16
    %v170 = vpop.permute.xlu0 %169
    %171 = vrot.lane.b32.xlu0 %v134, 16
    %v172 = vpop.permute.xlu0 %171
    %173 = vrot.lane.b32.xlu0 %v135, 16
    %v174 = vpop.permute.xlu0 %173
    %175 = vrot.lane.b32.xlu0 %v136, 16
    %v176 = vpop.permute.xlu0 %175
    %177 = vrot.lane.b32.xlu0 %v137, 16
    %v178 = vpop.permute.xlu0 %177
    %179 = vrot.lane.b32.xlu0 %v138, 16
    %v180 = vpop.permute.xlu0 %179
    %181 = vrot.lane.b32.xlu0 %v139, 16
    %v182 = vpop.permute.xlu0 %181
    %183 = vrot.lane.b32.xlu0 %v140, 16
    %v184 = vpop.permute.xlu0 %183
    %185 = vrot.lane.b32.xlu0 %v141, 16
    %v186 = vpop.permute.xlu0 %185
    %187 = vrot.lane.b32.xlu0 %v142, 16
    %v188 = vpop.permute.xlu0 %187
    %189 = vrot.lane.b32.xlu0 %v143, 16
    %v190 = vpop.permute.xlu0 %189
    %191 = vrot.lane.b32.xlu0 %v144, 16
    %v192 = vpop.permute.xlu0 %191
    %vm209 = vcmask 261248
    %210 = vst.msk [vmem:[#allocation2] sm:$0xff] %vm209, %v162
    %211 = vst.msk [vmem:[#allocation2 + $0x8] sm:$0xff] %vm209, %v164
    %212 = vst.msk [vmem:[#allocation2 + $0x10] sm:$0xff] %vm209, %v166
    %213 = vst.msk [vmem:[#allocation2 + $0x18] sm:$0xff] %vm209, %v168
    %214 = vst.msk [vmem:[#allocation2 + $0x20] sm:$0xff] %vm209, %v170
    %215 = vst.msk [vmem:[#allocation2 + $0x28] sm:$0xff] %vm209, %v172
    %216 = vst.msk [vmem:[#allocation2 + $0x30] sm:$0xff] %vm209, %v174
    %217 = vst.msk [vmem:[#allocation2 + $0x38] sm:$0xff] %vm209, %v176
    %218 = vst.msk [vmem:[#allocation2 + $0x40] sm:$0xff] %vm209, %v178
    %219 = vst.msk [vmem:[#allocation2 + $0x48] sm:$0xff] %vm209, %v180
    %220 = vst.msk [vmem:[#allocation2 + $0x50] sm:$0xff] %vm209, %v182
    %221 = vst.msk [vmem:[#allocation2 + $0x58] sm:$0xff] %vm209, %v184
    %222 = vst.msk [vmem:[#allocation2 + $0x60] sm:$0xff] %vm209, %v186
    %223 = vst.msk [vmem:[#allocation2 + $0x68] sm:$0xff] %vm209, %v188
    %224 = vst.msk [vmem:[#allocation2 + $0x70] sm:$0xff] %vm209, %v190
    %225 = vst.msk [vmem:[#allocation2 + $0x78] sm:$0xff] %vm209, %v192
    %v226 = vld [vmem:[#allocation2] sm:$0xff]
    %v227 = vld [vmem:[#allocation2 + $0x8] sm:$0xff]
    %v228 = vld [vmem:[#allocation2 + $0x10] sm:$0xff]
    %v229 = vld [vmem:[#allocation2 + $0x18] sm:$0xff]
    %v230 = vld [vmem:[#allocation2 + $0x20] sm:$0xff]
    %v231 = vld [vmem:[#allocation2 + $0x28] sm:$0xff]
    %v232 = vld [vmem:[#allocation2 + $0x30] sm:$0xff]
    %v233 = vld [vmem:[#allocation2 + $0x38] sm:$0xff]
    %v234 = vld [vmem:[#allocation2 + $0x40] sm:$0xff]
    %v235 = vld [vmem:[#allocation2 + $0x48] sm:$0xff]
    %v236 = vld [vmem:[#allocation2 + $0x50] sm:$0xff]
    %v237 = vld [vmem:[#allocation2 + $0x58] sm:$0xff]
    %v238 = vld [vmem:[#allocation2 + $0x60] sm:$0xff]
    %v239 = vld [vmem:[#allocation2 + $0x68] sm:$0xff]
    %v240 = vld [vmem:[#allocation2 + $0x70] sm:$0xff]
    %v241 = vld [vmem:[#allocation2 + $0x78] sm:$0xff]
    %v242 = vld [vmem:[%s2] sm:$0xf]
    %v243 = vld [vmem:[%s2 + $0x4] sm:$0xf]
    %v244 = vld [vmem:[%s2 + $0x8] sm:$0xf]
    %v245 = vld [vmem:[%s2 + $0xc] sm:$0xf]
    %v246 = vld [vmem:[%s3] sm:$0x1]
    %v248 = vlaneseq
    %v249 = vshrl.u32 %v248, 7
    %v250 = vsub.s32 0, %v249
    %v251 = vrot.slane %v246, %v250
    %v257 = vunpack.c.l.b16 %v242
    %v258 = vunpack.c.l.b16 %v243
    %v259 = vunpack.c.l.b16 %v244
    %v260 = vunpack.c.l.b16 %v245
    %v261 = vpack.c.b16 %v258, %v257
    %v262 = vpack.c.b16 %v260, %v259
    %vm265 = vcmask 261120
    %v267 = vsel %vm265, %v226, 0
    %v270 = vsel %vm265, %v227, 0
    %v273 = vsel %vm265, %v228, 0
    %v276 = vsel %vm265, %v229, 0
    %v279 = vsel %vm265, %v230, 0
    %v282 = vsel %vm265, %v231, 0
    %v285 = vsel %vm265, %v232, 0
    %v288 = vsel %vm265, %v233, 0
    %v291 = vsel %vm265, %v234, 0
    %v294 = vsel %vm265, %v235, 0
    %v297 = vsel %vm265, %v236, 0
    %v300 = vsel %vm265, %v237, 0
    %v303 = vsel %vm265, %v238, 0
    %v306 = vsel %vm265, %v239, 0
    %v309 = vsel %vm265, %v240, 0
    %v312 = vsel %vm265, %v241, 0
    %314 = vmatprep.subr.bf16.mxu0 0
    %315 = vmatpush1.bf16.msra.mxu0 %v261
    %316 = vmatprep.subr.bf16.mxu0 0
    %317 = vmatpush1.bf16.msra.mxu0 %v262
    %318 = vmatprep.subr.bf16.mxu0 0
    %319 = vmatpush1.bf16.msra.mxu0 0
    %320 = vmatprep.subr.bf16.mxu0 0
    %321 = vmatpush1.bf16.msra.mxu0 0
    %322 = vmatprep.subr.bf16.mxu0 0
    %323 = vmatpush1.bf16.msra.mxu0 0
    %324 = vmatprep.subr.bf16.mxu0 0
    %325 = vmatpush1.bf16.msra.mxu0 0
    %326 = vmatprep.subr.bf16.mxu0 0
    %327 = vmatpush1.bf16.msra.mxu0 0
    %328 = vmatprep.subr.bf16.mxu0 0
    %329 = vmatpush1.bf16.msra.mxu0 0
    %330 = vmatprep.subr.bf16.mxu0 0
    %331 = vmatpush1.bf16.msra.mxu0 0
    %332 = vmatprep.subr.bf16.mxu0 0
    %333 = vmatpush1.bf16.msra.mxu0 0
    %334 = vmatprep.subr.bf16.mxu0 0
    %335 = vmatpush1.bf16.msra.mxu0 0
    %336 = vmatprep.subr.bf16.mxu0 0
    %337 = vmatpush1.bf16.msra.mxu0 0
    %338 = vmatprep.subr.bf16.mxu0 0
    %339 = vmatpush1.bf16.msra.mxu0 0
    %340 = vmatprep.subr.bf16.mxu0 0
    %341 = vmatpush1.bf16.msra.mxu0 0
    %342 = vmatprep.subr.bf16.mxu0 0
    %343 = vmatpush1.bf16.msra.mxu0 0
    %344 = vmatprep.subr.bf16.mxu0 0
    %345 = vmatpush1.bf16.msra.mxu0 0
    %346 = vmatprep.mubr.bf16.mxu0 0
    %347 = vmatmul.mubr.bf16.gmra.mrb[0].mxu0 %v267
    %v348 = vpop.f32.mrb[0].mxu0
    %v349 = vadd.f32 %v251, %v348
    %v350 = vpop.f32.mrb[0].mxu0
    %v351 = vpop.f32.mrb[0].mxu0
    %v352 = vadd.f32 %v251, %v351
    %v353 = vpop.f32.mrb[0].mxu0
    %354 = vmatprep.mubr.bf16.mxu0 0
    %355 = vmatmul.mubr.bf16.gmra.mrb[0].mxu0 %v270
    %v356 = vpop.f32.mrb[0].mxu0
    %v357 = vadd.f32 %v251, %v356
    %v358 = vpop.f32.mrb[0].mxu0
    %v359 = vpop.f32.mrb[0].mxu0
    %v360 = vadd.f32 %v251, %v359
    %v361 = vpop.f32.mrb[0].mxu0
    %362 = vmatprep.mubr.bf16.mxu0 0
    %363 = vmatmul.mubr.bf16.gmra.mrb[0].mxu0 %v273
    %v364 = vpop.f32.mrb[0].mxu0
    %v365 = vadd.f32 %v251, %v364
    %v366 = vpop.f32.mrb[0].mxu0
    %v367 = vpop.f32.mrb[0].mxu0
    %v368 = vadd.f32 %v251, %v367
    %v369 = vpop.f32.mrb[0].mxu0
    %370 = vmatprep.mubr.bf16.mxu0 0
    %371 = vmatmul.mubr.bf16.gmra.mrb[0].mxu0 %v276
    %v372 = vpop.f32.mrb[0].mxu0
    %v373 = vadd.f32 %v251, %v372
    %v374 = vpop.f32.mrb[0].mxu0
    %v375 = vpop.f32.mrb[0].mxu0
    %v376 = vadd.f32 %v251, %v375
    %v377 = vpop.f32.mrb[0].mxu0
    %378 = vmatprep.mubr.bf16.mxu0 0
    %379 = vmatmul.mubr.bf16.gmra.mrb[0].mxu0 %v279
    %v380 = vpop.f32.mrb[0].mxu0
    %v381 = vadd.f32 %v251, %v380
    %v382 = vpop.f32.mrb[0].mxu0
    %v383 = vpop.f32.mrb[0].mxu0
    %v384 = vadd.f32 %v251, %v383
    %v385 = vpop.f32.mrb[0].mxu0
    %386 = vmatprep.mubr.bf16.mxu0 0
    %387 = vmatmul.mubr.bf16.gmra.mrb[0].mxu0 %v282
    %v388 = vpop.f32.mrb[0].mxu0
    %v389 = vadd.f32 %v251, %v388
    %v390 = vpop.f32.mrb[0].mxu0
    %v391 = vpop.f32.mrb[0].mxu0
    %v392 = vadd.f32 %v251, %v391
    %v393 = vpop.f32.mrb[0].mxu0
    %394 = vmatprep.mubr.bf16.mxu0 0
    %395 = vmatmul.mubr.bf16.gmra.mrb[0].mxu0 %v285
    %v396 = vpop.f32.mrb[0].mxu0
    %v397 = vadd.f32 %v251, %v396
    %v398 = vpop.f32.mrb[0].mxu0
    %v399 = vpop.f32.mrb[0].mxu0
    %v400 = vadd.f32 %v251, %v399
    %v401 = vpop.f32.mrb[0].mxu0
    %402 = vmatprep.mubr.bf16.mxu0 0
    %403 = vmatmul.mubr.bf16.gmra.mrb[0].mxu0 %v288
    %v404 = vpop.f32.mrb[0].mxu0
    %v405 = vadd.f32 %v251, %v404
    %v406 = vpop.f32.mrb[0].mxu0
    %v407 = vpop.f32.mrb[0].mxu0
    %v408 = vadd.f32 %v251, %v407
    %v409 = vpop.f32.mrb[0].mxu0
    %410 = vmatprep.mubr.bf16.mxu0 0
    %411 = vmatmul.mubr.bf16.gmra.mrb[0].mxu0 %v291
    %v412 = vpop.f32.mrb[0].mxu0
    %v413 = vadd.f32 %v251, %v412
    %v414 = vpop.f32.mrb[0].mxu0
    %v415 = vpop.f32.mrb[0].mxu0
    %v416 = vadd.f32 %v251, %v415
    %v417 = vpop.f32.mrb[0].mxu0
    %418 = vmatprep.mubr.bf16.mxu0 0
    %419 = vmatmul.mubr.bf16.gmra.mrb[0].mxu0 %v294
    %v420 = vpop.f32.mrb[0].mxu0
    %v421 = vadd.f32 %v251, %v420
    %v422 = vpop.f32.mrb[0].mxu0
    %v423 = vpop.f32.mrb[0].mxu0
    %v424 = vadd.f32 %v251, %v423
    %v425 = vpop.f32.mrb[0].mxu0
    %426 = vmatprep.mubr.bf16.mxu0 0
    %427 = vmatmul.mubr.bf16.gmra.mrb[0].mxu0 %v297
    %v428 = vpop.f32.mrb[0].mxu0
    %v429 = vadd.f32 %v251, %v428
    %v430 = vpop.f32.mrb[0].mxu0
    %v431 = vpop.f32.mrb[0].mxu0
    %v432 = vadd.f32 %v251, %v431
    %v433 = vpop.f32.mrb[0].mxu0
    %434 = vmatprep.mubr.bf16.mxu0 0
    %435 = vmatmul.mubr.bf16.gmra.mrb[0].mxu0 %v300
    %v436 = vpop.f32.mrb[0].mxu0
    %v437 = vadd.f32 %v251, %v436
    %v438 = vpop.f32.mrb[0].mxu0
    %v439 = vpop.f32.mrb[0].mxu0
    %v440 = vadd.f32 %v251, %v439
    %v441 = vpop.f32.mrb[0].mxu0
    %442 = vmatprep.mubr.bf16.mxu0 0
    %443 = vmatmul.mubr.bf16.gmra.mrb[0].mxu0 %v303
    %v444 = vpop.f32.mrb[0].mxu0
    %v445 = vadd.f32 %v251, %v444
    %v446 = vpop.f32.mrb[0].mxu0
    %v447 = vpop.f32.mrb[0].mxu0
    %v448 = vadd.f32 %v251, %v447
    %v449 = vpop.f32.mrb[0].mxu0
    %450 = vmatprep.mubr.bf16.mxu0 0
    %451 = vmatmul.mubr.bf16.gmra.mrb[0].mxu0 %v306
    %v452 = vpop.f32.mrb[0].mxu0
    %v453 = vadd.f32 %v251, %v452
    %v454 = vpop.f32.mrb[0].mxu0
    %v455 = vpop.f32.mrb[0].mxu0
    %v456 = vadd.f32 %v251, %v455
    %v457 = vpop.f32.mrb[0].mxu0
    %458 = vmatprep.mubr.bf16.mxu0 0
    %459 = vmatmul.mubr.bf16.gmra.mrb[0].mxu0 %v309
    %v460 = vpop.f32.mrb[0].mxu0
    %v461 = vadd.f32 %v251, %v460
    %v462 = vpop.f32.mrb[0].mxu0
    %v463 = vpop.f32.mrb[0].mxu0
    %v464 = vadd.f32 %v251, %v463
    %v465 = vpop.f32.mrb[0].mxu0
    %466 = vmatprep.mubr.bf16.mxu0 0
    %467 = vmatmul.mubr.bf16.gmra.mrb[0].mxu0 %v312
    %v468 = vpop.f32.mrb[0].mxu0
    %v469 = vadd.f32 %v251, %v468
    %v470 = vpop.f32.mrb[0].mxu0
    %v471 = vpop.f32.mrb[0].mxu0
    %v472 = vadd.f32 %v251, %v471
    %v473 = vpop.f32.mrb[0].mxu0
    %474 = vdwg.mxu0
    %v475 = vmax.f32 %v349, 0.0
    %v476 = vmax.f32 %v352, 0.0
    %v477 = vmax.f32 %v357, 0.0
    %v478 = vmax.f32 %v360, 0.0
    %v479 = vmax.f32 %v365, 0.0
    %v480 = vmax.f32 %v368, 0.0
    %v481 = vmax.f32 %v373, 0.0
    %v482 = vmax.f32 %v376, 0.0
    %v483 = vmax.f32 %v381, 0.0
    %v484 = vmax.f32 %v384, 0.0
    %v485 = vmax.f32 %v389, 0.0
    %v486 = vmax.f32 %v392, 0.0
    %v487 = vmax.f32 %v397, 0.0
    %v488 = vmax.f32 %v400, 0.0
    %v489 = vmax.f32 %v405, 0.0
    %v490 = vmax.f32 %v408, 0.0
    %v491 = vmax.f32 %v413, 0.0
    %v492 = vmax.f32 %v416, 0.0
    %v493 = vmax.f32 %v421, 0.0
    %v494 = vmax.f32 %v424, 0.0
    %v495 = vmax.f32 %v429, 0.0
    %v496 = vmax.f32 %v432, 0.0
    %v497 = vmax.f32 %v437, 0.0
    %v498 = vmax.f32 %v440, 0.0
    %v499 = vmax.f32 %v445, 0.0
    %v500 = vmax.f32 %v448, 0.0
    %v501 = vmax.f32 %v453, 0.0
    %v502 = vmax.f32 %v456, 0.0
    %v503 = vmax.f32 %v461, 0.0
    %v504 = vmax.f32 %v464, 0.0
    %v505 = vmax.f32 %v469, 0.0
    %v506 = vmax.f32 %v472, 0.0
    %v507 = vpack.c.bf16 %v476, %v475
    %v508 = vpack.c.bf16 %v478, %v477
    %v509 = vpack.c.bf16 %v480, %v479
    %v510 = vpack.c.bf16 %v482, %v481
    %v511 = vpack.c.bf16 %v484, %v483
    %v512 = vpack.c.bf16 %v486, %v485
    %v513 = vpack.c.bf16 %v488, %v487
    %v514 = vpack.c.bf16 %v490, %v489
    %v515 = vpack.c.bf16 %v492, %v491
    %v516 = vpack.c.bf16 %v494, %v493
    %v517 = vpack.c.bf16 %v496, %v495
    %v518 = vpack.c.bf16 %v498, %v497
    %v519 = vpack.c.bf16 %v500, %v499
    %v520 = vpack.c.bf16 %v502, %v501
    %v521 = vpack.c.bf16 %v504, %v503
    %v522 = vpack.c.bf16 %v506, %v505
    %v523 = vld [vmem:[%s4] sm:$0xff]
    %v524 = vld [vmem:[%s4 + $0x8] sm:$0xf]
    %v525 = vld [vmem:[%s4 + $0xc] sm:$0xff]
    %v526 = vld [vmem:[%s4 + $0x14] sm:$0xf]
    %v527 = vld [vmem:[%s4 + $0x18] sm:$0xff]
    %v528 = vld [vmem:[%s4 + $0x20] sm:$0xf]
    %v529 = vld [vmem:[%s4 + $0x24] sm:$0xff]
    %v530 = vld [vmem:[%s4 + $0x2c] sm:$0xf]
    %v531 = vld [vmem:[%s4 + $0x30] sm:$0xff]
    %v532 = vld [vmem:[%s4 + $0x38] sm:$0xf]
    %v533 = vld [vmem:[%s4 + $0x3c] sm:$0xff]
    %v534 = vld [vmem:[%s4 + $0x44] sm:$0xf]
    %v535 = vld [vmem:[%s4 + $0x48] sm:$0xff]
    %v536 = vld [vmem:[%s4 + $0x50] sm:$0xf]
    %v537 = vld [vmem:[%s4 + $0x54] sm:$0xff]
    %v538 = vld [vmem:[%s4 + $0x5c] sm:$0xf]
    %v539 = vld [vmem:[%s4 + $0x60] sm:$0xff]
    %v540 = vld [vmem:[%s4 + $0x68] sm:$0xf]
    %v541 = vld [vmem:[%s4 + $0x6c] sm:$0xff]
    %v542 = vld [vmem:[%s4 + $0x74] sm:$0xf]
    %v543 = vld [vmem:[%s4 + $0x78] sm:$0xff]
    %v544 = vld [vmem:[%s4 + $0x80] sm:$0xf]
    %v545 = vld [vmem:[%s4 + $0x84] sm:$0xff]
    %v546 = vld [vmem:[%s4 + $0x8c] sm:$0xf]
    %v547 = vld [vmem:[%s4 + $0x90] sm:$0xff]
    %v548 = vld [vmem:[%s4 + $0x98] sm:$0xf]
    %v549 = vld [vmem:[%s4 + $0x9c] sm:$0xff]
    %v550 = vld [vmem:[%s4 + $0xa4] sm:$0xf]
    %v551 = vld [vmem:[%s4 + $0xa8] sm:$0xff]
    %v552 = vld [vmem:[%s4 + $0xb0] sm:$0xf]
    %v553 = vld [vmem:[%s4 + $0xb4] sm:$0xff]
    %v554 = vld [vmem:[%s4 + $0xbc] sm:$0xf]
    %v555 = vld [vmem:[%s5] sm:$0x7]
    %v557 = vlaneseq
    %v558 = vshrl.u32 %v557, 7
    %v559 = vsub.s32 0, %v558
    %v560 = vrot.slane %v555, %v559
    %v561 = vlaneseq
    %v562 = vshrl.u32 %v561, 7
    %v563 = vsub.s32 1, %v562
    %v564 = vrot.slane %v555, %v563
    %v565 = vlaneseq
    %v566 = vshrl.u32 %v565, 7
    %v567 = vsub.s32 2, %v566
    %v568 = vrot.slane %v555, %v567
    %v604 = vunpack.c.l.b16 %v523
    %v605 = vunpack.c.h.b16 %v523
    %v606 = vunpack.c.l.b16 %v524
    %v607 = vunpack.c.l.b16 %v525
    %v608 = vunpack.c.h.b16 %v525
    %v609 = vunpack.c.l.b16 %v526
    %v610 = vunpack.c.l.b16 %v527
    %v611 = vunpack.c.h.b16 %v527
    %v612 = vunpack.c.l.b16 %v528
    %v613 = vunpack.c.l.b16 %v529
    %v614 = vunpack.c.h.b16 %v529
    %v615 = vunpack.c.l.b16 %v530
    %v616 = vunpack.c.l.b16 %v531
    %v617 = vunpack.c.h.b16 %v531
    %v618 = vunpack.c.l.b16 %v532
    %v619 = vunpack.c.l.b16 %v533
    %v620 = vunpack.c.h.b16 %v533
    %v621 = vunpack.c.l.b16 %v534
    %v622 = vunpack.c.l.b16 %v535
    %v623 = vunpack.c.h.b16 %v535
    %v624 = vunpack.c.l.b16 %v536
    %v625 = vunpack.c.l.b16 %v537
    %v626 = vunpack.c.h.b16 %v537
    %v627 = vunpack.c.l.b16 %v538
    %v628 = vunpack.c.l.b16 %v539
    %v629 = vunpack.c.h.b16 %v539
    %v630 = vunpack.c.l.b16 %v540
    %v631 = vunpack.c.l.b16 %v541
    %v632 = vunpack.c.h.b16 %v541
    %v633 = vunpack.c.l.b16 %v542
    %v634 = vunpack.c.l.b16 %v543
    %v635 = vunpack.c.h.b16 %v543
    %v636 = vunpack.c.l.b16 %v544
    %v637 = vunpack.c.l.b16 %v545
    %v638 = vunpack.c.h.b16 %v545
    %v639 = vunpack.c.l.b16 %v546
    %v640 = vunpack.c.l.b16 %v547
    %v641 = vunpack.c.h.b16 %v547
    %v642 = vunpack.c.l.b16 %v548
    %v643 = vunpack.c.l.b16 %v549
    %v644 = vunpack.c.h.b16 %v549
    %v645 = vunpack.c.l.b16 %v550
    %v646 = vunpack.c.l.b16 %v551
    %v647 = vunpack.c.h.b16 %v551
    %v648 = vunpack.c.l.b16 %v552
    %v649 = vunpack.c.l.b16 %v553
    %v650 = vunpack.c.h.b16 %v553
    %v651 = vunpack.c.l.b16 %v554
    %v652 = vpack.c.b16 %v607, %v604
    %v653 = vpack.c.b16 %v608, %v605
    %v654 = vpack.c.b16 %v609, %v606
    %v655 = vpack.c.b16 %v613, %v610
    %v656 = vpack.c.b16 %v614, %v611
    %v657 = vpack.c.b16 %v615, %v612
    %v658 = vpack.c.b16 %v619, %v616
    %v659 = vpack.c.b16 %v620, %v617
    %v660 = vpack.c.b16 %v621, %v618
    %v661 = vpack.c.b16 %v625, %v622
    %v662 = vpack.c.b16 %v626, %v623
    %v663 = vpack.c.b16 %v627, %v624
    %v664 = vpack.c.b16 %v631, %v628
    %v665 = vpack.c.b16 %v632, %v629
    %v666 = vpack.c.b16 %v633, %v630
    %v667 = vpack.c.b16 %v637, %v634
    %v668 = vpack.c.b16 %v638, %v635
    %v669 = vpack.c.b16 %v639, %v636
    %v670 = vpack.c.b16 %v643, %v640
    %v671 = vpack.c.b16 %v644, %v641
    %v672 = vpack.c.b16 %v645, %v642
    %v673 = vpack.c.b16 %v649, %v646
    %v674 = vpack.c.b16 %v650, %v647
    %v675 = vpack.c.b16 %v651, %v648
    %700 = vmatprep.subr.bf16.mxu0 %v653
    %701 = vmatpush1.bf16.msra.mxu0 %v652
    %702 = vmatprep.subr.bf16.mxu0 %v656
    %703 = vmatpush1.bf16.msra.mxu0 %v655
    %704 = vmatprep.subr.bf16.mxu0 %v659
    %705 = vmatpush1.bf16.msra.mxu0 %v658
    %706 = vmatprep.subr.bf16.mxu0 %v662
    %707 = vmatpush1.bf16.msra.mxu0 %v661
    %708 = vmatprep.subr.bf16.mxu0 %v665
    %709 = vmatpush1.bf16.msra.mxu0 %v664
    %710 = vmatprep.subr.bf16.mxu0 %v668
    %711 = vmatpush1.bf16.msra.mxu0 %v667
    %712 = vmatprep.subr.bf16.mxu0 %v671
    %713 = vmatpush1.bf16.msra.mxu0 %v670
    %714 = vmatprep.subr.bf16.mxu0 %v674
    %715 = vmatpush1.bf16.msra.mxu0 %v673
    %716 = vmatprep.subr.bf16.mxu0 0
    %717 = vmatpush1.bf16.msra.mxu0 0
    %718 = vmatprep.subr.bf16.mxu0 0
    %719 = vmatpush1.bf16.msra.mxu0 0
    %720 = vmatprep.subr.bf16.mxu0 0
    %721 = vmatpush1.bf16.msra.mxu0 0
    %722 = vmatprep.subr.bf16.mxu0 0
    %723 = vmatpush1.bf16.msra.mxu0 0
    %724 = vmatprep.subr.bf16.mxu0 0
    %725 = vmatpush1.bf16.msra.mxu0 0
    %726 = vmatprep.subr.bf16.mxu0 0
    %727 = vmatpush1.bf16.msra.mxu0 0
    %728 = vmatprep.subr.bf16.mxu0 0
    %729 = vmatpush1.bf16.msra.mxu0 0
    %730 = vmatprep.subr.bf16.mxu0 0
    %731 = vmatpush1.bf16.msra.mxu0 0
    %732 = vmatprep.mubr.bf16.mxu0 0
    %733 = vmatmul.mubr.bf16.gmra.mrb[0].mxu0 %v507
    %v734 = vpop.f32.mrb[0].mxu0
    %v735 = vadd.f32 %v560, %v734
    %v736 = vpop.f32.mrb[0].mxu0
    %v737 = vadd.f32 %v564, %v736
    %v738 = vpop.f32.mrb[0].mxu0
    %v739 = vadd.f32 %v560, %v738
    %v740 = vpop.f32.mrb[0].mxu0
    %v741 = vadd.f32 %v564, %v740
    %742 = vmatprep.mubr.bf16.mxu0 0
    %743 = vmatmul.mubr.bf16.gmra.mrb[0].mxu0 %v508
    %v744 = vpop.f32.mrb[0].mxu0
    %v745 = vadd.f32 %v560, %v744
    %v746 = vpop.f32.mrb[0].mxu0
    %v747 = vadd.f32 %v564, %v746
    %v748 = vpop.f32.mrb[0].mxu0
    %v749 = vadd.f32 %v560, %v748
    %v750 = vpop.f32.mrb[0].mxu0
    %v751 = vadd.f32 %v564, %v750
    %752 = vmatprep.mubr.bf16.mxu0 0
    %753 = vmatmul.mubr.bf16.gmra.mrb[0].mxu0 %v509
    %v754 = vpop.f32.mrb[0].mxu0
    %v755 = vadd.f32 %v560, %v754
    %v756 = vpop.f32.mrb[0].mxu0
    %v757 = vadd.f32 %v564, %v756
    %v758 = vpop.f32.mrb[0].mxu0
    %v759 = vadd.f32 %v560, %v758
    %v760 = vpop.f32.mrb[0].mxu0
    %v761 = vadd.f32 %v564, %v760
    %762 = vmatprep.mubr.bf16.mxu0 0
    %763 = vmatmul.mubr.bf16.gmra.mrb[0].mxu0 %v510
    %v764 = vpop.f32.mrb[0].mxu0
    %v765 = vadd.f32 %v560, %v764
    %v766 = vpop.f32.mrb[0].mxu0
    %v767 = vadd.f32 %v564, %v766
    %v768 = vpop.f32.mrb[0].mxu0
    %v769 = vadd.f32 %v560, %v768
    %v770 = vpop.f32.mrb[0].mxu0
    %v771 = vadd.f32 %v564, %v770
    %772 = vmatprep.mubr.bf16.mxu0 0
    %773 = vmatmul.mubr.bf16.gmra.mrb[0].mxu0 %v511
    %v774 = vpop.f32.mrb[0].mxu0
    %v775 = vadd.f32 %v560, %v774
    %v776 = vpop.f32.mrb[0].mxu0
    %v777 = vadd.f32 %v564, %v776
    %v778 = vpop.f32.mrb[0].mxu0
    %v779 = vadd.f32 %v560, %v778
    %v780 = vpop.f32.mrb[0].mxu0
    %v781 = vadd.f32 %v564, %v780
    %782 = vmatprep.mubr.bf16.mxu0 0
    %783 = vmatmul.mubr.bf16.gmra.mrb[0].mxu0 %v512
    %v784 = vpop.f32.mrb[0].mxu0
    %v785 = vadd.f32 %v560, %v784
    %v786 = vpop.f32.mrb[0].mxu0
    %v787 = vadd.f32 %v564, %v786
    %v788 = vpop.f32.mrb[0].mxu0
    %v789 = vadd.f32 %v560, %v788
    %v790 = vpop.f32.mrb[0].mxu0
    %v791 = vadd.f32 %v564, %v790
    %792 = vmatprep.mubr.bf16.mxu0 0
    %793 = vmatmul.mubr.bf16.gmra.mrb[0].mxu0 %v513
    %v794 = vpop.f32.mrb[0].mxu0
    %v795 = vadd.f32 %v560, %v794
    %v796 = vpop.f32.mrb[0].mxu0
    %v797 = vadd.f32 %v564, %v796
    %v798 = vpop.f32.mrb[0].mxu0
    %v799 = vadd.f32 %v560, %v798
    %v800 = vpop.f32.mrb[0].mxu0
    %v801 = vadd.f32 %v564, %v800
    %802 = vmatprep.mubr.bf16.mxu0 0
    %803 = vmatmul.mubr.bf16.gmra.mrb[0].mxu0 %v514
    %v804 = vpop.f32.mrb[0].mxu0
    %v805 = vadd.f32 %v560, %v804
    %v806 = vpop.f32.mrb[0].mxu0
    %v807 = vadd.f32 %v564, %v806
    %v808 = vpop.f32.mrb[0].mxu0
    %v809 = vadd.f32 %v560, %v808
    %v810 = vpop.f32.mrb[0].mxu0
    %v811 = vadd.f32 %v564, %v810
    %812 = vmatprep.mubr.bf16.mxu0 0
    %813 = vmatmul.mubr.bf16.gmra.mrb[0].mxu0 %v515
    %v814 = vpop.f32.mrb[0].mxu0
    %v815 = vadd.f32 %v560, %v814
    %v816 = vpop.f32.mrb[0].mxu0
    %v817 = vadd.f32 %v564, %v816
    %v818 = vpop.f32.mrb[0].mxu0
    %v819 = vadd.f32 %v560, %v818
    %v820 = vpop.f32.mrb[0].mxu0
    %v821 = vadd.f32 %v564, %v820
    %822 = vmatprep.mubr.bf16.mxu0 0
    %823 = vmatmul.mubr.bf16.gmra.mrb[0].mxu0 %v516
    %v824 = vpop.f32.mrb[0].mxu0
    %v825 = vadd.f32 %v560, %v824
    %v826 = vpop.f32.mrb[0].mxu0
    %v827 = vadd.f32 %v564, %v826
    %v828 = vpop.f32.mrb[0].mxu0
    %v829 = vadd.f32 %v560, %v828
    %v830 = vpop.f32.mrb[0].mxu0
    %v831 = vadd.f32 %v564, %v830
    %832 = vmatprep.mubr.bf16.mxu0 0
    %833 = vmatmul.mubr.bf16.gmra.mrb[0].mxu0 %v517
    %v834 = vpop.f32.mrb[0].mxu0
    %v835 = vadd.f32 %v560, %v834
    %v836 = vpop.f32.mrb[0].mxu0
    %v837 = vadd.f32 %v564, %v836
    %v838 = vpop.f32.mrb[0].mxu0
    %v839 = vadd.f32 %v560, %v838
    %v840 = vpop.f32.mrb[0].mxu0
    %v841 = vadd.f32 %v564, %v840
    %842 = vmatprep.mubr.bf16.mxu0 0
    %843 = vmatmul.mubr.bf16.gmra.mrb[0].mxu0 %v518
    %v844 = vpop.f32.mrb[0].mxu0
    %v845 = vadd.f32 %v560, %v844
    %v846 = vpop.f32.mrb[0].mxu0
    %v847 = vadd.f32 %v564, %v846
    %v848 = vpop.f32.mrb[0].mxu0
    %v849 = vadd.f32 %v560, %v848
    %v850 = vpop.f32.mrb[0].mxu0
    %v851 = vadd.f32 %v564, %v850
    %852 = vmatprep.mubr.bf16.mxu0 0
    %853 = vmatmul.mubr.bf16.gmra.mrb[0].mxu0 %v519
    %v854 = vpop.f32.mrb[0].mxu0
    %v855 = vadd.f32 %v560, %v854
    %v856 = vpop.f32.mrb[0].mxu0
    %v857 = vadd.f32 %v564, %v856
    %v858 = vpop.f32.mrb[0].mxu0
    %v859 = vadd.f32 %v560, %v858
    %v860 = vpop.f32.mrb[0].mxu0
    %v861 = vadd.f32 %v564, %v860
    %862 = vmatprep.mubr.bf16.mxu0 0
    %863 = vmatmul.mubr.bf16.gmra.mrb[0].mxu0 %v520
    %v864 = vpop.f32.mrb[0].mxu0
    %v865 = vadd.f32 %v560, %v864
    %v866 = vpop.f32.mrb[0].mxu0
    %v867 = vadd.f32 %v564, %v866
    %v868 = vpop.f32.mrb[0].mxu0
    %v869 = vadd.f32 %v560, %v868
    %v870 = vpop.f32.mrb[0].mxu0
    %v871 = vadd.f32 %v564, %v870
    %872 = vmatprep.mubr.bf16.mxu0 0
    %873 = vmatmul.mubr.bf16.gmra.mrb[0].mxu0 %v521
    %v874 = vpop.f32.mrb[0].mxu0
    %v875 = vadd.f32 %v560, %v874
    %v876 = vpop.f32.mrb[0].mxu0
    %v877 = vadd.f32 %v564, %v876
    %v878 = vpop.f32.mrb[0].mxu0
    %v879 = vadd.f32 %v560, %v878
    %v880 = vpop.f32.mrb[0].mxu0
    %v881 = vadd.f32 %v564, %v880
    %882 = vmatprep.mubr.bf16.mxu0 0
    %883 = vmatmul.mubr.bf16.gmra.mrb[0].mxu0 %v522
    %v884 = vpop.f32.mrb[0].mxu0
    %v885 = vadd.f32 %v560, %v884
    %v886 = vpop.f32.mrb[0].mxu0
    %v887 = vadd.f32 %v564, %v886
    %v888 = vpop.f32.mrb[0].mxu0
    %v889 = vadd.f32 %v560, %v888
    %v890 = vpop.f32.mrb[0].mxu0
    %v891 = vadd.f32 %v564, %v890
    %892 = vdwg.mxu0
    %893 = vmatprep.subr.bf16.mxu0 0
    %894 = vmatpush1.bf16.msra.mxu0 %v654
    %895 = vmatprep.subr.bf16.mxu0 0
    %896 = vmatpush1.bf16.msra.mxu0 %v657
    %897 = vmatprep.subr.bf16.mxu0 0
    %898 = vmatpush1.bf16.msra.mxu0 %v660
    %899 = vmatprep.subr.bf16.mxu0 0
    %900 = vmatpush1.bf16.msra.mxu0 %v663
    %901 = vmatprep.subr.bf16.mxu0 0
    %902 = vmatpush1.bf16.msra.mxu0 %v666
    %903 = vmatprep.subr.bf16.mxu0 0
    %904 = vmatpush1.bf16.msra.mxu0 %v669
    %905 = vmatprep.subr.bf16.mxu0 0
    %906 = vmatpush1.bf16.msra.mxu0 %v672
    %907 = vmatprep.subr.bf16.mxu0 0
    %908 = vmatpush1.bf16.msra.mxu0 %v675
    %909 = vmatprep.subr.bf16.mxu0 0
    %910 = vmatpush1.bf16.msra.mxu0 0
    %911 = vmatprep.subr.bf16.mxu0 0
    %912 = vmatpush1.bf16.msra.mxu0 0
    %913 = vmatprep.subr.bf16.mxu0 0
    %914 = vmatpush1.bf16.msra.mxu0 0
    %915 = vmatprep.subr.bf16.mxu0 0
    %916 = vmatpush1.bf16.msra.mxu0 0
    %917 = vmatprep.subr.bf16.mxu0 0
    %918 = vmatpush1.bf16.msra.mxu0 0
    %919 = vmatprep.subr.bf16.mxu0 0
    %920 = vmatpush1.bf16.msra.mxu0 0
    %921 = vmatprep.subr.bf16.mxu0 0
    %922 = vmatpush1.bf16.msra.mxu0 0
    %923 = vmatprep.subr.bf16.mxu0 0
    %924 = vmatpush1.bf16.msra.mxu0 0
    %925 = vmatprep.mubr.bf16.mxu0 0
    %926 = vmatmul.mubr.bf16.gmra.mrb[0].mxu0 %v507
    %v927 = vpop.f32.mrb[0].mxu0
    %v928 = vadd.f32 %v568, %v927
    %v929 = vpop.f32.mrb[0].mxu0
    %v930 = vpop.f32.mrb[0].mxu0
    %v931 = vadd.f32 %v568, %v930
    %v932 = vpop.f32.mrb[0].mxu0
    %933 = vmatprep.mubr.bf16.mxu0 0
    %934 = vmatmul.mubr.bf16.gmra.mrb[0].mxu0 %v508
    %v935 = vpop.f32.mrb[0].mxu0
    %v936 = vadd.f32 %v568, %v935
    %v937 = vpop.f32.mrb[0].mxu0
    %v938 = vpop.f32.mrb[0].mxu0
    %v939 = vadd.f32 %v568, %v938
    %v940 = vpop.f32.mrb[0].mxu0
    %941 = vmatprep.mubr.bf16.mxu0 0
    %942 = vmatmul.mubr.bf16.gmra.mrb[0].mxu0 %v509
    %v943 = vpop.f32.mrb[0].mxu0
    %v944 = vadd.f32 %v568, %v943
    %v945 = vpop.f32.mrb[0].mxu0
    %v946 = vpop.f32.mrb[0].mxu0
    %v947 = vadd.f32 %v568, %v946
    %v948 = vpop.f32.mrb[0].mxu0
    %949 = vmatprep.mubr.bf16.mxu0 0
    %950 = vmatmul.mubr.bf16.gmra.mrb[0].mxu0 %v510
    %v951 = vpop.f32.mrb[0].mxu0
    %v952 = vadd.f32 %v568, %v951
    %v953 = vpop.f32.mrb[0].mxu0
    %v954 = vpop.f32.mrb[0].mxu0
    %v955 = vadd.f32 %v568, %v954
    %v956 = vpop.f32.mrb[0].mxu0
    %957 = vmatprep.mubr.bf16.mxu0 0
    %958 = vmatmul.mubr.bf16.gmra.mrb[0].mxu0 %v511
    %v959 = vpop.f32.mrb[0].mxu0
    %v960 = vadd.f32 %v568, %v959
    %v961 = vpop.f32.mrb[0].mxu0
    %v962 = vpop.f32.mrb[0].mxu0
    %v963 = vadd.f32 %v568, %v962
    %v964 = vpop.f32.mrb[0].mxu0
    %965 = vmatprep.mubr.bf16.mxu0 0
    %966 = vmatmul.mubr.bf16.gmra.mrb[0].mxu0 %v512
    %v967 = vpop.f32.mrb[0].mxu0
    %v968 = vadd.f32 %v568, %v967
    %v969 = vpop.f32.mrb[0].mxu0
    %v970 = vpop.f32.mrb[0].mxu0
    %v971 = vadd.f32 %v568, %v970
    %v972 = vpop.f32.mrb[0].mxu0
    %973 = vmatprep.mubr.bf16.mxu0 0
    %974 = vmatmul.mubr.bf16.gmra.mrb[0].mxu0 %v513
    %v975 = vpop.f32.mrb[0].mxu0
    %v976 = vadd.f32 %v568, %v975
    %v977 = vpop.f32.mrb[0].mxu0
    %v978 = vpop.f32.mrb[0].mxu0
    %v979 = vadd.f32 %v568, %v978
    %v980 = vpop.f32.mrb[0].mxu0
    %981 = vmatprep.mubr.bf16.mxu0 0
    %982 = vmatmul.mubr.bf16.gmra.mrb[0].mxu0 %v514
    %v983 = vpop.f32.mrb[0].mxu0
    %v984 = vadd.f32 %v568, %v983
    %v985 = vpop.f32.mrb[0].mxu0
    %v986 = vpop.f32.mrb[0].mxu0
    %v987 = vadd.f32 %v568, %v986
    %v988 = vpop.f32.mrb[0].mxu0
    %989 = vmatprep.mubr.bf16.mxu0 0
    %990 = vmatmul.mubr.bf16.gmra.mrb[0].mxu0 %v515
    %v991 = vpop.f32.mrb[0].mxu0
    %v992 = vadd.f32 %v568, %v991
    %v993 = vpop.f32.mrb[0].mxu0
    %v994 = vpop.f32.mrb[0].mxu0
    %v995 = vadd.f32 %v568, %v994
    %v996 = vpop.f32.mrb[0].mxu0
    %997 = vmatprep.mubr.bf16.mxu0 0
    %998 = vmatmul.mubr.bf16.gmra.mrb[0].mxu0 %v516
    %v999 = vpop.f32.mrb[0].mxu0
    %v1000 = vadd.f32 %v568, %v999
    %v1001 = vpop.f32.mrb[0].mxu0
    %v1002 = vpop.f32.mrb[0].mxu0
    %v1003 = vadd.f32 %v568, %v1002
    %v1004 = vpop.f32.mrb[0].mxu0
    %1005 = vmatprep.mubr.bf16.mxu0 0
    %1006 = vmatmul.mubr.bf16.gmra.mrb[0].mxu0 %v517
    %v1007 = vpop.f32.mrb[0].mxu0
    %v1008 = vadd.f32 %v568, %v1007
    %v1009 = vpop.f32.mrb[0].mxu0
    %v1010 = vpop.f32.mrb[0].mxu0
    %v1011 = vadd.f32 %v568, %v1010
    %v1012 = vpop.f32.mrb[0].mxu0
    %1013 = vmatprep.mubr.bf16.mxu0 0
    %1014 = vmatmul.mubr.bf16.gmra.mrb[0].mxu0 %v518
    %v1015 = vpop.f32.mrb[0].mxu0
    %v1016 = vadd.f32 %v568, %v1015
    %v1017 = vpop.f32.mrb[0].mxu0
    %v1018 = vpop.f32.mrb[0].mxu0
    %v1019 = vadd.f32 %v568, %v1018
    %v1020 = vpop.f32.mrb[0].mxu0
    %1021 = vmatprep.mubr.bf16.mxu0 0
    %1022 = vmatmul.mubr.bf16.gmra.mrb[0].mxu0 %v519
    %v1023 = vpop.f32.mrb[0].mxu0
    %v1024 = vadd.f32 %v568, %v1023
    %v1025 = vpop.f32.mrb[0].mxu0
    %v1026 = vpop.f32.mrb[0].mxu0
    %v1027 = vadd.f32 %v568, %v1026
    %v1028 = vpop.f32.mrb[0].mxu0
    %1029 = vmatprep.mubr.bf16.mxu0 0
    %1030 = vmatmul.mubr.bf16.gmra.mrb[0].mxu0 %v520
    %v1031 = vpop.f32.mrb[0].mxu0
    %v1032 = vadd.f32 %v568, %v1031
    %v1033 = vpop.f32.mrb[0].mxu0
    %v1034 = vpop.f32.mrb[0].mxu0
    %v1035 = vadd.f32 %v568, %v1034
    %v1036 = vpop.f32.mrb[0].mxu0
    %1037 = vmatprep.mubr.bf16.mxu0 0
    %1038 = vmatmul.mubr.bf16.gmra.mrb[0].mxu0 %v521
    %v1039 = vpop.f32.mrb[0].mxu0
    %v1040 = vadd.f32 %v568, %v1039
    %v1041 = vpop.f32.mrb[0].mxu0
    %v1042 = vpop.f32.mrb[0].mxu0
    %v1043 = vadd.f32 %v568, %v1042
    %v1044 = vpop.f32.mrb[0].mxu0
    %1045 = vmatprep.mubr.bf16.mxu0 0
    %1046 = vmatmul.mubr.bf16.gmra.mrb[0].mxu0 %v522
    %v1047 = vpop.f32.mrb[0].mxu0
    %v1048 = vadd.f32 %v568, %v1047
    %v1049 = vpop.f32.mrb[0].mxu0
    %v1050 = vpop.f32.mrb[0].mxu0
    %v1051 = vadd.f32 %v568, %v1050
    %v1052 = vpop.f32.mrb[0].mxu0
    %1053 = vdwg.mxu0
    %v1054 = vmax.f32 %v735, 0.0
    %v1055 = vmax.f32 %v737, 0.0
    %v1056 = vmax.f32 %v928, 0.0
    %v1057 = vmax.f32 %v739, 0.0
    %v1058 = vmax.f32 %v741, 0.0
    %v1059 = vmax.f32 %v931, 0.0
    %v1060 = vmax.f32 %v745, 0.0
    %v1061 = vmax.f32 %v747, 0.0
    %v1062 = vmax.f32 %v936, 0.0
    %v1063 = vmax.f32 %v749, 0.0
    %v1064 = vmax.f32 %v751, 0.0
    %v1065 = vmax.f32 %v939, 0.0
    %v1066 = vmax.f32 %v755, 0.0
    %v1067 = vmax.f32 %v757, 0.0
    %v1068 = vmax.f32 %v944, 0.0
    %v1069 = vmax.f32 %v759, 0.0
    %v1070 = vmax.f32 %v761, 0.0
    %v1071 = vmax.f32 %v947, 0.0
    %v1072 = vmax.f32 %v765, 0.0
    %v1073 = vmax.f32 %v767, 0.0
    %v1074 = vmax.f32 %v952, 0.0
    %v1075 = vmax.f32 %v769, 0.0
    %v1076 = vmax.f32 %v771, 0.0
    %v1077 = vmax.f32 %v955, 0.0
    %v1078 = vmax.f32 %v775, 0.0
    %v1079 = vmax.f32 %v777, 0.0
    %v1080 = vmax.f32 %v960, 0.0
    %v1081 = vmax.f32 %v779, 0.0
    %v1082 = vmax.f32 %v781, 0.0
    %v1083 = vmax.f32 %v963, 0.0
    %v1084 = vmax.f32 %v785, 0.0
    %v1085 = vmax.f32 %v787, 0.0
    %v1086 = vmax.f32 %v968, 0.0
    %v1087 = vmax.f32 %v789, 0.0
    %v1088 = vmax.f32 %v791, 0.0
    %v1089 = vmax.f32 %v971, 0.0
    %v1090 = vmax.f32 %v795, 0.0
    %v1091 = vmax.f32 %v797, 0.0
    %v1092 = vmax.f32 %v976, 0.0
    %v1093 = vmax.f32 %v799, 0.0
    %v1094 = vmax.f32 %v801, 0.0
    %v1095 = vmax.f32 %v979, 0.0
    %v1096 = vmax.f32 %v805, 0.0
    %v1097 = vmax.f32 %v807, 0.0
    %v1098 = vmax.f32 %v984, 0.0
    %v1099 = vmax.f32 %v809, 0.0
    %v1100 = vmax.f32 %v811, 0.0
    %v1101 = vmax.f32 %v987, 0.0
    %v1102 = vmax.f32 %v815, 0.0
    %v1103 = vmax.f32 %v817, 0.0
    %v1104 = vmax.f32 %v992, 0.0
    %v1105 = vmax.f32 %v819, 0.0
    %v1106 = vmax.f32 %v821, 0.0
    %v1107 = vmax.f32 %v995, 0.0
    %v1108 = vmax.f32 %v825, 0.0
    %v1109 = vmax.f32 %v827, 0.0
    %v1110 = vmax.f32 %v1000, 0.0
    %v1111 = vmax.f32 %v829, 0.0
    %v1112 = vmax.f32 %v831, 0.0
    %v1113 = vmax.f32 %v1003, 0.0
    %v1114 = vmax.f32 %v835, 0.0
    %v1115 = vmax.f32 %v837, 0.0
    %v1116 = vmax.f32 %v1008, 0.0
    %v1117 = vmax.f32 %v839, 0.0
    %v1118 = vmax.f32 %v841, 0.0
    %v1119 = vmax.f32 %v1011, 0.0
    %v1120 = vmax.f32 %v845, 0.0
    %v1121 = vmax.f32 %v847, 0.0
    %v1122 = vmax.f32 %v1016, 0.0
    %v1123 = vmax.f32 %v849, 0.0
    %v1124 = vmax.f32 %v851, 0.0
    %v1125 = vmax.f32 %v1019, 0.0
    %v1126 = vmax.f32 %v855, 0.0
    %v1127 = vmax.f32 %v857, 0.0
    %v1128 = vmax.f32 %v1024, 0.0
    %v1129 = vmax.f32 %v859, 0.0
    %v1130 = vmax.f32 %v861, 0.0
    %v1131 = vmax.f32 %v1027, 0.0
    %v1132 = vmax.f32 %v865, 0.0
    %v1133 = vmax.f32 %v867, 0.0
    %v1134 = vmax.f32 %v1032, 0.0
    %v1135 = vmax.f32 %v869, 0.0
    %v1136 = vmax.f32 %v871, 0.0
    %v1137 = vmax.f32 %v1035, 0.0
    %v1138 = vmax.f32 %v875, 0.0
    %v1139 = vmax.f32 %v877, 0.0
    %v1140 = vmax.f32 %v1040, 0.0
    %v1141 = vmax.f32 %v879, 0.0
    %v1142 = vmax.f32 %v881, 0.0
    %v1143 = vmax.f32 %v1043, 0.0
    %v1144 = vmax.f32 %v885, 0.0
    %v1145 = vmax.f32 %v887, 0.0
    %v1146 = vmax.f32 %v1048, 0.0
    %v1147 = vmax.f32 %v889, 0.0
    %v1148 = vmax.f32 %v891, 0.0
    %v1149 = vmax.f32 %v1051, 0.0
    %v1150 = vld [vmem:[%s6] sm:$0x7]
    %v1152 = vlaneseq
    %v1153 = vshrl.u32 %v1152, 7
    %v1154 = vsub.s32 0, %v1153
    %v1155 = vrot.slane %v1150, %v1154
    %v1156 = vlaneseq
    %v1157 = vshrl.u32 %v1156, 7
    %v1158 = vsub.s32 1, %v1157
    %v1159 = vrot.slane %v1150, %v1158
    %v1160 = vlaneseq
    %v1161 = vshrl.u32 %v1160, 7
    %v1162 = vsub.s32 2, %v1161
    %v1163 = vrot.slane %v1150, %v1162
    %v1167 = vmul.f32 %v1054, %v1155
    %v1168 = vmul.f32 %v1055, %v1159
    %v1169 = vmul.f32 %v1056, %v1163
    %v1170 = vmul.f32 %v1057, %v1155
    %v1171 = vmul.f32 %v1058, %v1159
    %v1172 = vmul.f32 %v1059, %v1163
    %v1173 = vmul.f32 %v1060, %v1155
    %v1174 = vmul.f32 %v1061, %v1159
    %v1175 = vmul.f32 %v1062, %v1163
    %v1176 = vmul.f32 %v1063, %v1155
    %v1177 = vmul.f32 %v1064, %v1159
    %v1178 = vmul.f32 %v1065, %v1163
    %v1179 = vmul.f32 %v1066, %v1155
    %v1180 = vmul.f32 %v1067, %v1159
    %v1181 = vmul.f32 %v1068, %v1163
    %v1182 = vmul.f32 %v1069, %v1155
    %v1183 = vmul.f32 %v1070, %v1159
    %v1184 = vmul.f32 %v1071, %v1163
    %v1185 = vmul.f32 %v1072, %v1155
    %v1186 = vmul.f32 %v1073, %v1159
    %v1187 = vmul.f32 %v1074, %v1163
    %v1188 = vmul.f32 %v1075, %v1155
    %v1189 = vmul.f32 %v1076, %v1159
    %v1190 = vmul.f32 %v1077, %v1163
    %v1191 = vmul.f32 %v1078, %v1155
    %v1192 = vmul.f32 %v1079, %v1159
    %v1193 = vmul.f32 %v1080, %v1163
    %v1194 = vmul.f32 %v1081, %v1155
    %v1195 = vmul.f32 %v1082, %v1159
    %v1196 = vmul.f32 %v1083, %v1163
    %v1197 = vmul.f32 %v1084, %v1155
    %v1198 = vmul.f32 %v1085, %v1159
    %v1199 = vmul.f32 %v1086, %v1163
    %v1200 = vmul.f32 %v1087, %v1155
    %v1201 = vmul.f32 %v1088, %v1159
    %v1202 = vmul.f32 %v1089, %v1163
    %v1203 = vmul.f32 %v1090, %v1155
    %v1204 = vmul.f32 %v1091, %v1159
    %v1205 = vmul.f32 %v1092, %v1163
    %v1206 = vmul.f32 %v1093, %v1155
    %v1207 = vmul.f32 %v1094, %v1159
    %v1208 = vmul.f32 %v1095, %v1163
    %v1209 = vmul.f32 %v1096, %v1155
    %v1210 = vmul.f32 %v1097, %v1159
    %v1211 = vmul.f32 %v1098, %v1163
    %v1212 = vmul.f32 %v1099, %v1155
    %v1213 = vmul.f32 %v1100, %v1159
    %v1214 = vmul.f32 %v1101, %v1163
    %v1215 = vmul.f32 %v1102, %v1155
    %v1216 = vmul.f32 %v1103, %v1159
    %v1217 = vmul.f32 %v1104, %v1163
    %v1218 = vmul.f32 %v1105, %v1155
    %v1219 = vmul.f32 %v1106, %v1159
    %v1220 = vmul.f32 %v1107, %v1163
    %v1221 = vmul.f32 %v1108, %v1155
    %v1222 = vmul.f32 %v1109, %v1159
    %v1223 = vmul.f32 %v1110, %v1163
    %v1224 = vmul.f32 %v1111, %v1155
    %v1225 = vmul.f32 %v1112, %v1159
    %v1226 = vmul.f32 %v1113, %v1163
    %v1227 = vmul.f32 %v1114, %v1155
    %v1228 = vmul.f32 %v1115, %v1159
    %v1229 = vmul.f32 %v1116, %v1163
    %v1230 = vmul.f32 %v1117, %v1155
    %v1231 = vmul.f32 %v1118, %v1159
    %v1232 = vmul.f32 %v1119, %v1163
    %v1233 = vmul.f32 %v1120, %v1155
    %v1234 = vmul.f32 %v1121, %v1159
    %v1235 = vmul.f32 %v1122, %v1163
    %v1236 = vmul.f32 %v1123, %v1155
    %v1237 = vmul.f32 %v1124, %v1159
    %v1238 = vmul.f32 %v1125, %v1163
    %v1239 = vmul.f32 %v1126, %v1155
    %v1240 = vmul.f32 %v1127, %v1159
    %v1241 = vmul.f32 %v1128, %v1163
    %v1242 = vmul.f32 %v1129, %v1155
    %v1243 = vmul.f32 %v1130, %v1159
    %v1244 = vmul.f32 %v1131, %v1163
    %v1245 = vmul.f32 %v1132, %v1155
    %v1246 = vmul.f32 %v1133, %v1159
    %v1247 = vmul.f32 %v1134, %v1163
    %v1248 = vmul.f32 %v1135, %v1155
    %v1249 = vmul.f32 %v1136, %v1159
    %v1250 = vmul.f32 %v1137, %v1163
    %v1251 = vmul.f32 %v1138, %v1155
    %v1252 = vmul.f32 %v1139, %v1159
    %v1253 = vmul.f32 %v1140, %v1163
    %v1254 = vmul.f32 %v1141, %v1155
    %v1255 = vmul.f32 %v1142, %v1159
    %v1256 = vmul.f32 %v1143, %v1163
    %v1257 = vmul.f32 %v1144, %v1155
    %v1258 = vmul.f32 %v1145, %v1159
    %v1259 = vmul.f32 %v1146, %v1163
    %v1260 = vmul.f32 %v1147, %v1155
    %v1261 = vmul.f32 %v1148, %v1159
    %v1262 = vmul.f32 %v1149, %v1163
    %v1263 = vadd.f32 %v1167, %v1168
    %v1264 = vadd.f32 %v1263, %v1169
    %1265 = vadd.xlane.f32.xlu0 %v1264
    %v1266 = vpop.xlane.xlu0 %1265
    %v1267 = vadd.f32 %v1170, %v1171
    %v1268 = vadd.f32 %v1267, %v1172
    %1269 = vadd.xlane.f32.xlu0 %v1268
    %v1270 = vpop.xlane.xlu0 %1269
    %v1271 = vadd.f32 %v1173, %v1174
    %v1272 = vadd.f32 %v1271, %v1175
    %1273 = vadd.xlane.f32.xlu0 %v1272
    %v1274 = vpop.xlane.xlu0 %1273
    %v1275 = vadd.f32 %v1176, %v1177
    %v1276 = vadd.f32 %v1275, %v1178
    %1277 = vadd.xlane.f32.xlu0 %v1276
    %v1278 = vpop.xlane.xlu0 %1277
    %v1279 = vadd.f32 %v1179, %v1180
    %v1280 = vadd.f32 %v1279, %v1181
    %1281 = vadd.xlane.f32.xlu0 %v1280
    %v1282 = vpop.xlane.xlu0 %1281
    %v1283 = vadd.f32 %v1182, %v1183
    %v1284 = vadd.f32 %v1283, %v1184
    %1285 = vadd.xlane.f32.xlu0 %v1284
    %v1286 = vpop.xlane.xlu0 %1285
    %v1287 = vadd.f32 %v1185, %v1186
    %v1288 = vadd.f32 %v1287, %v1187
    %1289 = vadd.xlane.f32.xlu0 %v1288
    %v1290 = vpop.xlane.xlu0 %1289
    %v1291 = vadd.f32 %v1188, %v1189
    %v1292 = vadd.f32 %v1291, %v1190
    %1293 = vadd.xlane.f32.xlu0 %v1292
    %v1294 = vpop.xlane.xlu0 %1293
    %v1295 = vadd.f32 %v1191, %v1192
    %v1296 = vadd.f32 %v1295, %v1193
    %1297 = vadd.xlane.f32.xlu0 %v1296
    %v1298 = vpop.xlane.xlu0 %1297
    %v1299 = vadd.f32 %v1194, %v1195
    %v1300 = vadd.f32 %v1299, %v1196
    %1301 = vadd.xlane.f32.xlu0 %v1300
    %v1302 = vpop.xlane.xlu0 %1301
    %v1303 = vadd.f32 %v1197, %v1198
    %v1304 = vadd.f32 %v1303, %v1199
    %1305 = vadd.xlane.f32.xlu0 %v1304
    %v1306 = vpop.xlane.xlu0 %1305
    %v1307 = vadd.f32 %v1200, %v1201
    %v1308 = vadd.f32 %v1307, %v1202
    %1309 = vadd.xlane.f32.xlu0 %v1308
    %v1310 = vpop.xlane.xlu0 %1309
    %v1311 = vadd.f32 %v1203, %v1204
    %v1312 = vadd.f32 %v1311, %v1205
    %1313 = vadd.xlane.f32.xlu0 %v1312
    %v1314 = vpop.xlane.xlu0 %1313
    %v1315 = vadd.f32 %v1206, %v1207
    %v1316 = vadd.f32 %v1315, %v1208
    %1317 = vadd.xlane.f32.xlu0 %v1316
    %v1318 = vpop.xlane.xlu0 %1317
    %v1319 = vadd.f32 %v1209, %v1210
    %v1320 = vadd.f32 %v1319, %v1211
    %1321 = vadd.xlane.f32.xlu0 %v1320
    %v1322 = vpop.xlane.xlu0 %1321
    %v1323 = vadd.f32 %v1212, %v1213
    %v1324 = vadd.f32 %v1323, %v1214
    %1325 = vadd.xlane.f32.xlu0 %v1324
    %v1326 = vpop.xlane.xlu0 %1325
    %v1327 = vadd.f32 %v1215, %v1216
    %v1328 = vadd.f32 %v1327, %v1217
    %1329 = vadd.xlane.f32.xlu0 %v1328
    %v1330 = vpop.xlane.xlu0 %1329
    %v1331 = vadd.f32 %v1218, %v1219
    %v1332 = vadd.f32 %v1331, %v1220
    %1333 = vadd.xlane.f32.xlu0 %v1332
    %v1334 = vpop.xlane.xlu0 %1333
    %v1335 = vadd.f32 %v1221, %v1222
    %v1336 = vadd.f32 %v1335, %v1223
    %1337 = vadd.xlane.f32.xlu0 %v1336
    %v1338 = vpop.xlane.xlu0 %1337
    %v1339 = vadd.f32 %v1224, %v1225
    %v1340 = vadd.f32 %v1339, %v1226
    %1341 = vadd.xlane.f32.xlu0 %v1340
    %v1342 = vpop.xlane.xlu0 %1341
    %v1343 = vadd.f32 %v1227, %v1228
    %v1344 = vadd.f32 %v1343, %v1229
    %1345 = vadd.xlane.f32.xlu0 %v1344
    %v1346 = vpop.xlane.xlu0 %1345
    %v1347 = vadd.f32 %v1230, %v1231
    %v1348 = vadd.f32 %v1347, %v1232
    %1349 = vadd.xlane.f32.xlu0 %v1348
    %v1350 = vpop.xlane.xlu0 %1349
    %v1351 = vadd.f32 %v1233, %v1234
    %v1352 = vadd.f32 %v1351, %v1235
    %1353 = vadd.xlane.f32.xlu0 %v1352
    %v1354 = vpop.xlane.xlu0 %1353
    %v1355 = vadd.f32 %v1236, %v1237
    %v1356 = vadd.f32 %v1355, %v1238
    %1357 = vadd.xlane.f32.xlu0 %v1356
    %v1358 = vpop.xlane.xlu0 %1357
    %v1359 = vadd.f32 %v1239, %v1240
    %v1360 = vadd.f32 %v1359, %v1241
    %1361 = vadd.xlane.f32.xlu0 %v1360
    %v1362 = vpop.xlane.xlu0 %1361
    %v1363 = vadd.f32 %v1242, %v1243
    %v1364 = vadd.f32 %v1363, %v1244
    %1365 = vadd.xlane.f32.xlu0 %v1364
    %v1366 = vpop.xlane.xlu0 %1365
    %v1367 = vadd.f32 %v1245, %v1246
    %v1368 = vadd.f32 %v1367, %v1247
    %1369 = vadd.xlane.f32.xlu0 %v1368
    %v1370 = vpop.xlane.xlu0 %1369
    %v1371 = vadd.f32 %v1248, %v1249
    %v1372 = vadd.f32 %v1371, %v1250
    %1373 = vadd.xlane.f32.xlu0 %v1372
    %v1374 = vpop.xlane.xlu0 %1373
    %v1375 = vadd.f32 %v1251, %v1252
    %v1376 = vadd.f32 %v1375, %v1253
    %1377 = vadd.xlane.f32.xlu0 %v1376
    %v1378 = vpop.xlane.xlu0 %1377
    %v1379 = vadd.f32 %v1254, %v1255
    %v1380 = vadd.f32 %v1379, %v1256
    %1381 = vadd.xlane.f32.xlu0 %v1380
    %v1382 = vpop.xlane.xlu0 %1381
    %v1383 = vadd.f32 %v1257, %v1258
    %v1384 = vadd.f32 %v1383, %v1259
    %1385 = vadd.xlane.f32.xlu0 %v1384
    %v1386 = vpop.xlane.xlu0 %1385
    %v1387 = vadd.f32 %v1260, %v1261
    %v1388 = vadd.f32 %v1387, %v1262
    %1389 = vadd.xlane.f32.xlu0 %v1388
    %v1390 = vpop.xlane.xlu0 %1389
    %s1391 = sld [smem:[#allocation3]]
    %v1392 = vstv %s1391
    %v1393 = vadd.f32 %v1266, %v1392
    %v1394 = vadd.f32 %v1270, %v1392
    %v1395 = vadd.f32 %v1274, %v1392
    %v1396 = vadd.f32 %v1278, %v1392
    %v1397 = vadd.f32 %v1282, %v1392
    %v1398 = vadd.f32 %v1286, %v1392
    %v1399 = vadd.f32 %v1290, %v1392
    %v1400 = vadd.f32 %v1294, %v1392
    %v1401 = vadd.f32 %v1298, %v1392
    %v1402 = vadd.f32 %v1302, %v1392
    %v1403 = vadd.f32 %v1306, %v1392
    %v1404 = vadd.f32 %v1310, %v1392
    %v1405 = vadd.f32 %v1314, %v1392
    %v1406 = vadd.f32 %v1318, %v1392
    %v1407 = vadd.f32 %v1322, %v1392
    %v1408 = vadd.f32 %v1326, %v1392
    %v1409 = vadd.f32 %v1330, %v1392
    %v1410 = vadd.f32 %v1334, %v1392
    %v1411 = vadd.f32 %v1338, %v1392
    %v1412 = vadd.f32 %v1342, %v1392
    %v1413 = vadd.f32 %v1346, %v1392
    %v1414 = vadd.f32 %v1350, %v1392
    %v1415 = vadd.f32 %v1354, %v1392
    %v1416 = vadd.f32 %v1358, %v1392
    %v1417 = vadd.f32 %v1362, %v1392
    %v1418 = vadd.f32 %v1366, %v1392
    %v1419 = vadd.f32 %v1370, %v1392
    %v1420 = vadd.f32 %v1374, %v1392
    %v1421 = vadd.f32 %v1378, %v1392
    %v1422 = vadd.f32 %v1382, %v1392
    %v1423 = vadd.f32 %v1386, %v1392
    %v1424 = vadd.f32 %v1390, %v1392
    %v1457 = vlaneseq
    %v1458 = vshrl.u32 %v1457, 7
    %v1459 = vsub.s32 0, %v1458
    %v1460 = vrot.slane %v1393, %v1459
    %v1461 = vlaneseq
    %v1462 = vshrl.u32 %v1461, 7
    %v1463 = vsub.s32 1, %v1462
    %v1464 = vrot.slane %v1393, %v1463
    %v1465 = vlaneseq
    %v1466 = vshrl.u32 %v1465, 7
    %v1467 = vsub.s32 2, %v1466
    %v1468 = vrot.slane %v1393, %v1467
    %v1469 = vlaneseq
    %v1470 = vshrl.u32 %v1469, 7
    %v1471 = vsub.s32 3, %v1470
    %v1472 = vrot.slane %v1393, %v1471
    %v1473 = vlaneseq
    %v1474 = vshrl.u32 %v1473, 7
    %v1475 = vsub.s32 4, %v1474
    %v1476 = vrot.slane %v1393, %v1475
    %v1477 = vlaneseq
    %v1478 = vshrl.u32 %v1477, 7
    %v1479 = vsub.s32 5, %v1478
    %v1480 = vrot.slane %v1393, %v1479
    %v1481 = vlaneseq
    %v1482 = vshrl.u32 %v1481, 7
    %v1483 = vsub.s32 6, %v1482
    %v1484 = vrot.slane %v1393, %v1483
    %v1485 = vlaneseq
    %v1486 = vshrl.u32 %v1485, 7
    %v1487 = vsub.s32 7, %v1486
    %v1488 = vrot.slane %v1393, %v1487
    %v1489 = vlaneseq
    %v1490 = vshrl.u32 %v1489, 7
    %v1491 = vsub.s32 0, %v1490
    %v1492 = vrot.slane %v1394, %v1491
    %v1493 = vlaneseq
    %v1494 = vshrl.u32 %v1493, 7
    %v1495 = vsub.s32 1, %v1494
    %v1496 = vrot.slane %v1394, %v1495
    %v1497 = vlaneseq
    %v1498 = vshrl.u32 %v1497, 7
    %v1499 = vsub.s32 2, %v1498
    %v1500 = vrot.slane %v1394, %v1499
    %v1501 = vlaneseq
    %v1502 = vshrl.u32 %v1501, 7
    %v1503 = vsub.s32 3, %v1502
    %v1504 = vrot.slane %v1394, %v1503
    %v1505 = vlaneseq
    %v1506 = vshrl.u32 %v1505, 7
    %v1507 = vsub.s32 4, %v1506
    %v1508 = vrot.slane %v1394, %v1507
    %v1509 = vlaneseq
    %v1510 = vshrl.u32 %v1509, 7
    %v1511 = vsub.s32 5, %v1510
    %v1512 = vrot.slane %v1394, %v1511
    %v1513 = vlaneseq
    %v1514 = vshrl.u32 %v1513, 7
    %v1515 = vsub.s32 6, %v1514
    %v1516 = vrot.slane %v1394, %v1515
    %v1517 = vlaneseq
    %v1518 = vshrl.u32 %v1517, 7
    %v1519 = vsub.s32 7, %v1518
    %v1520 = vrot.slane %v1394, %v1519
    %v1521 = vlaneseq
    %v1522 = vshrl.u32 %v1521, 7
    %v1523 = vsub.s32 0, %v1522
    %v1524 = vrot.slane %v1395, %v1523
    %v1525 = vlaneseq
    %v1526 = vshrl.u32 %v1525, 7
    %v1527 = vsub.s32 1, %v1526
    %v1528 = vrot.slane %v1395, %v1527
    %v1529 = vlaneseq
    %v1530 = vshrl.u32 %v1529, 7
    %v1531 = vsub.s32 2, %v1530
    %v1532 = vrot.slane %v1395, %v1531
    %v1533 = vlaneseq
    %v1534 = vshrl.u32 %v1533, 7
    %v1535 = vsub.s32 3, %v1534
    %v1536 = vrot.slane %v1395, %v1535
    %v1537 = vlaneseq
    %v1538 = vshrl.u32 %v1537, 7
    %v1539 = vsub.s32 4, %v1538
    %v1540 = vrot.slane %v1395, %v1539
    %v1541 = vlaneseq
    %v1542 = vshrl.u32 %v1541, 7
    %v1543 = vsub.s32 5, %v1542
    %v1544 = vrot.slane %v1395, %v1543
    %v1545 = vlaneseq
    %v1546 = vshrl.u32 %v1545, 7
    %v1547 = vsub.s32 6, %v1546
    %v1548 = vrot.slane %v1395, %v1547
    %v1549 = vlaneseq
    %v1550 = vshrl.u32 %v1549, 7
    %v1551 = vsub.s32 7, %v1550
    %v1552 = vrot.slane %v1395, %v1551
    %v1553 = vlaneseq
    %v1554 = vshrl.u32 %v1553, 7
    %v1555 = vsub.s32 0, %v1554
    %v1556 = vrot.slane %v1396, %v1555
    %v1557 = vlaneseq
    %v1558 = vshrl.u32 %v1557, 7
    %v1559 = vsub.s32 1, %v1558
    %v1560 = vrot.slane %v1396, %v1559
    %v1561 = vlaneseq
    %v1562 = vshrl.u32 %v1561, 7
    %v1563 = vsub.s32 2, %v1562
    %v1564 = vrot.slane %v1396, %v1563
    %v1565 = vlaneseq
    %v1566 = vshrl.u32 %v1565, 7
    %v1567 = vsub.s32 3, %v1566
    %v1568 = vrot.slane %v1396, %v1567
    %v1569 = vlaneseq
    %v1570 = vshrl.u32 %v1569, 7
    %v1571 = vsub.s32 4, %v1570
    %v1572 = vrot.slane %v1396, %v1571
    %v1573 = vlaneseq
    %v1574 = vshrl.u32 %v1573, 7
    %v1575 = vsub.s32 5, %v1574
    %v1576 = vrot.slane %v1396, %v1575
    %v1577 = vlaneseq
    %v1578 = vshrl.u32 %v1577, 7
    %v1579 = vsub.s32 6, %v1578
    %v1580 = vrot.slane %v1396, %v1579
    %v1581 = vlaneseq
    %v1582 = vshrl.u32 %v1581, 7
    %v1583 = vsub.s32 7, %v1582
    %v1584 = vrot.slane %v1396, %v1583
    %v1585 = vlaneseq
    %v1586 = vshrl.u32 %v1585, 7
    %v1587 = vsub.s32 0, %v1586
    %v1588 = vrot.slane %v1397, %v1587
    %v1589 = vlaneseq
    %v1590 = vshrl.u32 %v1589, 7
    %v1591 = vsub.s32 1, %v1590
    %v1592 = vrot.slane %v1397, %v1591
    %v1593 = vlaneseq
    %v1594 = vshrl.u32 %v1593, 7
    %v1595 = vsub.s32 2, %v1594
    %v1596 = vrot.slane %v1397, %v1595
    %v1597 = vlaneseq
    %v1598 = vshrl.u32 %v1597, 7
    %v1599 = vsub.s32 3, %v1598
    %v1600 = vrot.slane %v1397, %v1599
    %v1601 = vlaneseq
    %v1602 = vshrl.u32 %v1601, 7
    %v1603 = vsub.s32 4, %v1602
    %v1604 = vrot.slane %v1397, %v1603
    %v1605 = vlaneseq
    %v1606 = vshrl.u32 %v1605, 7
    %v1607 = vsub.s32 5, %v1606
    %v1608 = vrot.slane %v1397, %v1607
    %v1609 = vlaneseq
    %v1610 = vshrl.u32 %v1609, 7
    %v1611 = vsub.s32 6, %v1610
    %v1612 = vrot.slane %v1397, %v1611
    %v1613 = vlaneseq
    %v1614 = vshrl.u32 %v1613, 7
    %v1615 = vsub.s32 7, %v1614
    %v1616 = vrot.slane %v1397, %v1615
    %v1617 = vlaneseq
    %v1618 = vshrl.u32 %v1617, 7
    %v1619 = vsub.s32 0, %v1618
    %v1620 = vrot.slane %v1398, %v1619
    %v1621 = vlaneseq
    %v1622 = vshrl.u32 %v1621, 7
    %v1623 = vsub.s32 1, %v1622
    %v1624 = vrot.slane %v1398, %v1623
    %v1625 = vlaneseq
    %v1626 = vshrl.u32 %v1625, 7
    %v1627 = vsub.s32 2, %v1626
    %v1628 = vrot.slane %v1398, %v1627
    %v1629 = vlaneseq
    %v1630 = vshrl.u32 %v1629, 7
    %v1631 = vsub.s32 3, %v1630
    %v1632 = vrot.slane %v1398, %v1631
    %v1633 = vlaneseq
    %v1634 = vshrl.u32 %v1633, 7
    %v1635 = vsub.s32 4, %v1634
    %v1636 = vrot.slane %v1398, %v1635
    %v1637 = vlaneseq
    %v1638 = vshrl.u32 %v1637, 7
    %v1639 = vsub.s32 5, %v1638
    %v1640 = vrot.slane %v1398, %v1639
    %v1641 = vlaneseq
    %v1642 = vshrl.u32 %v1641, 7
    %v1643 = vsub.s32 6, %v1642
    %v1644 = vrot.slane %v1398, %v1643
    %v1645 = vlaneseq
    %v1646 = vshrl.u32 %v1645, 7
    %v1647 = vsub.s32 7, %v1646
    %v1648 = vrot.slane %v1398, %v1647
    %v1649 = vlaneseq
    %v1650 = vshrl.u32 %v1649, 7
    %v1651 = vsub.s32 0, %v1650
    %v1652 = vrot.slane %v1399, %v1651
    %v1653 = vlaneseq
    %v1654 = vshrl.u32 %v1653, 7
    %v1655 = vsub.s32 1, %v1654
    %v1656 = vrot.slane %v1399, %v1655
    %v1657 = vlaneseq
    %v1658 = vshrl.u32 %v1657, 7
    %v1659 = vsub.s32 2, %v1658
    %v1660 = vrot.slane %v1399, %v1659
    %v1661 = vlaneseq
    %v1662 = vshrl.u32 %v1661, 7
    %v1663 = vsub.s32 3, %v1662
    %v1664 = vrot.slane %v1399, %v1663
    %v1665 = vlaneseq
    %v1666 = vshrl.u32 %v1665, 7
    %v1667 = vsub.s32 4, %v1666
    %v1668 = vrot.slane %v1399, %v1667
    %v1669 = vlaneseq
    %v1670 = vshrl.u32 %v1669, 7
    %v1671 = vsub.s32 5, %v1670
    %v1672 = vrot.slane %v1399, %v1671
    %v1673 = vlaneseq
    %v1674 = vshrl.u32 %v1673, 7
    %v1675 = vsub.s32 6, %v1674
    %v1676 = vrot.slane %v1399, %v1675
    %v1677 = vlaneseq
    %v1678 = vshrl.u32 %v1677, 7
    %v1679 = vsub.s32 7, %v1678
    %v1680 = vrot.slane %v1399, %v1679
    %v1681 = vlaneseq
    %v1682 = vshrl.u32 %v1681, 7
    %v1683 = vsub.s32 0, %v1682
    %v1684 = vrot.slane %v1400, %v1683
    %v1685 = vlaneseq
    %v1686 = vshrl.u32 %v1685, 7
    %v1687 = vsub.s32 1, %v1686
    %v1688 = vrot.slane %v1400, %v1687
    %v1689 = vlaneseq
    %v1690 = vshrl.u32 %v1689, 7
    %v1691 = vsub.s32 2, %v1690
    %v1692 = vrot.slane %v1400, %v1691
    %v1693 = vlaneseq
    %v1694 = vshrl.u32 %v1693, 7
    %v1695 = vsub.s32 3, %v1694
    %v1696 = vrot.slane %v1400, %v1695
    %v1697 = vlaneseq
    %v1698 = vshrl.u32 %v1697, 7
    %v1699 = vsub.s32 4, %v1698
    %v1700 = vrot.slane %v1400, %v1699
    %v1701 = vlaneseq
    %v1702 = vshrl.u32 %v1701, 7
    %v1703 = vsub.s32 5, %v1702
    %v1704 = vrot.slane %v1400, %v1703
    %v1705 = vlaneseq
    %v1706 = vshrl.u32 %v1705, 7
    %v1707 = vsub.s32 6, %v1706
    %v1708 = vrot.slane %v1400, %v1707
    %v1709 = vlaneseq
    %v1710 = vshrl.u32 %v1709, 7
    %v1711 = vsub.s32 7, %v1710
    %v1712 = vrot.slane %v1400, %v1711
    %v1713 = vlaneseq
    %v1714 = vshrl.u32 %v1713, 7
    %v1715 = vsub.s32 0, %v1714
    %v1716 = vrot.slane %v1401, %v1715
    %v1717 = vlaneseq
    %v1718 = vshrl.u32 %v1717, 7
    %v1719 = vsub.s32 1, %v1718
    %v1720 = vrot.slane %v1401, %v1719
    %v1721 = vlaneseq
    %v1722 = vshrl.u32 %v1721, 7
    %v1723 = vsub.s32 2, %v1722
    %v1724 = vrot.slane %v1401, %v1723
    %v1725 = vlaneseq
    %v1726 = vshrl.u32 %v1725, 7
    %v1727 = vsub.s32 3, %v1726
    %v1728 = vrot.slane %v1401, %v1727
    %v1729 = vlaneseq
    %v1730 = vshrl.u32 %v1729, 7
    %v1731 = vsub.s32 4, %v1730
    %v1732 = vrot.slane %v1401, %v1731
    %v1733 = vlaneseq
    %v1734 = vshrl.u32 %v1733, 7
    %v1735 = vsub.s32 5, %v1734
    %v1736 = vrot.slane %v1401, %v1735
    %v1737 = vlaneseq
    %v1738 = vshrl.u32 %v1737, 7
    %v1739 = vsub.s32 6, %v1738
    %v1740 = vrot.slane %v1401, %v1739
    %v1741 = vlaneseq
    %v1742 = vshrl.u32 %v1741, 7
    %v1743 = vsub.s32 7, %v1742
    %v1744 = vrot.slane %v1401, %v1743
    %v1745 = vlaneseq
    %v1746 = vshrl.u32 %v1745, 7
    %v1747 = vsub.s32 0, %v1746
    %v1748 = vrot.slane %v1402, %v1747
    %v1749 = vlaneseq
    %v1750 = vshrl.u32 %v1749, 7
    %v1751 = vsub.s32 1, %v1750
    %v1752 = vrot.slane %v1402, %v1751
    %v1753 = vlaneseq
    %v1754 = vshrl.u32 %v1753, 7
    %v1755 = vsub.s32 2, %v1754
    %v1756 = vrot.slane %v1402, %v1755
    %v1757 = vlaneseq
    %v1758 = vshrl.u32 %v1757, 7
    %v1759 = vsub.s32 3, %v1758
    %v1760 = vrot.slane %v1402, %v1759
    %v1761 = vlaneseq
    %v1762 = vshrl.u32 %v1761, 7
    %v1763 = vsub.s32 4, %v1762
    %v1764 = vrot.slane %v1402, %v1763
    %v1765 = vlaneseq
    %v1766 = vshrl.u32 %v1765, 7
    %v1767 = vsub.s32 5, %v1766
    %v1768 = vrot.slane %v1402, %v1767
    %v1769 = vlaneseq
    %v1770 = vshrl.u32 %v1769, 7
    %v1771 = vsub.s32 6, %v1770
    %v1772 = vrot.slane %v1402, %v1771
    %v1773 = vlaneseq
    %v1774 = vshrl.u32 %v1773, 7
    %v1775 = vsub.s32 7, %v1774
    %v1776 = vrot.slane %v1402, %v1775
    %v1777 = vlaneseq
    %v1778 = vshrl.u32 %v1777, 7
    %v1779 = vsub.s32 0, %v1778
    %v1780 = vrot.slane %v1403, %v1779
    %v1781 = vlaneseq
    %v1782 = vshrl.u32 %v1781, 7
    %v1783 = vsub.s32 1, %v1782
    %v1784 = vrot.slane %v1403, %v1783
    %v1785 = vlaneseq
    %v1786 = vshrl.u32 %v1785, 7
    %v1787 = vsub.s32 2, %v1786
    %v1788 = vrot.slane %v1403, %v1787
    %v1789 = vlaneseq
    %v1790 = vshrl.u32 %v1789, 7
    %v1791 = vsub.s32 3, %v1790
    %v1792 = vrot.slane %v1403, %v1791
    %v1793 = vlaneseq
    %v1794 = vshrl.u32 %v1793, 7
    %v1795 = vsub.s32 4, %v1794
    %v1796 = vrot.slane %v1403, %v1795
    %v1797 = vlaneseq
    %v1798 = vshrl.u32 %v1797, 7
    %v1799 = vsub.s32 5, %v1798
    %v1800 = vrot.slane %v1403, %v1799
    %v1801 = vlaneseq
    %v1802 = vshrl.u32 %v1801, 7
    %v1803 = vsub.s32 6, %v1802
    %v1804 = vrot.slane %v1403, %v1803
    %v1805 = vlaneseq
    %v1806 = vshrl.u32 %v1805, 7
    %v1807 = vsub.s32 7, %v1806
    %v1808 = vrot.slane %v1403, %v1807
    %v1809 = vlaneseq
    %v1810 = vshrl.u32 %v1809, 7
    %v1811 = vsub.s32 0, %v1810
    %v1812 = vrot.slane %v1404, %v1811
    %v1813 = vlaneseq
    %v1814 = vshrl.u32 %v1813, 7
    %v1815 = vsub.s32 1, %v1814
    %v1816 = vrot.slane %v1404, %v1815
    %v1817 = vlaneseq
    %v1818 = vshrl.u32 %v1817, 7
    %v1819 = vsub.s32 2, %v1818
    %v1820 = vrot.slane %v1404, %v1819
    %v1821 = vlaneseq
    %v1822 = vshrl.u32 %v1821, 7
    %v1823 = vsub.s32 3, %v1822
    %v1824 = vrot.slane %v1404, %v1823
    %v1825 = vlaneseq
    %v1826 = vshrl.u32 %v1825, 7
    %v1827 = vsub.s32 4, %v1826
    %v1828 = vrot.slane %v1404, %v1827
    %v1829 = vlaneseq
    %v1830 = vshrl.u32 %v1829, 7
    %v1831 = vsub.s32 5, %v1830
    %v1832 = vrot.slane %v1404, %v1831
    %v1833 = vlaneseq
    %v1834 = vshrl.u32 %v1833, 7
    %v1835 = vsub.s32 6, %v1834
    %v1836 = vrot.slane %v1404, %v1835
    %v1837 = vlaneseq
    %v1838 = vshrl.u32 %v1837, 7
    %v1839 = vsub.s32 7, %v1838
    %v1840 = vrot.slane %v1404, %v1839
    %v1841 = vlaneseq
    %v1842 = vshrl.u32 %v1841, 7
    %v1843 = vsub.s32 0, %v1842
    %v1844 = vrot.slane %v1405, %v1843
    %v1845 = vlaneseq
    %v1846 = vshrl.u32 %v1845, 7
    %v1847 = vsub.s32 1, %v1846
    %v1848 = vrot.slane %v1405, %v1847
    %v1849 = vlaneseq
    %v1850 = vshrl.u32 %v1849, 7
    %v1851 = vsub.s32 2, %v1850
    %v1852 = vrot.slane %v1405, %v1851
    %v1853 = vlaneseq
    %v1854 = vshrl.u32 %v1853, 7
    %v1855 = vsub.s32 3, %v1854
    %v1856 = vrot.slane %v1405, %v1855
    %v1857 = vlaneseq
    %v1858 = vshrl.u32 %v1857, 7
    %v1859 = vsub.s32 4, %v1858
    %v1860 = vrot.slane %v1405, %v1859
    %v1861 = vlaneseq
    %v1862 = vshrl.u32 %v1861, 7
    %v1863 = vsub.s32 5, %v1862
    %v1864 = vrot.slane %v1405, %v1863
    %v1865 = vlaneseq
    %v1866 = vshrl.u32 %v1865, 7
    %v1867 = vsub.s32 6, %v1866
    %v1868 = vrot.slane %v1405, %v1867
    %v1869 = vlaneseq
    %v1870 = vshrl.u32 %v1869, 7
    %v1871 = vsub.s32 7, %v1870
    %v1872 = vrot.slane %v1405, %v1871
    %v1873 = vlaneseq
    %v1874 = vshrl.u32 %v1873, 7
    %v1875 = vsub.s32 0, %v1874
    %v1876 = vrot.slane %v1406, %v1875
    %v1877 = vlaneseq
    %v1878 = vshrl.u32 %v1877, 7
    %v1879 = vsub.s32 1, %v1878
    %v1880 = vrot.slane %v1406, %v1879
    %v1881 = vlaneseq
    %v1882 = vshrl.u32 %v1881, 7
    %v1883 = vsub.s32 2, %v1882
    %v1884 = vrot.slane %v1406, %v1883
    %v1885 = vlaneseq
    %v1886 = vshrl.u32 %v1885, 7
    %v1887 = vsub.s32 3, %v1886
    %v1888 = vrot.slane %v1406, %v1887
    %v1889 = vlaneseq
    %v1890 = vshrl.u32 %v1889, 7
    %v1891 = vsub.s32 4, %v1890
    %v1892 = vrot.slane %v1406, %v1891
    %v1893 = vlaneseq
    %v1894 = vshrl.u32 %v1893, 7
    %v1895 = vsub.s32 5, %v1894
    %v1896 = vrot.slane %v1406, %v1895
    %v1897 = vlaneseq
    %v1898 = vshrl.u32 %v1897, 7
    %v1899 = vsub.s32 6, %v1898
    %v1900 = vrot.slane %v1406, %v1899
    %v1901 = vlaneseq
    %v1902 = vshrl.u32 %v1901, 7
    %v1903 = vsub.s32 7, %v1902
    %v1904 = vrot.slane %v1406, %v1903
    %v1905 = vlaneseq
    %v1906 = vshrl.u32 %v1905, 7
    %v1907 = vsub.s32 0, %v1906
    %v1908 = vrot.slane %v1407, %v1907
    %v1909 = vlaneseq
    %v1910 = vshrl.u32 %v1909, 7
    %v1911 = vsub.s32 1, %v1910
    %v1912 = vrot.slane %v1407, %v1911
    %v1913 = vlaneseq
    %v1914 = vshrl.u32 %v1913, 7
    %v1915 = vsub.s32 2, %v1914
    %v1916 = vrot.slane %v1407, %v1915
    %v1917 = vlaneseq
    %v1918 = vshrl.u32 %v1917, 7
    %v1919 = vsub.s32 3, %v1918
    %v1920 = vrot.slane %v1407, %v1919
    %v1921 = vlaneseq
    %v1922 = vshrl.u32 %v1921, 7
    %v1923 = vsub.s32 4, %v1922
    %v1924 = vrot.slane %v1407, %v1923
    %v1925 = vlaneseq
    %v1926 = vshrl.u32 %v1925, 7
    %v1927 = vsub.s32 5, %v1926
    %v1928 = vrot.slane %v1407, %v1927
    %v1929 = vlaneseq
    %v1930 = vshrl.u32 %v1929, 7
    %v1931 = vsub.s32 6, %v1930
    %v1932 = vrot.slane %v1407, %v1931
    %v1933 = vlaneseq
    %v1934 = vshrl.u32 %v1933, 7
    %v1935 = vsub.s32 7, %v1934
    %v1936 = vrot.slane %v1407, %v1935
    %v1937 = vlaneseq
    %v1938 = vshrl.u32 %v1937, 7
    %v1939 = vsub.s32 0, %v1938
    %v1940 = vrot.slane %v1408, %v1939
    %v1941 = vlaneseq
    %v1942 = vshrl.u32 %v1941, 7
    %v1943 = vsub.s32 1, %v1942
    %v1944 = vrot.slane %v1408, %v1943
    %v1945 = vlaneseq
    %v1946 = vshrl.u32 %v1945, 7
    %v1947 = vsub.s32 2, %v1946
    %v1948 = vrot.slane %v1408, %v1947
    %v1949 = vlaneseq
    %v1950 = vshrl.u32 %v1949, 7
    %v1951 = vsub.s32 3, %v1950
    %v1952 = vrot.slane %v1408, %v1951
    %v1953 = vlaneseq
    %v1954 = vshrl.u32 %v1953, 7
    %v1955 = vsub.s32 4, %v1954
    %v1956 = vrot.slane %v1408, %v1955
    %v1957 = vlaneseq
    %v1958 = vshrl.u32 %v1957, 7
    %v1959 = vsub.s32 5, %v1958
    %v1960 = vrot.slane %v1408, %v1959
    %v1961 = vlaneseq
    %v1962 = vshrl.u32 %v1961, 7
    %v1963 = vsub.s32 6, %v1962
    %v1964 = vrot.slane %v1408, %v1963
    %v1965 = vlaneseq
    %v1966 = vshrl.u32 %v1965, 7
    %v1967 = vsub.s32 7, %v1966
    %v1968 = vrot.slane %v1408, %v1967
    %v1969 = vlaneseq
    %v1970 = vshrl.u32 %v1969, 7
    %v1971 = vsub.s32 0, %v1970
    %v1972 = vrot.slane %v1409, %v1971
    %v1973 = vlaneseq
    %v1974 = vshrl.u32 %v1973, 7
    %v1975 = vsub.s32 1, %v1974
    %v1976 = vrot.slane %v1409, %v1975
    %v1977 = vlaneseq
    %v1978 = vshrl.u32 %v1977, 7
    %v1979 = vsub.s32 2, %v1978
    %v1980 = vrot.slane %v1409, %v1979
    %v1981 = vlaneseq
    %v1982 = vshrl.u32 %v1981, 7
    %v1983 = vsub.s32 3, %v1982
    %v1984 = vrot.slane %v1409, %v1983
    %v1985 = vlaneseq
    %v1986 = vshrl.u32 %v1985, 7
    %v1987 = vsub.s32 4, %v1986
    %v1988 = vrot.slane %v1409, %v1987
    %v1989 = vlaneseq
    %v1990 = vshrl.u32 %v1989, 7
    %v1991 = vsub.s32 5, %v1990
    %v1992 = vrot.slane %v1409, %v1991
    %v1993 = vlaneseq
    %v1994 = vshrl.u32 %v1993, 7
    %v1995 = vsub.s32 6, %v1994
    %v1996 = vrot.slane %v1409, %v1995
    %v1997 = vlaneseq
    %v1998 = vshrl.u32 %v1997, 7
    %v1999 = vsub.s32 7, %v1998
    %v2000 = vrot.slane %v1409, %v1999
    %v2001 = vlaneseq
    %v2002 = vshrl.u32 %v2001, 7
    %v2003 = vsub.s32 0, %v2002
    %v2004 = vrot.slane %v1410, %v2003
    %v2005 = vlaneseq
    %v2006 = vshrl.u32 %v2005, 7
    %v2007 = vsub.s32 1, %v2006
    %v2008 = vrot.slane %v1410, %v2007
    %v2009 = vlaneseq
    %v2010 = vshrl.u32 %v2009, 7
    %v2011 = vsub.s32 2, %v2010
    %v2012 = vrot.slane %v1410, %v2011
    %v2013 = vlaneseq
    %v2014 = vshrl.u32 %v2013, 7
    %v2015 = vsub.s32 3, %v2014
    %v2016 = vrot.slane %v1410, %v2015
    %v2017 = vlaneseq
    %v2018 = vshrl.u32 %v2017, 7
    %v2019 = vsub.s32 4, %v2018
    %v2020 = vrot.slane %v1410, %v2019
    %v2021 = vlaneseq
    %v2022 = vshrl.u32 %v2021, 7
    %v2023 = vsub.s32 5, %v2022
    %v2024 = vrot.slane %v1410, %v2023
    %v2025 = vlaneseq
    %v2026 = vshrl.u32 %v2025, 7
    %v2027 = vsub.s32 6, %v2026
    %v2028 = vrot.slane %v1410, %v2027
    %v2029 = vlaneseq
    %v2030 = vshrl.u32 %v2029, 7
    %v2031 = vsub.s32 7, %v2030
    %v2032 = vrot.slane %v1410, %v2031
    %v2033 = vlaneseq
    %v2034 = vshrl.u32 %v2033, 7
    %v2035 = vsub.s32 0, %v2034
    %v2036 = vrot.slane %v1411, %v2035
    %v2037 = vlaneseq
    %v2038 = vshrl.u32 %v2037, 7
    %v2039 = vsub.s32 1, %v2038
    %v2040 = vrot.slane %v1411, %v2039
    %v2041 = vlaneseq
    %v2042 = vshrl.u32 %v2041, 7
    %v2043 = vsub.s32 2, %v2042
    %v2044 = vrot.slane %v1411, %v2043
    %v2045 = vlaneseq
    %v2046 = vshrl.u32 %v2045, 7
    %v2047 = vsub.s32 3, %v2046
    %v2048 = vrot.slane %v1411, %v2047
    %v2049 = vlaneseq
    %v2050 = vshrl.u32 %v2049, 7
    %v2051 = vsub.s32 4, %v2050
    %v2052 = vrot.slane %v1411, %v2051
    %v2053 = vlaneseq
    %v2054 = vshrl.u32 %v2053, 7
    %v2055 = vsub.s32 5, %v2054
    %v2056 = vrot.slane %v1411, %v2055
    %v2057 = vlaneseq
    %v2058 = vshrl.u32 %v2057, 7
    %v2059 = vsub.s32 6, %v2058
    %v2060 = vrot.slane %v1411, %v2059
    %v2061 = vlaneseq
    %v2062 = vshrl.u32 %v2061, 7
    %v2063 = vsub.s32 7, %v2062
    %v2064 = vrot.slane %v1411, %v2063
    %v2065 = vlaneseq
    %v2066 = vshrl.u32 %v2065, 7
    %v2067 = vsub.s32 0, %v2066
    %v2068 = vrot.slane %v1412, %v2067
    %v2069 = vlaneseq
    %v2070 = vshrl.u32 %v2069, 7
    %v2071 = vsub.s32 1, %v2070
    %v2072 = vrot.slane %v1412, %v2071
    %v2073 = vlaneseq
    %v2074 = vshrl.u32 %v2073, 7
    %v2075 = vsub.s32 2, %v2074
    %v2076 = vrot.slane %v1412, %v2075
    %v2077 = vlaneseq
    %v2078 = vshrl.u32 %v2077, 7
    %v2079 = vsub.s32 3, %v2078
    %v2080 = vrot.slane %v1412, %v2079
    %v2081 = vlaneseq
    %v2082 = vshrl.u32 %v2081, 7
    %v2083 = vsub.s32 4, %v2082
    %v2084 = vrot.slane %v1412, %v2083
    %v2085 = vlaneseq
    %v2086 = vshrl.u32 %v2085, 7
    %v2087 = vsub.s32 5, %v2086
    %v2088 = vrot.slane %v1412, %v2087
    %v2089 = vlaneseq
    %v2090 = vshrl.u32 %v2089, 7
    %v2091 = vsub.s32 6, %v2090
    %v2092 = vrot.slane %v1412, %v2091
    %v2093 = vlaneseq
    %v2094 = vshrl.u32 %v2093, 7
    %v2095 = vsub.s32 7, %v2094
    %v2096 = vrot.slane %v1412, %v2095
    %v2097 = vlaneseq
    %v2098 = vshrl.u32 %v2097, 7
    %v2099 = vsub.s32 0, %v2098
    %v2100 = vrot.slane %v1413, %v2099
    %v2101 = vlaneseq
    %v2102 = vshrl.u32 %v2101, 7
    %v2103 = vsub.s32 1, %v2102
    %v2104 = vrot.slane %v1413, %v2103
    %v2105 = vlaneseq
    %v2106 = vshrl.u32 %v2105, 7
    %v2107 = vsub.s32 2, %v2106
    %v2108 = vrot.slane %v1413, %v2107
    %v2109 = vlaneseq
    %v2110 = vshrl.u32 %v2109, 7
    %v2111 = vsub.s32 3, %v2110
    %v2112 = vrot.slane %v1413, %v2111
    %v2113 = vlaneseq
    %v2114 = vshrl.u32 %v2113, 7
    %v2115 = vsub.s32 4, %v2114
    %v2116 = vrot.slane %v1413, %v2115
    %v2117 = vlaneseq
    %v2118 = vshrl.u32 %v2117, 7
    %v2119 = vsub.s32 5, %v2118
    %v2120 = vrot.slane %v1413, %v2119
    %v2121 = vlaneseq
    %v2122 = vshrl.u32 %v2121, 7
    %v2123 = vsub.s32 6, %v2122
    %v2124 = vrot.slane %v1413, %v2123
    %v2125 = vlaneseq
    %v2126 = vshrl.u32 %v2125, 7
    %v2127 = vsub.s32 7, %v2126
    %v2128 = vrot.slane %v1413, %v2127
    %v2129 = vlaneseq
    %v2130 = vshrl.u32 %v2129, 7
    %v2131 = vsub.s32 0, %v2130
    %v2132 = vrot.slane %v1414, %v2131
    %v2133 = vlaneseq
    %v2134 = vshrl.u32 %v2133, 7
    %v2135 = vsub.s32 1, %v2134
    %v2136 = vrot.slane %v1414, %v2135
    %v2137 = vlaneseq
    %v2138 = vshrl.u32 %v2137, 7
    %v2139 = vsub.s32 2, %v2138
    %v2140 = vrot.slane %v1414, %v2139
    %v2141 = vlaneseq
    %v2142 = vshrl.u32 %v2141, 7
    %v2143 = vsub.s32 3, %v2142
    %v2144 = vrot.slane %v1414, %v2143
    %v2145 = vlaneseq
    %v2146 = vshrl.u32 %v2145, 7
    %v2147 = vsub.s32 4, %v2146
    %v2148 = vrot.slane %v1414, %v2147
    %v2149 = vlaneseq
    %v2150 = vshrl.u32 %v2149, 7
    %v2151 = vsub.s32 5, %v2150
    %v2152 = vrot.slane %v1414, %v2151
    %v2153 = vlaneseq
    %v2154 = vshrl.u32 %v2153, 7
    %v2155 = vsub.s32 6, %v2154
    %v2156 = vrot.slane %v1414, %v2155
    %v2157 = vlaneseq
    %v2158 = vshrl.u32 %v2157, 7
    %v2159 = vsub.s32 7, %v2158
    %v2160 = vrot.slane %v1414, %v2159
    %v2161 = vlaneseq
    %v2162 = vshrl.u32 %v2161, 7
    %v2163 = vsub.s32 0, %v2162
    %v2164 = vrot.slane %v1415, %v2163
    %v2165 = vlaneseq
    %v2166 = vshrl.u32 %v2165, 7
    %v2167 = vsub.s32 1, %v2166
    %v2168 = vrot.slane %v1415, %v2167
    %v2169 = vlaneseq
    %v2170 = vshrl.u32 %v2169, 7
    %v2171 = vsub.s32 2, %v2170
    %v2172 = vrot.slane %v1415, %v2171
    %v2173 = vlaneseq
    %v2174 = vshrl.u32 %v2173, 7
    %v2175 = vsub.s32 3, %v2174
    %v2176 = vrot.slane %v1415, %v2175
    %v2177 = vlaneseq
    %v2178 = vshrl.u32 %v2177, 7
    %v2179 = vsub.s32 4, %v2178
    %v2180 = vrot.slane %v1415, %v2179
    %v2181 = vlaneseq
    %v2182 = vshrl.u32 %v2181, 7
    %v2183 = vsub.s32 5, %v2182
    %v2184 = vrot.slane %v1415, %v2183
    %v2185 = vlaneseq
    %v2186 = vshrl.u32 %v2185, 7
    %v2187 = vsub.s32 6, %v2186
    %v2188 = vrot.slane %v1415, %v2187
    %v2189 = vlaneseq
    %v2190 = vshrl.u32 %v2189, 7
    %v2191 = vsub.s32 7, %v2190
    %v2192 = vrot.slane %v1415, %v2191
    %v2193 = vlaneseq
    %v2194 = vshrl.u32 %v2193, 7
    %v2195 = vsub.s32 0, %v2194
    %v2196 = vrot.slane %v1416, %v2195
    %v2197 = vlaneseq
    %v2198 = vshrl.u32 %v2197, 7
    %v2199 = vsub.s32 1, %v2198
    %v2200 = vrot.slane %v1416, %v2199
    %v2201 = vlaneseq
    %v2202 = vshrl.u32 %v2201, 7
    %v2203 = vsub.s32 2, %v2202
    %v2204 = vrot.slane %v1416, %v2203
    %v2205 = vlaneseq
    %v2206 = vshrl.u32 %v2205, 7
    %v2207 = vsub.s32 3, %v2206
    %v2208 = vrot.slane %v1416, %v2207
    %v2209 = vlaneseq
    %v2210 = vshrl.u32 %v2209, 7
    %v2211 = vsub.s32 4, %v2210
    %v2212 = vrot.slane %v1416, %v2211
    %v2213 = vlaneseq
    %v2214 = vshrl.u32 %v2213, 7
    %v2215 = vsub.s32 5, %v2214
    %v2216 = vrot.slane %v1416, %v2215
    %v2217 = vlaneseq
    %v2218 = vshrl.u32 %v2217, 7
    %v2219 = vsub.s32 6, %v2218
    %v2220 = vrot.slane %v1416, %v2219
    %v2221 = vlaneseq
    %v2222 = vshrl.u32 %v2221, 7
    %v2223 = vsub.s32 7, %v2222
    %v2224 = vrot.slane %v1416, %v2223
    %v2225 = vlaneseq
    %v2226 = vshrl.u32 %v2225, 7
    %v2227 = vsub.s32 0, %v2226
    %v2228 = vrot.slane %v1417, %v2227
    %v2229 = vlaneseq
    %v2230 = vshrl.u32 %v2229, 7
    %v2231 = vsub.s32 1, %v2230
    %v2232 = vrot.slane %v1417, %v2231
    %v2233 = vlaneseq
    %v2234 = vshrl.u32 %v2233, 7
    %v2235 = vsub.s32 2, %v2234
    %v2236 = vrot.slane %v1417, %v2235
    %v2237 = vlaneseq
    %v2238 = vshrl.u32 %v2237, 7
    %v2239 = vsub.s32 3, %v2238
    %v2240 = vrot.slane %v1417, %v2239
    %v2241 = vlaneseq
    %v2242 = vshrl.u32 %v2241, 7
    %v2243 = vsub.s32 4, %v2242
    %v2244 = vrot.slane %v1417, %v2243
    %v2245 = vlaneseq
    %v2246 = vshrl.u32 %v2245, 7
    %v2247 = vsub.s32 5, %v2246
    %v2248 = vrot.slane %v1417, %v2247
    %v2249 = vlaneseq
    %v2250 = vshrl.u32 %v2249, 7
    %v2251 = vsub.s32 6, %v2250
    %v2252 = vrot.slane %v1417, %v2251
    %v2253 = vlaneseq
    %v2254 = vshrl.u32 %v2253, 7
    %v2255 = vsub.s32 7, %v2254
    %v2256 = vrot.slane %v1417, %v2255
    %v2257 = vlaneseq
    %v2258 = vshrl.u32 %v2257, 7
    %v2259 = vsub.s32 0, %v2258
    %v2260 = vrot.slane %v1418, %v2259
    %v2261 = vlaneseq
    %v2262 = vshrl.u32 %v2261, 7
    %v2263 = vsub.s32 1, %v2262
    %v2264 = vrot.slane %v1418, %v2263
    %v2265 = vlaneseq
    %v2266 = vshrl.u32 %v2265, 7
    %v2267 = vsub.s32 2, %v2266
    %v2268 = vrot.slane %v1418, %v2267
    %v2269 = vlaneseq
    %v2270 = vshrl.u32 %v2269, 7
    %v2271 = vsub.s32 3, %v2270
    %v2272 = vrot.slane %v1418, %v2271
    %v2273 = vlaneseq
    %v2274 = vshrl.u32 %v2273, 7
    %v2275 = vsub.s32 4, %v2274
    %v2276 = vrot.slane %v1418, %v2275
    %v2277 = vlaneseq
    %v2278 = vshrl.u32 %v2277, 7
    %v2279 = vsub.s32 5, %v2278
    %v2280 = vrot.slane %v1418, %v2279
    %v2281 = vlaneseq
    %v2282 = vshrl.u32 %v2281, 7
    %v2283 = vsub.s32 6, %v2282
    %v2284 = vrot.slane %v1418, %v2283
    %v2285 = vlaneseq
    %v2286 = vshrl.u32 %v2285, 7
    %v2287 = vsub.s32 7, %v2286
    %v2288 = vrot.slane %v1418, %v2287
    %v2289 = vlaneseq
    %v2290 = vshrl.u32 %v2289, 7
    %v2291 = vsub.s32 0, %v2290
    %v2292 = vrot.slane %v1419, %v2291
    %v2293 = vlaneseq
    %v2294 = vshrl.u32 %v2293, 7
    %v2295 = vsub.s32 1, %v2294
    %v2296 = vrot.slane %v1419, %v2295
    %v2297 = vlaneseq
    %v2298 = vshrl.u32 %v2297, 7
    %v2299 = vsub.s32 2, %v2298
    %v2300 = vrot.slane %v1419, %v2299
    %v2301 = vlaneseq
    %v2302 = vshrl.u32 %v2301, 7
    %v2303 = vsub.s32 3, %v2302
    %v2304 = vrot.slane %v1419, %v2303
    %v2305 = vlaneseq
    %v2306 = vshrl.u32 %v2305, 7
    %v2307 = vsub.s32 4, %v2306
    %v2308 = vrot.slane %v1419, %v2307
    %v2309 = vlaneseq
    %v2310 = vshrl.u32 %v2309, 7
    %v2311 = vsub.s32 5, %v2310
    %v2312 = vrot.slane %v1419, %v2311
    %v2313 = vlaneseq
    %v2314 = vshrl.u32 %v2313, 7
    %v2315 = vsub.s32 6, %v2314
    %v2316 = vrot.slane %v1419, %v2315
    %v2317 = vlaneseq
    %v2318 = vshrl.u32 %v2317, 7
    %v2319 = vsub.s32 7, %v2318
    %v2320 = vrot.slane %v1419, %v2319
    %v2321 = vlaneseq
    %v2322 = vshrl.u32 %v2321, 7
    %v2323 = vsub.s32 0, %v2322
    %v2324 = vrot.slane %v1420, %v2323
    %v2325 = vlaneseq
    %v2326 = vshrl.u32 %v2325, 7
    %v2327 = vsub.s32 1, %v2326
    %v2328 = vrot.slane %v1420, %v2327
    %v2329 = vlaneseq
    %v2330 = vshrl.u32 %v2329, 7
    %v2331 = vsub.s32 2, %v2330
    %v2332 = vrot.slane %v1420, %v2331
    %v2333 = vlaneseq
    %v2334 = vshrl.u32 %v2333, 7
    %v2335 = vsub.s32 3, %v2334
    %v2336 = vrot.slane %v1420, %v2335
    %v2337 = vlaneseq
    %v2338 = vshrl.u32 %v2337, 7
    %v2339 = vsub.s32 4, %v2338
    %v2340 = vrot.slane %v1420, %v2339
    %v2341 = vlaneseq
    %v2342 = vshrl.u32 %v2341, 7
    %v2343 = vsub.s32 5, %v2342
    %v2344 = vrot.slane %v1420, %v2343
    %v2345 = vlaneseq
    %v2346 = vshrl.u32 %v2345, 7
    %v2347 = vsub.s32 6, %v2346
    %v2348 = vrot.slane %v1420, %v2347
    %v2349 = vlaneseq
    %v2350 = vshrl.u32 %v2349, 7
    %v2351 = vsub.s32 7, %v2350
    %v2352 = vrot.slane %v1420, %v2351
    %v2353 = vlaneseq
    %v2354 = vshrl.u32 %v2353, 7
    %v2355 = vsub.s32 0, %v2354
    %v2356 = vrot.slane %v1421, %v2355
    %v2357 = vlaneseq
    %v2358 = vshrl.u32 %v2357, 7
    %v2359 = vsub.s32 1, %v2358
    %v2360 = vrot.slane %v1421, %v2359
    %v2361 = vlaneseq
    %v2362 = vshrl.u32 %v2361, 7
    %v2363 = vsub.s32 2, %v2362
    %v2364 = vrot.slane %v1421, %v2363
    %v2365 = vlaneseq
    %v2366 = vshrl.u32 %v2365, 7
    %v2367 = vsub.s32 3, %v2366
    %v2368 = vrot.slane %v1421, %v2367
    %v2369 = vlaneseq
    %v2370 = vshrl.u32 %v2369, 7
    %v2371 = vsub.s32 4, %v2370
    %v2372 = vrot.slane %v1421, %v2371
    %v2373 = vlaneseq
    %v2374 = vshrl.u32 %v2373, 7
    %v2375 = vsub.s32 5, %v2374
    %v2376 = vrot.slane %v1421, %v2375
    %v2377 = vlaneseq
    %v2378 = vshrl.u32 %v2377, 7
    %v2379 = vsub.s32 6, %v2378
    %v2380 = vrot.slane %v1421, %v2379
    %v2381 = vlaneseq
    %v2382 = vshrl.u32 %v2381, 7
    %v2383 = vsub.s32 7, %v2382
    %v2384 = vrot.slane %v1421, %v2383
    %v2385 = vlaneseq
    %v2386 = vshrl.u32 %v2385, 7
    %v2387 = vsub.s32 0, %v2386
    %v2388 = vrot.slane %v1422, %v2387
    %v2389 = vlaneseq
    %v2390 = vshrl.u32 %v2389, 7
    %v2391 = vsub.s32 1, %v2390
    %v2392 = vrot.slane %v1422, %v2391
    %v2393 = vlaneseq
    %v2394 = vshrl.u32 %v2393, 7
    %v2395 = vsub.s32 2, %v2394
    %v2396 = vrot.slane %v1422, %v2395
    %v2397 = vlaneseq
    %v2398 = vshrl.u32 %v2397, 7
    %v2399 = vsub.s32 3, %v2398
    %v2400 = vrot.slane %v1422, %v2399
    %v2401 = vlaneseq
    %v2402 = vshrl.u32 %v2401, 7
    %v2403 = vsub.s32 4, %v2402
    %v2404 = vrot.slane %v1422, %v2403
    %v2405 = vlaneseq
    %v2406 = vshrl.u32 %v2405, 7
    %v2407 = vsub.s32 5, %v2406
    %v2408 = vrot.slane %v1422, %v2407
    %v2409 = vlaneseq
    %v2410 = vshrl.u32 %v2409, 7
    %v2411 = vsub.s32 6, %v2410
    %v2412 = vrot.slane %v1422, %v2411
    %v2413 = vlaneseq
    %v2414 = vshrl.u32 %v2413, 7
    %v2415 = vsub.s32 7, %v2414
    %v2416 = vrot.slane %v1422, %v2415
    %v2417 = vlaneseq
    %v2418 = vshrl.u32 %v2417, 7
    %v2419 = vsub.s32 0, %v2418
    %v2420 = vrot.slane %v1423, %v2419
    %v2421 = vlaneseq
    %v2422 = vshrl.u32 %v2421, 7
    %v2423 = vsub.s32 1, %v2422
    %v2424 = vrot.slane %v1423, %v2423
    %v2425 = vlaneseq
    %v2426 = vshrl.u32 %v2425, 7
    %v2427 = vsub.s32 2, %v2426
    %v2428 = vrot.slane %v1423, %v2427
    %v2429 = vlaneseq
    %v2430 = vshrl.u32 %v2429, 7
    %v2431 = vsub.s32 3, %v2430
    %v2432 = vrot.slane %v1423, %v2431
    %v2433 = vlaneseq
    %v2434 = vshrl.u32 %v2433, 7
    %v2435 = vsub.s32 4, %v2434
    %v2436 = vrot.slane %v1423, %v2435
    %v2437 = vlaneseq
    %v2438 = vshrl.u32 %v2437, 7
    %v2439 = vsub.s32 5, %v2438
    %v2440 = vrot.slane %v1423, %v2439
    %v2441 = vlaneseq
    %v2442 = vshrl.u32 %v2441, 7
    %v2443 = vsub.s32 6, %v2442
    %v2444 = vrot.slane %v1423, %v2443
    %v2445 = vlaneseq
    %v2446 = vshrl.u32 %v2445, 7
    %v2447 = vsub.s32 7, %v2446
    %v2448 = vrot.slane %v1423, %v2447
    %v2449 = vlaneseq
    %v2450 = vshrl.u32 %v2449, 7
    %v2451 = vsub.s32 0, %v2450
    %v2452 = vrot.slane %v1424, %v2451
    %v2453 = vlaneseq
    %v2454 = vshrl.u32 %v2453, 7
    %v2455 = vsub.s32 1, %v2454
    %v2456 = vrot.slane %v1424, %v2455
    %v2457 = vlaneseq
    %v2458 = vshrl.u32 %v2457, 7
    %v2459 = vsub.s32 2, %v2458
    %v2460 = vrot.slane %v1424, %v2459
    %v2461 = vlaneseq
    %v2462 = vshrl.u32 %v2461, 7
    %v2463 = vsub.s32 3, %v2462
    %v2464 = vrot.slane %v1424, %v2463
    %v2465 = vlaneseq
    %v2466 = vshrl.u32 %v2465, 7
    %v2467 = vsub.s32 4, %v2466
    %v2468 = vrot.slane %v1424, %v2467
    %v2469 = vlaneseq
    %v2470 = vshrl.u32 %v2469, 7
    %v2471 = vsub.s32 5, %v2470
    %v2472 = vrot.slane %v1424, %v2471
    %v2473 = vlaneseq
    %v2474 = vshrl.u32 %v2473, 7
    %v2475 = vsub.s32 6, %v2474
    %v2476 = vrot.slane %v1424, %v2475
    %v2477 = vlaneseq
    %v2478 = vshrl.u32 %v2477, 7
    %v2479 = vsub.s32 7, %v2478
    %v2480 = vrot.slane %v1424, %v2479
    %v2481 = vcombine.low %v1460, %v1464
    %v2482 = vcombine.low %v1468, %v1472
    %v2483 = vcombine.low %v1476, %v1480
    %v2484 = vcombine.low %v1484, %v1488
    %v2486 = vunpack.c.l.s4 1966171168
    %v2487 = vunpack.c.0.s8 %v2486
    %v2488 = vlaneseq
    %v2489 = vshrl.u32 %v2488, 7
    %v2490 = vsub.s32 %v2487, %v2489
    %v2491 = vrot.slane %v2481, %v2490
    %v2493 = vunpack.c.l.s4 1966171168
    %v2494 = vunpack.c.0.s8 %v2493
    %v2495 = vlaneseq
    %v2496 = vshrl.u32 %v2495, 7
    %v2497 = vsub.s32 %v2494, %v2496
    %v2498 = vrot.slane %v2482, %v2497
    %v2500 = vunpack.c.l.s4 1966171168
    %v2501 = vunpack.c.0.s8 %v2500
    %v2502 = vlaneseq
    %v2503 = vshrl.u32 %v2502, 7
    %v2504 = vsub.s32 %v2501, %v2503
    %v2505 = vrot.slane %v2483, %v2504
    %v2507 = vunpack.c.l.s4 1966171168
    %v2508 = vunpack.c.0.s8 %v2507
    %v2509 = vlaneseq
    %v2510 = vshrl.u32 %v2509, 7
    %v2511 = vsub.s32 %v2508, %v2510
    %v2512 = vrot.slane %v2484, %v2511
    %v2513 = vcombine.low %v2491, %v2498
    %v2514 = vcombine.low %v2505, %v2512
    %v2516 = vunpack.c.l.s4 1966171168
    %v2517 = vunpack.c.0.s8 %v2516
    %v2518 = vlaneseq
    %v2519 = vshrl.u32 %v2518, 7
    %v2520 = vsub.s32 %v2517, %v2519
    %v2521 = vrot.slane %v2513, %v2520
    %v2523 = vunpack.c.l.s4 1966171168
    %v2524 = vunpack.c.0.s8 %v2523
    %v2525 = vlaneseq
    %v2526 = vshrl.u32 %v2525, 7
    %v2527 = vsub.s32 %v2524, %v2526
    %v2528 = vrot.slane %v2514, %v2527
    %v2529 = vcombine.low %v2521, %v2528
    %v2530 = vcombine.low %v1492, %v1496
    %v2531 = vcombine.low %v1500, %v1504
    %v2532 = vcombine.low %v1508, %v1512
    %v2533 = vcombine.low %v1516, %v1520
    %v2535 = vunpack.c.l.s4 1966171168
    %v2536 = vunpack.c.0.s8 %v2535
    %v2537 = vlaneseq
    %v2538 = vshrl.u32 %v2537, 7
    %v2539 = vsub.s32 %v2536, %v2538
    %v2540 = vrot.slane %v2530, %v2539
    %v2542 = vunpack.c.l.s4 1966171168
    %v2543 = vunpack.c.0.s8 %v2542
    %v2544 = vlaneseq
    %v2545 = vshrl.u32 %v2544, 7
    %v2546 = vsub.s32 %v2543, %v2545
    %v2547 = vrot.slane %v2531, %v2546
    %v2549 = vunpack.c.l.s4 1966171168
    %v2550 = vunpack.c.0.s8 %v2549
    %v2551 = vlaneseq
    %v2552 = vshrl.u32 %v2551, 7
    %v2553 = vsub.s32 %v2550, %v2552
    %v2554 = vrot.slane %v2532, %v2553
    %v2556 = vunpack.c.l.s4 1966171168
    %v2557 = vunpack.c.0.s8 %v2556
    %v2558 = vlaneseq
    %v2559 = vshrl.u32 %v2558, 7
    %v2560 = vsub.s32 %v2557, %v2559
    %v2561 = vrot.slane %v2533, %v2560
    %v2562 = vcombine.low %v2540, %v2547
    %v2563 = vcombine.low %v2554, %v2561
    %v2565 = vunpack.c.l.s4 1966171168
    %v2566 = vunpack.c.0.s8 %v2565
    %v2567 = vlaneseq
    %v2568 = vshrl.u32 %v2567, 7
    %v2569 = vsub.s32 %v2566, %v2568
    %v2570 = vrot.slane %v2562, %v2569
    %v2572 = vunpack.c.l.s4 1966171168
    %v2573 = vunpack.c.0.s8 %v2572
    %v2574 = vlaneseq
    %v2575 = vshrl.u32 %v2574, 7
    %v2576 = vsub.s32 %v2573, %v2575
    %v2577 = vrot.slane %v2563, %v2576
    %v2578 = vcombine.low %v2570, %v2577
    %v2579 = vcombine.low %v1524, %v1528
    %v2580 = vcombine.low %v1532, %v1536
    %v2581 = vcombine.low %v1540, %v1544
    %v2582 = vcombine.low %v1548, %v1552
    %v2584 = vunpack.c.l.s4 1966171168
    %v2585 = vunpack.c.0.s8 %v2584
    %v2586 = vlaneseq
    %v2587 = vshrl.u32 %v2586, 7
    %v2588 = vsub.s32 %v2585, %v2587
    %v2589 = vrot.slane %v2579, %v2588
    %v2591 = vunpack.c.l.s4 1966171168
    %v2592 = vunpack.c.0.s8 %v2591
    %v2593 = vlaneseq
    %v2594 = vshrl.u32 %v2593, 7
    %v2595 = vsub.s32 %v2592, %v2594
    %v2596 = vrot.slane %v2580, %v2595
    %v2598 = vunpack.c.l.s4 1966171168
    %v2599 = vunpack.c.0.s8 %v2598
    %v2600 = vlaneseq
    %v2601 = vshrl.u32 %v2600, 7
    %v2602 = vsub.s32 %v2599, %v2601
    %v2603 = vrot.slane %v2581, %v2602
    %v2605 = vunpack.c.l.s4 1966171168
    %v2606 = vunpack.c.0.s8 %v2605
    %v2607 = vlaneseq
    %v2608 = vshrl.u32 %v2607, 7
    %v2609 = vsub.s32 %v2606, %v2608
    %v2610 = vrot.slane %v2582, %v2609
    %v2611 = vcombine.low %v2589, %v2596
    %v2612 = vcombine.low %v2603, %v2610
    %v2614 = vunpack.c.l.s4 1966171168
    %v2615 = vunpack.c.0.s8 %v2614
    %v2616 = vlaneseq
    %v2617 = vshrl.u32 %v2616, 7
    %v2618 = vsub.s32 %v2615, %v2617
    %v2619 = vrot.slane %v2611, %v2618
    %v2621 = vunpack.c.l.s4 1966171168
    %v2622 = vunpack.c.0.s8 %v2621
    %v2623 = vlaneseq
    %v2624 = vshrl.u32 %v2623, 7
    %v2625 = vsub.s32 %v2622, %v2624
    %v2626 = vrot.slane %v2612, %v2625
    %v2627 = vcombine.low %v2619, %v2626
    %v2628 = vcombine.low %v1556, %v1560
    %v2629 = vcombine.low %v1564, %v1568
    %v2630 = vcombine.low %v1572, %v1576
    %v2631 = vcombine.low %v1580, %v1584
    %v2633 = vunpack.c.l.s4 1966171168
    %v2634 = vunpack.c.0.s8 %v2633
    %v2635 = vlaneseq
    %v2636 = vshrl.u32 %v2635, 7
    %v2637 = vsub.s32 %v2634, %v2636
    %v2638 = vrot.slane %v2628, %v2637
    %v2640 = vunpack.c.l.s4 1966171168
    %v2641 = vunpack.c.0.s8 %v2640
    %v2642 = vlaneseq
    %v2643 = vshrl.u32 %v2642, 7
    %v2644 = vsub.s32 %v2641, %v2643
    %v2645 = vrot.slane %v2629, %v2644
    %v2647 = vunpack.c.l.s4 1966171168
    %v2648 = vunpack.c.0.s8 %v2647
    %v2649 = vlaneseq
    %v2650 = vshrl.u32 %v2649, 7
    %v2651 = vsub.s32 %v2648, %v2650
    %v2652 = vrot.slane %v2630, %v2651
    %v2654 = vunpack.c.l.s4 1966171168
    %v2655 = vunpack.c.0.s8 %v2654
    %v2656 = vlaneseq
    %v2657 = vshrl.u32 %v2656, 7
    %v2658 = vsub.s32 %v2655, %v2657
    %v2659 = vrot.slane %v2631, %v2658
    %v2660 = vcombine.low %v2638, %v2645
    %v2661 = vcombine.low %v2652, %v2659
    %v2663 = vunpack.c.l.s4 1966171168
    %v2664 = vunpack.c.0.s8 %v2663
    %v2665 = vlaneseq
    %v2666 = vshrl.u32 %v2665, 7
    %v2667 = vsub.s32 %v2664, %v2666
    %v2668 = vrot.slane %v2660, %v2667
    %v2670 = vunpack.c.l.s4 1966171168
    %v2671 = vunpack.c.0.s8 %v2670
    %v2672 = vlaneseq
    %v2673 = vshrl.u32 %v2672, 7
    %v2674 = vsub.s32 %v2671, %v2673
    %v2675 = vrot.slane %v2661, %v2674
    %v2676 = vcombine.low %v2668, %v2675
    %v2677 = vcombine.low %v1588, %v1592
    %v2678 = vcombine.low %v1596, %v1600
    %v2679 = vcombine.low %v1604, %v1608
    %v2680 = vcombine.low %v1612, %v1616
    %v2682 = vunpack.c.l.s4 1966171168
    %v2683 = vunpack.c.0.s8 %v2682
    %v2684 = vlaneseq
    %v2685 = vshrl.u32 %v2684, 7
    %v2686 = vsub.s32 %v2683, %v2685
    %v2687 = vrot.slane %v2677, %v2686
    %v2689 = vunpack.c.l.s4 1966171168
    %v2690 = vunpack.c.0.s8 %v2689
    %v2691 = vlaneseq
    %v2692 = vshrl.u32 %v2691, 7
    %v2693 = vsub.s32 %v2690, %v2692
    %v2694 = vrot.slane %v2678, %v2693
    %v2696 = vunpack.c.l.s4 1966171168
    %v2697 = vunpack.c.0.s8 %v2696
    %v2698 = vlaneseq
    %v2699 = vshrl.u32 %v2698, 7
    %v2700 = vsub.s32 %v2697, %v2699
    %v2701 = vrot.slane %v2679, %v2700
    %v2703 = vunpack.c.l.s4 1966171168
    %v2704 = vunpack.c.0.s8 %v2703
    %v2705 = vlaneseq
    %v2706 = vshrl.u32 %v2705, 7
    %v2707 = vsub.s32 %v2704, %v2706
    %v2708 = vrot.slane %v2680, %v2707
    %v2709 = vcombine.low %v2687, %v2694
    %v2710 = vcombine.low %v2701, %v2708
    %v2712 = vunpack.c.l.s4 1966171168
    %v2713 = vunpack.c.0.s8 %v2712
    %v2714 = vlaneseq
    %v2715 = vshrl.u32 %v2714, 7
    %v2716 = vsub.s32 %v2713, %v2715
    %v2717 = vrot.slane %v2709, %v2716
    %v2719 = vunpack.c.l.s4 1966171168
    %v2720 = vunpack.c.0.s8 %v2719
    %v2721 = vlaneseq
    %v2722 = vshrl.u32 %v2721, 7
    %v2723 = vsub.s32 %v2720, %v2722
    %v2724 = vrot.slane %v2710, %v2723
    %v2725 = vcombine.low %v2717, %v2724
    %v2726 = vcombine.low %v1620, %v1624
    %v2727 = vcombine.low %v1628, %v1632
    %v2728 = vcombine.low %v1636, %v1640
    %v2729 = vcombine.low %v1644, %v1648
    %v2731 = vunpack.c.l.s4 1966171168
    %v2732 = vunpack.c.0.s8 %v2731
    %v2733 = vlaneseq
    %v2734 = vshrl.u32 %v2733, 7
    %v2735 = vsub.s32 %v2732, %v2734
    %v2736 = vrot.slane %v2726, %v2735
    %v2738 = vunpack.c.l.s4 1966171168
    %v2739 = vunpack.c.0.s8 %v2738
    %v2740 = vlaneseq
    %v2741 = vshrl.u32 %v2740, 7
    %v2742 = vsub.s32 %v2739, %v2741
    %v2743 = vrot.slane %v2727, %v2742
    %v2745 = vunpack.c.l.s4 1966171168
    %v2746 = vunpack.c.0.s8 %v2745
    %v2747 = vlaneseq
    %v2748 = vshrl.u32 %v2747, 7
    %v2749 = vsub.s32 %v2746, %v2748
    %v2750 = vrot.slane %v2728, %v2749
    %v2752 = vunpack.c.l.s4 1966171168
    %v2753 = vunpack.c.0.s8 %v2752
    %v2754 = vlaneseq
    %v2755 = vshrl.u32 %v2754, 7
    %v2756 = vsub.s32 %v2753, %v2755
    %v2757 = vrot.slane %v2729, %v2756
    %v2758 = vcombine.low %v2736, %v2743
    %v2759 = vcombine.low %v2750, %v2757
    %v2761 = vunpack.c.l.s4 1966171168
    %v2762 = vunpack.c.0.s8 %v2761
    %v2763 = vlaneseq
    %v2764 = vshrl.u32 %v2763, 7
    %v2765 = vsub.s32 %v2762, %v2764
    %v2766 = vrot.slane %v2758, %v2765
    %v2768 = vunpack.c.l.s4 1966171168
    %v2769 = vunpack.c.0.s8 %v2768
    %v2770 = vlaneseq
    %v2771 = vshrl.u32 %v2770, 7
    %v2772 = vsub.s32 %v2769, %v2771
    %v2773 = vrot.slane %v2759, %v2772
    %v2774 = vcombine.low %v2766, %v2773
    %v2775 = vcombine.low %v1652, %v1656
    %v2776 = vcombine.low %v1660, %v1664
    %v2777 = vcombine.low %v1668, %v1672
    %v2778 = vcombine.low %v1676, %v1680
    %v2780 = vunpack.c.l.s4 1966171168
    %v2781 = vunpack.c.0.s8 %v2780
    %v2782 = vlaneseq
    %v2783 = vshrl.u32 %v2782, 7
    %v2784 = vsub.s32 %v2781, %v2783
    %v2785 = vrot.slane %v2775, %v2784
    %v2787 = vunpack.c.l.s4 1966171168
    %v2788 = vunpack.c.0.s8 %v2787
    %v2789 = vlaneseq
    %v2790 = vshrl.u32 %v2789, 7
    %v2791 = vsub.s32 %v2788, %v2790
    %v2792 = vrot.slane %v2776, %v2791
    %v2794 = vunpack.c.l.s4 1966171168
    %v2795 = vunpack.c.0.s8 %v2794
    %v2796 = vlaneseq
    %v2797 = vshrl.u32 %v2796, 7
    %v2798 = vsub.s32 %v2795, %v2797
    %v2799 = vrot.slane %v2777, %v2798
    %v2801 = vunpack.c.l.s4 1966171168
    %v2802 = vunpack.c.0.s8 %v2801
    %v2803 = vlaneseq
    %v2804 = vshrl.u32 %v2803, 7
    %v2805 = vsub.s32 %v2802, %v2804
    %v2806 = vrot.slane %v2778, %v2805
    %v2807 = vcombine.low %v2785, %v2792
    %v2808 = vcombine.low %v2799, %v2806
    %v2810 = vunpack.c.l.s4 1966171168
    %v2811 = vunpack.c.0.s8 %v2810
    %v2812 = vlaneseq
    %v2813 = vshrl.u32 %v2812, 7
    %v2814 = vsub.s32 %v2811, %v2813
    %v2815 = vrot.slane %v2807, %v2814
    %v2817 = vunpack.c.l.s4 1966171168
    %v2818 = vunpack.c.0.s8 %v2817
    %v2819 = vlaneseq
    %v2820 = vshrl.u32 %v2819, 7
    %v2821 = vsub.s32 %v2818, %v2820
    %v2822 = vrot.slane %v2808, %v2821
    %v2823 = vcombine.low %v2815, %v2822
    %v2824 = vcombine.low %v1684, %v1688
    %v2825 = vcombine.low %v1692, %v1696
    %v2826 = vcombine.low %v1700, %v1704
    %v2827 = vcombine.low %v1708, %v1712
    %v2829 = vunpack.c.l.s4 1966171168
    %v2830 = vunpack.c.0.s8 %v2829
    %v2831 = vlaneseq
    %v2832 = vshrl.u32 %v2831, 7
    %v2833 = vsub.s32 %v2830, %v2832
    %v2834 = vrot.slane %v2824, %v2833
    %v2836 = vunpack.c.l.s4 1966171168
    %v2837 = vunpack.c.0.s8 %v2836
    %v2838 = vlaneseq
    %v2839 = vshrl.u32 %v2838, 7
    %v2840 = vsub.s32 %v2837, %v2839
    %v2841 = vrot.slane %v2825, %v2840
    %v2843 = vunpack.c.l.s4 1966171168
    %v2844 = vunpack.c.0.s8 %v2843
    %v2845 = vlaneseq
    %v2846 = vshrl.u32 %v2845, 7
    %v2847 = vsub.s32 %v2844, %v2846
    %v2848 = vrot.slane %v2826, %v2847
    %v2850 = vunpack.c.l.s4 1966171168
    %v2851 = vunpack.c.0.s8 %v2850
    %v2852 = vlaneseq
    %v2853 = vshrl.u32 %v2852, 7
    %v2854 = vsub.s32 %v2851, %v2853
    %v2855 = vrot.slane %v2827, %v2854
    %v2856 = vcombine.low %v2834, %v2841
    %v2857 = vcombine.low %v2848, %v2855
    %v2859 = vunpack.c.l.s4 1966171168
    %v2860 = vunpack.c.0.s8 %v2859
    %v2861 = vlaneseq
    %v2862 = vshrl.u32 %v2861, 7
    %v2863 = vsub.s32 %v2860, %v2862
    %v2864 = vrot.slane %v2856, %v2863
    %v2866 = vunpack.c.l.s4 1966171168
    %v2867 = vunpack.c.0.s8 %v2866
    %v2868 = vlaneseq
    %v2869 = vshrl.u32 %v2868, 7
    %v2870 = vsub.s32 %v2867, %v2869
    %v2871 = vrot.slane %v2857, %v2870
    %v2872 = vcombine.low %v2864, %v2871
    %v2873 = vcombine.low %v1716, %v1720
    %v2874 = vcombine.low %v1724, %v1728
    %v2875 = vcombine.low %v1732, %v1736
    %v2876 = vcombine.low %v1740, %v1744
    %v2878 = vunpack.c.l.s4 1966171168
    %v2879 = vunpack.c.0.s8 %v2878
    %v2880 = vlaneseq
    %v2881 = vshrl.u32 %v2880, 7
    %v2882 = vsub.s32 %v2879, %v2881
    %v2883 = vrot.slane %v2873, %v2882
    %v2885 = vunpack.c.l.s4 1966171168
    %v2886 = vunpack.c.0.s8 %v2885
    %v2887 = vlaneseq
    %v2888 = vshrl.u32 %v2887, 7
    %v2889 = vsub.s32 %v2886, %v2888
    %v2890 = vrot.slane %v2874, %v2889
    %v2892 = vunpack.c.l.s4 1966171168
    %v2893 = vunpack.c.0.s8 %v2892
    %v2894 = vlaneseq
    %v2895 = vshrl.u32 %v2894, 7
    %v2896 = vsub.s32 %v2893, %v2895
    %v2897 = vrot.slane %v2875, %v2896
    %v2899 = vunpack.c.l.s4 1966171168
    %v2900 = vunpack.c.0.s8 %v2899
    %v2901 = vlaneseq
    %v2902 = vshrl.u32 %v2901, 7
    %v2903 = vsub.s32 %v2900, %v2902
    %v2904 = vrot.slane %v2876, %v2903
    %v2905 = vcombine.low %v2883, %v2890
    %v2906 = vcombine.low %v2897, %v2904
    %v2908 = vunpack.c.l.s4 1966171168
    %v2909 = vunpack.c.0.s8 %v2908
    %v2910 = vlaneseq
    %v2911 = vshrl.u32 %v2910, 7
    %v2912 = vsub.s32 %v2909, %v2911
    %v2913 = vrot.slane %v2905, %v2912
    %v2915 = vunpack.c.l.s4 1966171168
    %v2916 = vunpack.c.0.s8 %v2915
    %v2917 = vlaneseq
    %v2918 = vshrl.u32 %v2917, 7
    %v2919 = vsub.s32 %v2916, %v2918
    %v2920 = vrot.slane %v2906, %v2919
    %v2921 = vcombine.low %v2913, %v2920
    %v2922 = vcombine.low %v1748, %v1752
    %v2923 = vcombine.low %v1756, %v1760
    %v2924 = vcombine.low %v1764, %v1768
    %v2925 = vcombine.low %v1772, %v1776
    %v2927 = vunpack.c.l.s4 1966171168
    %v2928 = vunpack.c.0.s8 %v2927
    %v2929 = vlaneseq
    %v2930 = vshrl.u32 %v2929, 7
    %v2931 = vsub.s32 %v2928, %v2930
    %v2932 = vrot.slane %v2922, %v2931
    %v2934 = vunpack.c.l.s4 1966171168
    %v2935 = vunpack.c.0.s8 %v2934
    %v2936 = vlaneseq
    %v2937 = vshrl.u32 %v2936, 7
    %v2938 = vsub.s32 %v2935, %v2937
    %v2939 = vrot.slane %v2923, %v2938
    %v2941 = vunpack.c.l.s4 1966171168
    %v2942 = vunpack.c.0.s8 %v2941
    %v2943 = vlaneseq
    %v2944 = vshrl.u32 %v2943, 7
    %v2945 = vsub.s32 %v2942, %v2944
    %v2946 = vrot.slane %v2924, %v2945
    %v2948 = vunpack.c.l.s4 1966171168
    %v2949 = vunpack.c.0.s8 %v2948
    %v2950 = vlaneseq
    %v2951 = vshrl.u32 %v2950, 7
    %v2952 = vsub.s32 %v2949, %v2951
    %v2953 = vrot.slane %v2925, %v2952
    %v2954 = vcombine.low %v2932, %v2939
    %v2955 = vcombine.low %v2946, %v2953
    %v2957 = vunpack.c.l.s4 1966171168
    %v2958 = vunpack.c.0.s8 %v2957
    %v2959 = vlaneseq
    %v2960 = vshrl.u32 %v2959, 7
    %v2961 = vsub.s32 %v2958, %v2960
    %v2962 = vrot.slane %v2954, %v2961
    %v2964 = vunpack.c.l.s4 1966171168
    %v2965 = vunpack.c.0.s8 %v2964
    %v2966 = vlaneseq
    %v2967 = vshrl.u32 %v2966, 7
    %v2968 = vsub.s32 %v2965, %v2967
    %v2969 = vrot.slane %v2955, %v2968
    %v2970 = vcombine.low %v2962, %v2969
    %v2971 = vcombine.low %v1780, %v1784
    %v2972 = vcombine.low %v1788, %v1792
    %v2973 = vcombine.low %v1796, %v1800
    %v2974 = vcombine.low %v1804, %v1808
    %v2976 = vunpack.c.l.s4 1966171168
    %v2977 = vunpack.c.0.s8 %v2976
    %v2978 = vlaneseq
    %v2979 = vshrl.u32 %v2978, 7
    %v2980 = vsub.s32 %v2977, %v2979
    %v2981 = vrot.slane %v2971, %v2980
    %v2983 = vunpack.c.l.s4 1966171168
    %v2984 = vunpack.c.0.s8 %v2983
    %v2985 = vlaneseq
    %v2986 = vshrl.u32 %v2985, 7
    %v2987 = vsub.s32 %v2984, %v2986
    %v2988 = vrot.slane %v2972, %v2987
    %v2990 = vunpack.c.l.s4 1966171168
    %v2991 = vunpack.c.0.s8 %v2990
    %v2992 = vlaneseq
    %v2993 = vshrl.u32 %v2992, 7
    %v2994 = vsub.s32 %v2991, %v2993
    %v2995 = vrot.slane %v2973, %v2994
    %v2997 = vunpack.c.l.s4 1966171168
    %v2998 = vunpack.c.0.s8 %v2997
    %v2999 = vlaneseq
    %v3000 = vshrl.u32 %v2999, 7
    %v3001 = vsub.s32 %v2998, %v3000
    %v3002 = vrot.slane %v2974, %v3001
    %v3003 = vcombine.low %v2981, %v2988
    %v3004 = vcombine.low %v2995, %v3002
    %v3006 = vunpack.c.l.s4 1966171168
    %v3007 = vunpack.c.0.s8 %v3006
    %v3008 = vlaneseq
    %v3009 = vshrl.u32 %v3008, 7
    %v3010 = vsub.s32 %v3007, %v3009
    %v3011 = vrot.slane %v3003, %v3010
    %v3013 = vunpack.c.l.s4 1966171168
    %v3014 = vunpack.c.0.s8 %v3013
    %v3015 = vlaneseq
    %v3016 = vshrl.u32 %v3015, 7
    %v3017 = vsub.s32 %v3014, %v3016
    %v3018 = vrot.slane %v3004, %v3017
    %v3019 = vcombine.low %v3011, %v3018
    %v3020 = vcombine.low %v1812, %v1816
    %v3021 = vcombine.low %v1820, %v1824
    %v3022 = vcombine.low %v1828, %v1832
    %v3023 = vcombine.low %v1836, %v1840
    %v3025 = vunpack.c.l.s4 1966171168
    %v3026 = vunpack.c.0.s8 %v3025
    %v3027 = vlaneseq
    %v3028 = vshrl.u32 %v3027, 7
    %v3029 = vsub.s32 %v3026, %v3028
    %v3030 = vrot.slane %v3020, %v3029
    %v3032 = vunpack.c.l.s4 1966171168
    %v3033 = vunpack.c.0.s8 %v3032
    %v3034 = vlaneseq
    %v3035 = vshrl.u32 %v3034, 7
    %v3036 = vsub.s32 %v3033, %v3035
    %v3037 = vrot.slane %v3021, %v3036
    %v3039 = vunpack.c.l.s4 1966171168
    %v3040 = vunpack.c.0.s8 %v3039
    %v3041 = vlaneseq
    %v3042 = vshrl.u32 %v3041, 7
    %v3043 = vsub.s32 %v3040, %v3042
    %v3044 = vrot.slane %v3022, %v3043
    %v3046 = vunpack.c.l.s4 1966171168
    %v3047 = vunpack.c.0.s8 %v3046
    %v3048 = vlaneseq
    %v3049 = vshrl.u32 %v3048, 7
    %v3050 = vsub.s32 %v3047, %v3049
    %v3051 = vrot.slane %v3023, %v3050
    %v3052 = vcombine.low %v3030, %v3037
    %v3053 = vcombine.low %v3044, %v3051
    %v3055 = vunpack.c.l.s4 1966171168
    %v3056 = vunpack.c.0.s8 %v3055
    %v3057 = vlaneseq
    %v3058 = vshrl.u32 %v3057, 7
    %v3059 = vsub.s32 %v3056, %v3058
    %v3060 = vrot.slane %v3052, %v3059
    %v3062 = vunpack.c.l.s4 1966171168
    %v3063 = vunpack.c.0.s8 %v3062
    %v3064 = vlaneseq
    %v3065 = vshrl.u32 %v3064, 7
    %v3066 = vsub.s32 %v3063, %v3065
    %v3067 = vrot.slane %v3053, %v3066
    %v3068 = vcombine.low %v3060, %v3067
    %v3069 = vcombine.low %v1844, %v1848
    %v3070 = vcombine.low %v1852, %v1856
    %v3071 = vcombine.low %v1860, %v1864
    %v3072 = vcombine.low %v1868, %v1872
    %v3074 = vunpack.c.l.s4 1966171168
    %v3075 = vunpack.c.0.s8 %v3074
    %v3076 = vlaneseq
    %v3077 = vshrl.u32 %v3076, 7
    %v3078 = vsub.s32 %v3075, %v3077
    %v3079 = vrot.slane %v3069, %v3078
    %v3081 = vunpack.c.l.s4 1966171168
    %v3082 = vunpack.c.0.s8 %v3081
    %v3083 = vlaneseq
    %v3084 = vshrl.u32 %v3083, 7
    %v3085 = vsub.s32 %v3082, %v3084
    %v3086 = vrot.slane %v3070, %v3085
    %v3088 = vunpack.c.l.s4 1966171168
    %v3089 = vunpack.c.0.s8 %v3088
    %v3090 = vlaneseq
    %v3091 = vshrl.u32 %v3090, 7
    %v3092 = vsub.s32 %v3089, %v3091
    %v3093 = vrot.slane %v3071, %v3092
    %v3095 = vunpack.c.l.s4 1966171168
    %v3096 = vunpack.c.0.s8 %v3095
    %v3097 = vlaneseq
    %v3098 = vshrl.u32 %v3097, 7
    %v3099 = vsub.s32 %v3096, %v3098
    %v3100 = vrot.slane %v3072, %v3099
    %v3101 = vcombine.low %v3079, %v3086
    %v3102 = vcombine.low %v3093, %v3100
    %v3104 = vunpack.c.l.s4 1966171168
    %v3105 = vunpack.c.0.s8 %v3104
    %v3106 = vlaneseq
    %v3107 = vshrl.u32 %v3106, 7
    %v3108 = vsub.s32 %v3105, %v3107
    %v3109 = vrot.slane %v3101, %v3108
    %v3111 = vunpack.c.l.s4 1966171168
    %v3112 = vunpack.c.0.s8 %v3111
    %v3113 = vlaneseq
    %v3114 = vshrl.u32 %v3113, 7
    %v3115 = vsub.s32 %v3112, %v3114
    %v3116 = vrot.slane %v3102, %v3115
    %v3117 = vcombine.low %v3109, %v3116
    %v3118 = vcombine.low %v1876, %v1880
    %v3119 = vcombine.low %v1884, %v1888
    %v3120 = vcombine.low %v1892, %v1896
    %v3121 = vcombine.low %v1900, %v1904
    %v3123 = vunpack.c.l.s4 1966171168
    %v3124 = vunpack.c.0.s8 %v3123
    %v3125 = vlaneseq
    %v3126 = vshrl.u32 %v3125, 7
    %v3127 = vsub.s32 %v3124, %v3126
    %v3128 = vrot.slane %v3118, %v3127
    %v3130 = vunpack.c.l.s4 1966171168
    %v3131 = vunpack.c.0.s8 %v3130
    %v3132 = vlaneseq
    %v3133 = vshrl.u32 %v3132, 7
    %v3134 = vsub.s32 %v3131, %v3133
    %v3135 = vrot.slane %v3119, %v3134
    %v3137 = vunpack.c.l.s4 1966171168
    %v3138 = vunpack.c.0.s8 %v3137
    %v3139 = vlaneseq
    %v3140 = vshrl.u32 %v3139, 7
    %v3141 = vsub.s32 %v3138, %v3140
    %v3142 = vrot.slane %v3120, %v3141
    %v3144 = vunpack.c.l.s4 1966171168
    %v3145 = vunpack.c.0.s8 %v3144
    %v3146 = vlaneseq
    %v3147 = vshrl.u32 %v3146, 7
    %v3148 = vsub.s32 %v3145, %v3147
    %v3149 = vrot.slane %v3121, %v3148
    %v3150 = vcombine.low %v3128, %v3135
    %v3151 = vcombine.low %v3142, %v3149
    %v3153 = vunpack.c.l.s4 1966171168
    %v3154 = vunpack.c.0.s8 %v3153
    %v3155 = vlaneseq
    %v3156 = vshrl.u32 %v3155, 7
    %v3157 = vsub.s32 %v3154, %v3156
    %v3158 = vrot.slane %v3150, %v3157
    %v3160 = vunpack.c.l.s4 1966171168
    %v3161 = vunpack.c.0.s8 %v3160
    %v3162 = vlaneseq
    %v3163 = vshrl.u32 %v3162, 7
    %v3164 = vsub.s32 %v3161, %v3163
    %v3165 = vrot.slane %v3151, %v3164
    %v3166 = vcombine.low %v3158, %v3165
    %v3167 = vcombine.low %v1908, %v1912
    %v3168 = vcombine.low %v1916, %v1920
    %v3169 = vcombine.low %v1924, %v1928
    %v3170 = vcombine.low %v1932, %v1936
    %v3172 = vunpack.c.l.s4 1966171168
    %v3173 = vunpack.c.0.s8 %v3172
    %v3174 = vlaneseq
    %v3175 = vshrl.u32 %v3174, 7
    %v3176 = vsub.s32 %v3173, %v3175
    %v3177 = vrot.slane %v3167, %v3176
    %v3179 = vunpack.c.l.s4 1966171168
    %v3180 = vunpack.c.0.s8 %v3179
    %v3181 = vlaneseq
    %v3182 = vshrl.u32 %v3181, 7
    %v3183 = vsub.s32 %v3180, %v3182
    %v3184 = vrot.slane %v3168, %v3183
    %v3186 = vunpack.c.l.s4 1966171168
    %v3187 = vunpack.c.0.s8 %v3186
    %v3188 = vlaneseq
    %v3189 = vshrl.u32 %v3188, 7
    %v3190 = vsub.s32 %v3187, %v3189
    %v3191 = vrot.slane %v3169, %v3190
    %v3193 = vunpack.c.l.s4 1966171168
    %v3194 = vunpack.c.0.s8 %v3193
    %v3195 = vlaneseq
    %v3196 = vshrl.u32 %v3195, 7
    %v3197 = vsub.s32 %v3194, %v3196
    %v3198 = vrot.slane %v3170, %v3197
    %v3199 = vcombine.low %v3177, %v3184
    %v3200 = vcombine.low %v3191, %v3198
    %v3202 = vunpack.c.l.s4 1966171168
    %v3203 = vunpack.c.0.s8 %v3202
    %v3204 = vlaneseq
    %v3205 = vshrl.u32 %v3204, 7
    %v3206 = vsub.s32 %v3203, %v3205
    %v3207 = vrot.slane %v3199, %v3206
    %v3209 = vunpack.c.l.s4 1966171168
    %v3210 = vunpack.c.0.s8 %v3209
    %v3211 = vlaneseq
    %v3212 = vshrl.u32 %v3211, 7
    %v3213 = vsub.s32 %v3210, %v3212
    %v3214 = vrot.slane %v3200, %v3213
    %v3215 = vcombine.low %v3207, %v3214
    %v3216 = vcombine.low %v1940, %v1944
    %v3217 = vcombine.low %v1948, %v1952
    %v3218 = vcombine.low %v1956, %v1960
    %v3219 = vcombine.low %v1964, %v1968
    %v3221 = vunpack.c.l.s4 1966171168
    %v3222 = vunpack.c.0.s8 %v3221
    %v3223 = vlaneseq
    %v3224 = vshrl.u32 %v3223, 7
    %v3225 = vsub.s32 %v3222, %v3224
    %v3226 = vrot.slane %v3216, %v3225
    %v3228 = vunpack.c.l.s4 1966171168
    %v3229 = vunpack.c.0.s8 %v3228
    %v3230 = vlaneseq
    %v3231 = vshrl.u32 %v3230, 7
    %v3232 = vsub.s32 %v3229, %v3231
    %v3233 = vrot.slane %v3217, %v3232
    %v3235 = vunpack.c.l.s4 1966171168
    %v3236 = vunpack.c.0.s8 %v3235
    %v3237 = vlaneseq
    %v3238 = vshrl.u32 %v3237, 7
    %v3239 = vsub.s32 %v3236, %v3238
    %v3240 = vrot.slane %v3218, %v3239
    %v3242 = vunpack.c.l.s4 1966171168
    %v3243 = vunpack.c.0.s8 %v3242
    %v3244 = vlaneseq
    %v3245 = vshrl.u32 %v3244, 7
    %v3246 = vsub.s32 %v3243, %v3245
    %v3247 = vrot.slane %v3219, %v3246
    %v3248 = vcombine.low %v3226, %v3233
    %v3249 = vcombine.low %v3240, %v3247
    %v3251 = vunpack.c.l.s4 1966171168
    %v3252 = vunpack.c.0.s8 %v3251
    %v3253 = vlaneseq
    %v3254 = vshrl.u32 %v3253, 7
    %v3255 = vsub.s32 %v3252, %v3254
    %v3256 = vrot.slane %v3248, %v3255
    %v3258 = vunpack.c.l.s4 1966171168
    %v3259 = vunpack.c.0.s8 %v3258
    %v3260 = vlaneseq
    %v3261 = vshrl.u32 %v3260, 7
    %v3262 = vsub.s32 %v3259, %v3261
    %v3263 = vrot.slane %v3249, %v3262
    %v3264 = vcombine.low %v3256, %v3263
    %v3265 = vcombine.low %v1972, %v1976
    %v3266 = vcombine.low %v1980, %v1984
    %v3267 = vcombine.low %v1988, %v1992
    %v3268 = vcombine.low %v1996, %v2000
    %v3270 = vunpack.c.l.s4 1966171168
    %v3271 = vunpack.c.0.s8 %v3270
    %v3272 = vlaneseq
    %v3273 = vshrl.u32 %v3272, 7
    %v3274 = vsub.s32 %v3271, %v3273
    %v3275 = vrot.slane %v3265, %v3274
    %v3277 = vunpack.c.l.s4 1966171168
    %v3278 = vunpack.c.0.s8 %v3277
    %v3279 = vlaneseq
    %v3280 = vshrl.u32 %v3279, 7
    %v3281 = vsub.s32 %v3278, %v3280
    %v3282 = vrot.slane %v3266, %v3281
    %v3284 = vunpack.c.l.s4 1966171168
    %v3285 = vunpack.c.0.s8 %v3284
    %v3286 = vlaneseq
    %v3287 = vshrl.u32 %v3286, 7
    %v3288 = vsub.s32 %v3285, %v3287
    %v3289 = vrot.slane %v3267, %v3288
    %v3291 = vunpack.c.l.s4 1966171168
    %v3292 = vunpack.c.0.s8 %v3291
    %v3293 = vlaneseq
    %v3294 = vshrl.u32 %v3293, 7
    %v3295 = vsub.s32 %v3292, %v3294
    %v3296 = vrot.slane %v3268, %v3295
    %v3297 = vcombine.low %v3275, %v3282
    %v3298 = vcombine.low %v3289, %v3296
    %v3300 = vunpack.c.l.s4 1966171168
    %v3301 = vunpack.c.0.s8 %v3300
    %v3302 = vlaneseq
    %v3303 = vshrl.u32 %v3302, 7
    %v3304 = vsub.s32 %v3301, %v3303
    %v3305 = vrot.slane %v3297, %v3304
    %v3307 = vunpack.c.l.s4 1966171168
    %v3308 = vunpack.c.0.s8 %v3307
    %v3309 = vlaneseq
    %v3310 = vshrl.u32 %v3309, 7
    %v3311 = vsub.s32 %v3308, %v3310
    %v3312 = vrot.slane %v3298, %v3311
    %v3313 = vcombine.low %v3305, %v3312
    %v3314 = vcombine.low %v2004, %v2008
    %v3315 = vcombine.low %v2012, %v2016
    %v3316 = vcombine.low %v2020, %v2024
    %v3317 = vcombine.low %v2028, %v2032
    %v3319 = vunpack.c.l.s4 1966171168
    %v3320 = vunpack.c.0.s8 %v3319
    %v3321 = vlaneseq
    %v3322 = vshrl.u32 %v3321, 7
    %v3323 = vsub.s32 %v3320, %v3322
    %v3324 = vrot.slane %v3314, %v3323
    %v3326 = vunpack.c.l.s4 1966171168
    %v3327 = vunpack.c.0.s8 %v3326
    %v3328 = vlaneseq
    %v3329 = vshrl.u32 %v3328, 7
    %v3330 = vsub.s32 %v3327, %v3329
    %v3331 = vrot.slane %v3315, %v3330
    %v3333 = vunpack.c.l.s4 1966171168
    %v3334 = vunpack.c.0.s8 %v3333
    %v3335 = vlaneseq
    %v3336 = vshrl.u32 %v3335, 7
    %v3337 = vsub.s32 %v3334, %v3336
    %v3338 = vrot.slane %v3316, %v3337
    %v3340 = vunpack.c.l.s4 1966171168
    %v3341 = vunpack.c.0.s8 %v3340
    %v3342 = vlaneseq
    %v3343 = vshrl.u32 %v3342, 7
    %v3344 = vsub.s32 %v3341, %v3343
    %v3345 = vrot.slane %v3317, %v3344
    %v3346 = vcombine.low %v3324, %v3331
    %v3347 = vcombine.low %v3338, %v3345
    %v3349 = vunpack.c.l.s4 1966171168
    %v3350 = vunpack.c.0.s8 %v3349
    %v3351 = vlaneseq
    %v3352 = vshrl.u32 %v3351, 7
    %v3353 = vsub.s32 %v3350, %v3352
    %v3354 = vrot.slane %v3346, %v3353
    %v3356 = vunpack.c.l.s4 1966171168
    %v3357 = vunpack.c.0.s8 %v3356
    %v3358 = vlaneseq
    %v3359 = vshrl.u32 %v3358, 7
    %v3360 = vsub.s32 %v3357, %v3359
    %v3361 = vrot.slane %v3347, %v3360
    %v3362 = vcombine.low %v3354, %v3361
    %v3363 = vcombine.low %v2036, %v2040
    %v3364 = vcombine.low %v2044, %v2048
    %v3365 = vcombine.low %v2052, %v2056
    %v3366 = vcombine.low %v2060, %v2064
    %v3368 = vunpack.c.l.s4 1966171168
    %v3369 = vunpack.c.0.s8 %v3368
    %v3370 = vlaneseq
    %v3371 = vshrl.u32 %v3370, 7
    %v3372 = vsub.s32 %v3369, %v3371
    %v3373 = vrot.slane %v3363, %v3372
    %v3375 = vunpack.c.l.s4 1966171168
    %v3376 = vunpack.c.0.s8 %v3375
    %v3377 = vlaneseq
    %v3378 = vshrl.u32 %v3377, 7
    %v3379 = vsub.s32 %v3376, %v3378
    %v3380 = vrot.slane %v3364, %v3379
    %v3382 = vunpack.c.l.s4 1966171168
    %v3383 = vunpack.c.0.s8 %v3382
    %v3384 = vlaneseq
    %v3385 = vshrl.u32 %v3384, 7
    %v3386 = vsub.s32 %v3383, %v3385
    %v3387 = vrot.slane %v3365, %v3386
    %v3389 = vunpack.c.l.s4 1966171168
    %v3390 = vunpack.c.0.s8 %v3389
    %v3391 = vlaneseq
    %v3392 = vshrl.u32 %v3391, 7
    %v3393 = vsub.s32 %v3390, %v3392
    %v3394 = vrot.slane %v3366, %v3393
    %v3395 = vcombine.low %v3373, %v3380
    %v3396 = vcombine.low %v3387, %v3394
    %v3398 = vunpack.c.l.s4 1966171168
    %v3399 = vunpack.c.0.s8 %v3398
    %v3400 = vlaneseq
    %v3401 = vshrl.u32 %v3400, 7
    %v3402 = vsub.s32 %v3399, %v3401
    %v3403 = vrot.slane %v3395, %v3402
    %v3405 = vunpack.c.l.s4 1966171168
    %v3406 = vunpack.c.0.s8 %v3405
    %v3407 = vlaneseq
    %v3408 = vshrl.u32 %v3407, 7
    %v3409 = vsub.s32 %v3406, %v3408
    %v3410 = vrot.slane %v3396, %v3409
    %v3411 = vcombine.low %v3403, %v3410
    %v3412 = vcombine.low %v2068, %v2072
    %v3413 = vcombine.low %v2076, %v2080
    %v3414 = vcombine.low %v2084, %v2088
    %v3415 = vcombine.low %v2092, %v2096
    %v3417 = vunpack.c.l.s4 1966171168
    %v3418 = vunpack.c.0.s8 %v3417
    %v3419 = vlaneseq
    %v3420 = vshrl.u32 %v3419, 7
    %v3421 = vsub.s32 %v3418, %v3420
    %v3422 = vrot.slane %v3412, %v3421
    %v3424 = vunpack.c.l.s4 1966171168
    %v3425 = vunpack.c.0.s8 %v3424
    %v3426 = vlaneseq
    %v3427 = vshrl.u32 %v3426, 7
    %v3428 = vsub.s32 %v3425, %v3427
    %v3429 = vrot.slane %v3413, %v3428
    %v3431 = vunpack.c.l.s4 1966171168
    %v3432 = vunpack.c.0.s8 %v3431
    %v3433 = vlaneseq
    %v3434 = vshrl.u32 %v3433, 7
    %v3435 = vsub.s32 %v3432, %v3434
    %v3436 = vrot.slane %v3414, %v3435
    %v3438 = vunpack.c.l.s4 1966171168
    %v3439 = vunpack.c.0.s8 %v3438
    %v3440 = vlaneseq
    %v3441 = vshrl.u32 %v3440, 7
    %v3442 = vsub.s32 %v3439, %v3441
    %v3443 = vrot.slane %v3415, %v3442
    %v3444 = vcombine.low %v3422, %v3429
    %v3445 = vcombine.low %v3436, %v3443
    %v3447 = vunpack.c.l.s4 1966171168
    %v3448 = vunpack.c.0.s8 %v3447
    %v3449 = vlaneseq
    %v3450 = vshrl.u32 %v3449, 7
    %v3451 = vsub.s32 %v3448, %v3450
    %v3452 = vrot.slane %v3444, %v3451
    %v3454 = vunpack.c.l.s4 1966171168
    %v3455 = vunpack.c.0.s8 %v3454
    %v3456 = vlaneseq
    %v3457 = vshrl.u32 %v3456, 7
    %v3458 = vsub.s32 %v3455, %v3457
    %v3459 = vrot.slane %v3445, %v3458
    %v3460 = vcombine.low %v3452, %v3459
    %v3461 = vcombine.low %v2100, %v2104
    %v3462 = vcombine.low %v2108, %v2112
    %v3463 = vcombine.low %v2116, %v2120
    %v3464 = vcombine.low %v2124, %v2128
    %v3466 = vunpack.c.l.s4 1966171168
    %v3467 = vunpack.c.0.s8 %v3466
    %v3468 = vlaneseq
    %v3469 = vshrl.u32 %v3468, 7
    %v3470 = vsub.s32 %v3467, %v3469
    %v3471 = vrot.slane %v3461, %v3470
    %v3473 = vunpack.c.l.s4 1966171168
    %v3474 = vunpack.c.0.s8 %v3473
    %v3475 = vlaneseq
    %v3476 = vshrl.u32 %v3475, 7
    %v3477 = vsub.s32 %v3474, %v3476
    %v3478 = vrot.slane %v3462, %v3477
    %v3480 = vunpack.c.l.s4 1966171168
    %v3481 = vunpack.c.0.s8 %v3480
    %v3482 = vlaneseq
    %v3483 = vshrl.u32 %v3482, 7
    %v3484 = vsub.s32 %v3481, %v3483
    %v3485 = vrot.slane %v3463, %v3484
    %v3487 = vunpack.c.l.s4 1966171168
    %v3488 = vunpack.c.0.s8 %v3487
    %v3489 = vlaneseq
    %v3490 = vshrl.u32 %v3489, 7
    %v3491 = vsub.s32 %v3488, %v3490
    %v3492 = vrot.slane %v3464, %v3491
    %v3493 = vcombine.low %v3471, %v3478
    %v3494 = vcombine.low %v3485, %v3492
    %v3496 = vunpack.c.l.s4 1966171168
    %v3497 = vunpack.c.0.s8 %v3496
    %v3498 = vlaneseq
    %v3499 = vshrl.u32 %v3498, 7
    %v3500 = vsub.s32 %v3497, %v3499
    %v3501 = vrot.slane %v3493, %v3500
    %v3503 = vunpack.c.l.s4 1966171168
    %v3504 = vunpack.c.0.s8 %v3503
    %v3505 = vlaneseq
    %v3506 = vshrl.u32 %v3505, 7
    %v3507 = vsub.s32 %v3504, %v3506
    %v3508 = vrot.slane %v3494, %v3507
    %v3509 = vcombine.low %v3501, %v3508
    %v3510 = vcombine.low %v2132, %v2136
    %v3511 = vcombine.low %v2140, %v2144
    %v3512 = vcombine.low %v2148, %v2152
    %v3513 = vcombine.low %v2156, %v2160
    %v3515 = vunpack.c.l.s4 1966171168
    %v3516 = vunpack.c.0.s8 %v3515
    %v3517 = vlaneseq
    %v3518 = vshrl.u32 %v3517, 7
    %v3519 = vsub.s32 %v3516, %v3518
    %v3520 = vrot.slane %v3510, %v3519
    %v3522 = vunpack.c.l.s4 1966171168
    %v3523 = vunpack.c.0.s8 %v3522
    %v3524 = vlaneseq
    %v3525 = vshrl.u32 %v3524, 7
    %v3526 = vsub.s32 %v3523, %v3525
    %v3527 = vrot.slane %v3511, %v3526
    %v3529 = vunpack.c.l.s4 1966171168
    %v3530 = vunpack.c.0.s8 %v3529
    %v3531 = vlaneseq
    %v3532 = vshrl.u32 %v3531, 7
    %v3533 = vsub.s32 %v3530, %v3532
    %v3534 = vrot.slane %v3512, %v3533
    %v3536 = vunpack.c.l.s4 1966171168
    %v3537 = vunpack.c.0.s8 %v3536
    %v3538 = vlaneseq
    %v3539 = vshrl.u32 %v3538, 7
    %v3540 = vsub.s32 %v3537, %v3539
    %v3541 = vrot.slane %v3513, %v3540
    %v3542 = vcombine.low %v3520, %v3527
    %v3543 = vcombine.low %v3534, %v3541
    %v3545 = vunpack.c.l.s4 1966171168
    %v3546 = vunpack.c.0.s8 %v3545
    %v3547 = vlaneseq
    %v3548 = vshrl.u32 %v3547, 7
    %v3549 = vsub.s32 %v3546, %v3548
    %v3550 = vrot.slane %v3542, %v3549
    %v3552 = vunpack.c.l.s4 1966171168
    %v3553 = vunpack.c.0.s8 %v3552
    %v3554 = vlaneseq
    %v3555 = vshrl.u32 %v3554, 7
    %v3556 = vsub.s32 %v3553, %v3555
    %v3557 = vrot.slane %v3543, %v3556
    %v3558 = vcombine.low %v3550, %v3557
    %v3559 = vcombine.low %v2164, %v2168
    %v3560 = vcombine.low %v2172, %v2176
    %v3561 = vcombine.low %v2180, %v2184
    %v3562 = vcombine.low %v2188, %v2192
    %v3564 = vunpack.c.l.s4 1966171168
    %v3565 = vunpack.c.0.s8 %v3564
    %v3566 = vlaneseq
    %v3567 = vshrl.u32 %v3566, 7
    %v3568 = vsub.s32 %v3565, %v3567
    %v3569 = vrot.slane %v3559, %v3568
    %v3571 = vunpack.c.l.s4 1966171168
    %v3572 = vunpack.c.0.s8 %v3571
    %v3573 = vlaneseq
    %v3574 = vshrl.u32 %v3573, 7
    %v3575 = vsub.s32 %v3572, %v3574
    %v3576 = vrot.slane %v3560, %v3575
    %v3578 = vunpack.c.l.s4 1966171168
    %v3579 = vunpack.c.0.s8 %v3578
    %v3580 = vlaneseq
    %v3581 = vshrl.u32 %v3580, 7
    %v3582 = vsub.s32 %v3579, %v3581
    %v3583 = vrot.slane %v3561, %v3582
    %v3585 = vunpack.c.l.s4 1966171168
    %v3586 = vunpack.c.0.s8 %v3585
    %v3587 = vlaneseq
    %v3588 = vshrl.u32 %v3587, 7
    %v3589 = vsub.s32 %v3586, %v3588
    %v3590 = vrot.slane %v3562, %v3589
    %v3591 = vcombine.low %v3569, %v3576
    %v3592 = vcombine.low %v3583, %v3590
    %v3594 = vunpack.c.l.s4 1966171168
    %v3595 = vunpack.c.0.s8 %v3594
    %v3596 = vlaneseq
    %v3597 = vshrl.u32 %v3596, 7
    %v3598 = vsub.s32 %v3595, %v3597
    %v3599 = vrot.slane %v3591, %v3598
    %v3601 = vunpack.c.l.s4 1966171168
    %v3602 = vunpack.c.0.s8 %v3601
    %v3603 = vlaneseq
    %v3604 = vshrl.u32 %v3603, 7
    %v3605 = vsub.s32 %v3602, %v3604
    %v3606 = vrot.slane %v3592, %v3605
    %v3607 = vcombine.low %v3599, %v3606
    %v3608 = vcombine.low %v2196, %v2200
    %v3609 = vcombine.low %v2204, %v2208
    %v3610 = vcombine.low %v2212, %v2216
    %v3611 = vcombine.low %v2220, %v2224
    %v3613 = vunpack.c.l.s4 1966171168
    %v3614 = vunpack.c.0.s8 %v3613
    %v3615 = vlaneseq
    %v3616 = vshrl.u32 %v3615, 7
    %v3617 = vsub.s32 %v3614, %v3616
    %v3618 = vrot.slane %v3608, %v3617
    %v3620 = vunpack.c.l.s4 1966171168
    %v3621 = vunpack.c.0.s8 %v3620
    %v3622 = vlaneseq
    %v3623 = vshrl.u32 %v3622, 7
    %v3624 = vsub.s32 %v3621, %v3623
    %v3625 = vrot.slane %v3609, %v3624
    %v3627 = vunpack.c.l.s4 1966171168
    %v3628 = vunpack.c.0.s8 %v3627
    %v3629 = vlaneseq
    %v3630 = vshrl.u32 %v3629, 7
    %v3631 = vsub.s32 %v3628, %v3630
    %v3632 = vrot.slane %v3610, %v3631
    %v3634 = vunpack.c.l.s4 1966171168
    %v3635 = vunpack.c.0.s8 %v3634
    %v3636 = vlaneseq
    %v3637 = vshrl.u32 %v3636, 7
    %v3638 = vsub.s32 %v3635, %v3637
    %v3639 = vrot.slane %v3611, %v3638
    %v3640 = vcombine.low %v3618, %v3625
    %v3641 = vcombine.low %v3632, %v3639
    %v3643 = vunpack.c.l.s4 1966171168
    %v3644 = vunpack.c.0.s8 %v3643
    %v3645 = vlaneseq
    %v3646 = vshrl.u32 %v3645, 7
    %v3647 = vsub.s32 %v3644, %v3646
    %v3648 = vrot.slane %v3640, %v3647
    %v3650 = vunpack.c.l.s4 1966171168
    %v3651 = vunpack.c.0.s8 %v3650
    %v3652 = vlaneseq
    %v3653 = vshrl.u32 %v3652, 7
    %v3654 = vsub.s32 %v3651, %v3653
    %v3655 = vrot.slane %v3641, %v3654
    %v3656 = vcombine.low %v3648, %v3655
    %v3657 = vcombine.low %v2228, %v2232
    %v3658 = vcombine.low %v2236, %v2240
    %v3659 = vcombine.low %v2244, %v2248
    %v3660 = vcombine.low %v2252, %v2256
    %v3662 = vunpack.c.l.s4 1966171168
    %v3663 = vunpack.c.0.s8 %v3662
    %v3664 = vlaneseq
    %v3665 = vshrl.u32 %v3664, 7
    %v3666 = vsub.s32 %v3663, %v3665
    %v3667 = vrot.slane %v3657, %v3666
    %v3669 = vunpack.c.l.s4 1966171168
    %v3670 = vunpack.c.0.s8 %v3669
    %v3671 = vlaneseq
    %v3672 = vshrl.u32 %v3671, 7
    %v3673 = vsub.s32 %v3670, %v3672
    %v3674 = vrot.slane %v3658, %v3673
    %v3676 = vunpack.c.l.s4 1966171168
    %v3677 = vunpack.c.0.s8 %v3676
    %v3678 = vlaneseq
    %v3679 = vshrl.u32 %v3678, 7
    %v3680 = vsub.s32 %v3677, %v3679
    %v3681 = vrot.slane %v3659, %v3680
    %v3683 = vunpack.c.l.s4 1966171168
    %v3684 = vunpack.c.0.s8 %v3683
    %v3685 = vlaneseq
    %v3686 = vshrl.u32 %v3685, 7
    %v3687 = vsub.s32 %v3684, %v3686
    %v3688 = vrot.slane %v3660, %v3687
    %v3689 = vcombine.low %v3667, %v3674
    %v3690 = vcombine.low %v3681, %v3688
    %v3692 = vunpack.c.l.s4 1966171168
    %v3693 = vunpack.c.0.s8 %v3692
    %v3694 = vlaneseq
    %v3695 = vshrl.u32 %v3694, 7
    %v3696 = vsub.s32 %v3693, %v3695
    %v3697 = vrot.slane %v3689, %v3696
    %v3699 = vunpack.c.l.s4 1966171168
    %v3700 = vunpack.c.0.s8 %v3699
    %v3701 = vlaneseq
    %v3702 = vshrl.u32 %v3701, 7
    %v3703 = vsub.s32 %v3700, %v3702
    %v3704 = vrot.slane %v3690, %v3703
    %v3705 = vcombine.low %v3697, %v3704
    %v3706 = vcombine.low %v2260, %v2264
    %v3707 = vcombine.low %v2268, %v2272
    %v3708 = vcombine.low %v2276, %v2280
    %v3709 = vcombine.low %v2284, %v2288
    %v3711 = vunpack.c.l.s4 1966171168
    %v3712 = vunpack.c.0.s8 %v3711
    %v3713 = vlaneseq
    %v3714 = vshrl.u32 %v3713, 7
    %v3715 = vsub.s32 %v3712, %v3714
    %v3716 = vrot.slane %v3706, %v3715
    %v3718 = vunpack.c.l.s4 1966171168
    %v3719 = vunpack.c.0.s8 %v3718
    %v3720 = vlaneseq
    %v3721 = vshrl.u32 %v3720, 7
    %v3722 = vsub.s32 %v3719, %v3721
    %v3723 = vrot.slane %v3707, %v3722
    %v3725 = vunpack.c.l.s4 1966171168
    %v3726 = vunpack.c.0.s8 %v3725
    %v3727 = vlaneseq
    %v3728 = vshrl.u32 %v3727, 7
    %v3729 = vsub.s32 %v3726, %v3728
    %v3730 = vrot.slane %v3708, %v3729
    %v3732 = vunpack.c.l.s4 1966171168
    %v3733 = vunpack.c.0.s8 %v3732
    %v3734 = vlaneseq
    %v3735 = vshrl.u32 %v3734, 7
    %v3736 = vsub.s32 %v3733, %v3735
    %v3737 = vrot.slane %v3709, %v3736
    %v3738 = vcombine.low %v3716, %v3723
    %v3739 = vcombine.low %v3730, %v3737
    %v3741 = vunpack.c.l.s4 1966171168
    %v3742 = vunpack.c.0.s8 %v3741
    %v3743 = vlaneseq
    %v3744 = vshrl.u32 %v3743, 7
    %v3745 = vsub.s32 %v3742, %v3744
    %v3746 = vrot.slane %v3738, %v3745
    %v3748 = vunpack.c.l.s4 1966171168
    %v3749 = vunpack.c.0.s8 %v3748
    %v3750 = vlaneseq
    %v3751 = vshrl.u32 %v3750, 7
    %v3752 = vsub.s32 %v3749, %v3751
    %v3753 = vrot.slane %v3739, %v3752
    %v3754 = vcombine.low %v3746, %v3753
    %v3755 = vcombine.low %v2292, %v2296
    %v3756 = vcombine.low %v2300, %v2304
    %v3757 = vcombine.low %v2308, %v2312
    %v3758 = vcombine.low %v2316, %v2320
    %v3760 = vunpack.c.l.s4 1966171168
    %v3761 = vunpack.c.0.s8 %v3760
    %v3762 = vlaneseq
    %v3763 = vshrl.u32 %v3762, 7
    %v3764 = vsub.s32 %v3761, %v3763
    %v3765 = vrot.slane %v3755, %v3764
    %v3767 = vunpack.c.l.s4 1966171168
    %v3768 = vunpack.c.0.s8 %v3767
    %v3769 = vlaneseq
    %v3770 = vshrl.u32 %v3769, 7
    %v3771 = vsub.s32 %v3768, %v3770
    %v3772 = vrot.slane %v3756, %v3771
    %v3774 = vunpack.c.l.s4 1966171168
    %v3775 = vunpack.c.0.s8 %v3774
    %v3776 = vlaneseq
    %v3777 = vshrl.u32 %v3776, 7
    %v3778 = vsub.s32 %v3775, %v3777
    %v3779 = vrot.slane %v3757, %v3778
    %v3781 = vunpack.c.l.s4 1966171168
    %v3782 = vunpack.c.0.s8 %v3781
    %v3783 = vlaneseq
    %v3784 = vshrl.u32 %v3783, 7
    %v3785 = vsub.s32 %v3782, %v3784
    %v3786 = vrot.slane %v3758, %v3785
    %v3787 = vcombine.low %v3765, %v3772
    %v3788 = vcombine.low %v3779, %v3786
    %v3790 = vunpack.c.l.s4 1966171168
    %v3791 = vunpack.c.0.s8 %v3790
    %v3792 = vlaneseq
    %v3793 = vshrl.u32 %v3792, 7
    %v3794 = vsub.s32 %v3791, %v3793
    %v3795 = vrot.slane %v3787, %v3794
    %v3797 = vunpack.c.l.s4 1966171168
    %v3798 = vunpack.c.0.s8 %v3797
    %v3799 = vlaneseq
    %v3800 = vshrl.u32 %v3799, 7
    %v3801 = vsub.s32 %v3798, %v3800
    %v3802 = vrot.slane %v3788, %v3801
    %v3803 = vcombine.low %v3795, %v3802
    %v3804 = vcombine.low %v2324, %v2328
    %v3805 = vcombine.low %v2332, %v2336
    %v3806 = vcombine.low %v2340, %v2344
    %v3807 = vcombine.low %v2348, %v2352
    %v3809 = vunpack.c.l.s4 1966171168
    %v3810 = vunpack.c.0.s8 %v3809
    %v3811 = vlaneseq
    %v3812 = vshrl.u32 %v3811, 7
    %v3813 = vsub.s32 %v3810, %v3812
    %v3814 = vrot.slane %v3804, %v3813
    %v3816 = vunpack.c.l.s4 1966171168
    %v3817 = vunpack.c.0.s8 %v3816
    %v3818 = vlaneseq
    %v3819 = vshrl.u32 %v3818, 7
    %v3820 = vsub.s32 %v3817, %v3819
    %v3821 = vrot.slane %v3805, %v3820
    %v3823 = vunpack.c.l.s4 1966171168
    %v3824 = vunpack.c.0.s8 %v3823
    %v3825 = vlaneseq
    %v3826 = vshrl.u32 %v3825, 7
    %v3827 = vsub.s32 %v3824, %v3826
    %v3828 = vrot.slane %v3806, %v3827
    %v3830 = vunpack.c.l.s4 1966171168
    %v3831 = vunpack.c.0.s8 %v3830
    %v3832 = vlaneseq
    %v3833 = vshrl.u32 %v3832, 7
    %v3834 = vsub.s32 %v3831, %v3833
    %v3835 = vrot.slane %v3807, %v3834
    %v3836 = vcombine.low %v3814, %v3821
    %v3837 = vcombine.low %v3828, %v3835
    %v3839 = vunpack.c.l.s4 1966171168
    %v3840 = vunpack.c.0.s8 %v3839
    %v3841 = vlaneseq
    %v3842 = vshrl.u32 %v3841, 7
    %v3843 = vsub.s32 %v3840, %v3842
    %v3844 = vrot.slane %v3836, %v3843
    %v3846 = vunpack.c.l.s4 1966171168
    %v3847 = vunpack.c.0.s8 %v3846
    %v3848 = vlaneseq
    %v3849 = vshrl.u32 %v3848, 7
    %v3850 = vsub.s32 %v3847, %v3849
    %v3851 = vrot.slane %v3837, %v3850
    %v3852 = vcombine.low %v3844, %v3851
    %v3853 = vcombine.low %v2356, %v2360
    %v3854 = vcombine.low %v2364, %v2368
    %v3855 = vcombine.low %v2372, %v2376
    %v3856 = vcombine.low %v2380, %v2384
    %v3858 = vunpack.c.l.s4 1966171168
    %v3859 = vunpack.c.0.s8 %v3858
    %v3860 = vlaneseq
    %v3861 = vshrl.u32 %v3860, 7
    %v3862 = vsub.s32 %v3859, %v3861
    %v3863 = vrot.slane %v3853, %v3862
    %v3865 = vunpack.c.l.s4 1966171168
    %v3866 = vunpack.c.0.s8 %v3865
    %v3867 = vlaneseq
    %v3868 = vshrl.u32 %v3867, 7
    %v3869 = vsub.s32 %v3866, %v3868
    %v3870 = vrot.slane %v3854, %v3869
    %v3872 = vunpack.c.l.s4 1966171168
    %v3873 = vunpack.c.0.s8 %v3872
    %v3874 = vlaneseq
    %v3875 = vshrl.u32 %v3874, 7
    %v3876 = vsub.s32 %v3873, %v3875
    %v3877 = vrot.slane %v3855, %v3876
    %v3879 = vunpack.c.l.s4 1966171168
    %v3880 = vunpack.c.0.s8 %v3879
    %v3881 = vlaneseq
    %v3882 = vshrl.u32 %v3881, 7
    %v3883 = vsub.s32 %v3880, %v3882
    %v3884 = vrot.slane %v3856, %v3883
    %v3885 = vcombine.low %v3863, %v3870
    %v3886 = vcombine.low %v3877, %v3884
    %v3888 = vunpack.c.l.s4 1966171168
    %v3889 = vunpack.c.0.s8 %v3888
    %v3890 = vlaneseq
    %v3891 = vshrl.u32 %v3890, 7
    %v3892 = vsub.s32 %v3889, %v3891
    %v3893 = vrot.slane %v3885, %v3892
    %v3895 = vunpack.c.l.s4 1966171168
    %v3896 = vunpack.c.0.s8 %v3895
    %v3897 = vlaneseq
    %v3898 = vshrl.u32 %v3897, 7
    %v3899 = vsub.s32 %v3896, %v3898
    %v3900 = vrot.slane %v3886, %v3899
    %v3901 = vcombine.low %v3893, %v3900
    %v3902 = vcombine.low %v2388, %v2392
    %v3903 = vcombine.low %v2396, %v2400
    %v3904 = vcombine.low %v2404, %v2408
    %v3905 = vcombine.low %v2412, %v2416
    %v3907 = vunpack.c.l.s4 1966171168
    %v3908 = vunpack.c.0.s8 %v3907
    %v3909 = vlaneseq
    %v3910 = vshrl.u32 %v3909, 7
    %v3911 = vsub.s32 %v3908, %v3910
    %v3912 = vrot.slane %v3902, %v3911
    %v3914 = vunpack.c.l.s4 1966171168
    %v3915 = vunpack.c.0.s8 %v3914
    %v3916 = vlaneseq
    %v3917 = vshrl.u32 %v3916, 7
    %v3918 = vsub.s32 %v3915, %v3917
    %v3919 = vrot.slane %v3903, %v3918
    %v3921 = vunpack.c.l.s4 1966171168
    %v3922 = vunpack.c.0.s8 %v3921
    %v3923 = vlaneseq
    %v3924 = vshrl.u32 %v3923, 7
    %v3925 = vsub.s32 %v3922, %v3924
    %v3926 = vrot.slane %v3904, %v3925
    %v3928 = vunpack.c.l.s4 1966171168
    %v3929 = vunpack.c.0.s8 %v3928
    %v3930 = vlaneseq
    %v3931 = vshrl.u32 %v3930, 7
    %v3932 = vsub.s32 %v3929, %v3931
    %v3933 = vrot.slane %v3905, %v3932
    %v3934 = vcombine.low %v3912, %v3919
    %v3935 = vcombine.low %v3926, %v3933
    %v3937 = vunpack.c.l.s4 1966171168
    %v3938 = vunpack.c.0.s8 %v3937
    %v3939 = vlaneseq
    %v3940 = vshrl.u32 %v3939, 7
    %v3941 = vsub.s32 %v3938, %v3940
    %v3942 = vrot.slane %v3934, %v3941
    %v3944 = vunpack.c.l.s4 1966171168
    %v3945 = vunpack.c.0.s8 %v3944
    %v3946 = vlaneseq
    %v3947 = vshrl.u32 %v3946, 7
    %v3948 = vsub.s32 %v3945, %v3947
    %v3949 = vrot.slane %v3935, %v3948
    %v3950 = vcombine.low %v3942, %v3949
    %v3951 = vcombine.low %v2420, %v2424
    %v3952 = vcombine.low %v2428, %v2432
    %v3953 = vcombine.low %v2436, %v2440
    %v3954 = vcombine.low %v2444, %v2448
    %v3956 = vunpack.c.l.s4 1966171168
    %v3957 = vunpack.c.0.s8 %v3956
    %v3958 = vlaneseq
    %v3959 = vshrl.u32 %v3958, 7
    %v3960 = vsub.s32 %v3957, %v3959
    %v3961 = vrot.slane %v3951, %v3960
    %v3963 = vunpack.c.l.s4 1966171168
    %v3964 = vunpack.c.0.s8 %v3963
    %v3965 = vlaneseq
    %v3966 = vshrl.u32 %v3965, 7
    %v3967 = vsub.s32 %v3964, %v3966
    %v3968 = vrot.slane %v3952, %v3967
    %v3970 = vunpack.c.l.s4 1966171168
    %v3971 = vunpack.c.0.s8 %v3970
    %v3972 = vlaneseq
    %v3973 = vshrl.u32 %v3972, 7
    %v3974 = vsub.s32 %v3971, %v3973
    %v3975 = vrot.slane %v3953, %v3974
    %v3977 = vunpack.c.l.s4 1966171168
    %v3978 = vunpack.c.0.s8 %v3977
    %v3979 = vlaneseq
    %v3980 = vshrl.u32 %v3979, 7
    %v3981 = vsub.s32 %v3978, %v3980
    %v3982 = vrot.slane %v3954, %v3981
    %v3983 = vcombine.low %v3961, %v3968
    %v3984 = vcombine.low %v3975, %v3982
    %v3986 = vunpack.c.l.s4 1966171168
    %v3987 = vunpack.c.0.s8 %v3986
    %v3988 = vlaneseq
    %v3989 = vshrl.u32 %v3988, 7
    %v3990 = vsub.s32 %v3987, %v3989
    %v3991 = vrot.slane %v3983, %v3990
    %v3993 = vunpack.c.l.s4 1966171168
    %v3994 = vunpack.c.0.s8 %v3993
    %v3995 = vlaneseq
    %v3996 = vshrl.u32 %v3995, 7
    %v3997 = vsub.s32 %v3994, %v3996
    %v3998 = vrot.slane %v3984, %v3997
    %v3999 = vcombine.low %v3991, %v3998
    %v4000 = vcombine.low %v2452, %v2456
    %v4001 = vcombine.low %v2460, %v2464
    %v4002 = vcombine.low %v2468, %v2472
    %v4003 = vcombine.low %v2476, %v2480
    %v4005 = vunpack.c.l.s4 1966171168
    %v4006 = vunpack.c.0.s8 %v4005
    %v4007 = vlaneseq
    %v4008 = vshrl.u32 %v4007, 7
    %v4009 = vsub.s32 %v4006, %v4008
    %v4010 = vrot.slane %v4000, %v4009
    %v4012 = vunpack.c.l.s4 1966171168
    %v4013 = vunpack.c.0.s8 %v4012
    %v4014 = vlaneseq
    %v4015 = vshrl.u32 %v4014, 7
    %v4016 = vsub.s32 %v4013, %v4015
    %v4017 = vrot.slane %v4001, %v4016
    %v4019 = vunpack.c.l.s4 1966171168
    %v4020 = vunpack.c.0.s8 %v4019
    %v4021 = vlaneseq
    %v4022 = vshrl.u32 %v4021, 7
    %v4023 = vsub.s32 %v4020, %v4022
    %v4024 = vrot.slane %v4002, %v4023
    %v4026 = vunpack.c.l.s4 1966171168
    %v4027 = vunpack.c.0.s8 %v4026
    %v4028 = vlaneseq
    %v4029 = vshrl.u32 %v4028, 7
    %v4030 = vsub.s32 %v4027, %v4029
    %v4031 = vrot.slane %v4003, %v4030
    %v4032 = vcombine.low %v4010, %v4017
    %v4033 = vcombine.low %v4024, %v4031
    %v4035 = vunpack.c.l.s4 1966171168
    %v4036 = vunpack.c.0.s8 %v4035
    %v4037 = vlaneseq
    %v4038 = vshrl.u32 %v4037, 7
    %v4039 = vsub.s32 %v4036, %v4038
    %v4040 = vrot.slane %v4032, %v4039
    %v4042 = vunpack.c.l.s4 1966171168
    %v4043 = vunpack.c.0.s8 %v4042
    %v4044 = vlaneseq
    %v4045 = vshrl.u32 %v4044, 7
    %v4046 = vsub.s32 %v4043, %v4045
    %v4047 = vrot.slane %v4033, %v4046
    %v4048 = vcombine.low %v4040, %v4047
    %4049 = vset.pattern.permute.xlu0 0
    %4050 = vperm.xlu0 %4049, %v2529
    %v4051 = vpop.permute.xlu0 %4050
    %4052 = vset.pattern.permute.xlu0 0
    %4053 = vperm.xlu0 %4052, %v2578
    %v4054 = vpop.permute.xlu0 %4053
    %4055 = vset.pattern.permute.xlu0 0
    %4056 = vperm.xlu0 %4055, %v2627
    %v4057 = vpop.permute.xlu0 %4056
    %4058 = vset.pattern.permute.xlu0 0
    %4059 = vperm.xlu0 %4058, %v2676
    %v4060 = vpop.permute.xlu0 %4059
    %4061 = vset.pattern.permute.xlu0 0
    %4062 = vperm.xlu0 %4061, %v2725
    %v4063 = vpop.permute.xlu0 %4062
    %4064 = vset.pattern.permute.xlu0 0
    %4065 = vperm.xlu0 %4064, %v2774
    %v4066 = vpop.permute.xlu0 %4065
    %4067 = vset.pattern.permute.xlu0 0
    %4068 = vperm.xlu0 %4067, %v2823
    %v4069 = vpop.permute.xlu0 %4068
    %4070 = vset.pattern.permute.xlu0 0
    %4071 = vperm.xlu0 %4070, %v2872
    %v4072 = vpop.permute.xlu0 %4071
    %4073 = vset.pattern.permute.xlu0 0
    %4074 = vperm.xlu0 %4073, %v2921
    %v4075 = vpop.permute.xlu0 %4074
    %4076 = vset.pattern.permute.xlu0 0
    %4077 = vperm.xlu0 %4076, %v2970
    %v4078 = vpop.permute.xlu0 %4077
    %4079 = vset.pattern.permute.xlu0 0
    %4080 = vperm.xlu0 %4079, %v3019
    %v4081 = vpop.permute.xlu0 %4080
    %4082 = vset.pattern.permute.xlu0 0
    %4083 = vperm.xlu0 %4082, %v3068
    %v4084 = vpop.permute.xlu0 %4083
    %4085 = vset.pattern.permute.xlu0 0
    %4086 = vperm.xlu0 %4085, %v3117
    %v4087 = vpop.permute.xlu0 %4086
    %4088 = vset.pattern.permute.xlu0 0
    %4089 = vperm.xlu0 %4088, %v3166
    %v4090 = vpop.permute.xlu0 %4089
    %4091 = vset.pattern.permute.xlu0 0
    %4092 = vperm.xlu0 %4091, %v3215
    %v4093 = vpop.permute.xlu0 %4092
    %4094 = vset.pattern.permute.xlu0 0
    %4095 = vperm.xlu0 %4094, %v3264
    %v4096 = vpop.permute.xlu0 %4095
    %4097 = vset.pattern.permute.xlu0 0
    %4098 = vperm.xlu0 %4097, %v3313
    %v4099 = vpop.permute.xlu0 %4098
    %4100 = vset.pattern.permute.xlu0 0
    %4101 = vperm.xlu0 %4100, %v3362
    %v4102 = vpop.permute.xlu0 %4101
    %4103 = vset.pattern.permute.xlu0 0
    %4104 = vperm.xlu0 %4103, %v3411
    %v4105 = vpop.permute.xlu0 %4104
    %4106 = vset.pattern.permute.xlu0 0
    %4107 = vperm.xlu0 %4106, %v3460
    %v4108 = vpop.permute.xlu0 %4107
    %4109 = vset.pattern.permute.xlu0 0
    %4110 = vperm.xlu0 %4109, %v3509
    %v4111 = vpop.permute.xlu0 %4110
    %4112 = vset.pattern.permute.xlu0 0
    %4113 = vperm.xlu0 %4112, %v3558
    %v4114 = vpop.permute.xlu0 %4113
    %4115 = vset.pattern.permute.xlu0 0
    %4116 = vperm.xlu0 %4115, %v3607
    %v4117 = vpop.permute.xlu0 %4116
    %4118 = vset.pattern.permute.xlu0 0
    %4119 = vperm.xlu0 %4118, %v3656
    %v4120 = vpop.permute.xlu0 %4119
    %4121 = vset.pattern.permute.xlu0 0
    %4122 = vperm.xlu0 %4121, %v3705
    %v4123 = vpop.permute.xlu0 %4122
    %4124 = vset.pattern.permute.xlu0 0
    %4125 = vperm.xlu0 %4124, %v3754
    %v4126 = vpop.permute.xlu0 %4125
    %4127 = vset.pattern.permute.xlu0 0
    %4128 = vperm.xlu0 %4127, %v3803
    %v4129 = vpop.permute.xlu0 %4128
    %4130 = vset.pattern.permute.xlu0 0
    %4131 = vperm.xlu0 %4130, %v3852
    %v4132 = vpop.permute.xlu0 %4131
    %4133 = vset.pattern.permute.xlu0 0
    %4134 = vperm.xlu0 %4133, %v3901
    %v4135 = vpop.permute.xlu0 %4134
    %4136 = vset.pattern.permute.xlu0 0
    %4137 = vperm.xlu0 %4136, %v3950
    %v4138 = vpop.permute.xlu0 %4137
    %4139 = vset.pattern.permute.xlu0 0
    %4140 = vperm.xlu0 %4139, %v3999
    %v4141 = vpop.permute.xlu0 %4140
    %4142 = vset.pattern.permute.xlu0 0
    %4143 = vperm.xlu0 %4142, %v4048
    %v4144 = vpop.permute.xlu0 %4143
    %v4145 = vlaneseq
    %v4146 = vand.u32 %v4145, 127
    %v4147 = vlaneseq
    %v4148 = vshrl.u32 %v4147, 7
    %v4149 = vsub.s32 %v4146, %v4148
    %v4150 = vrot.slane %v4051, %v4149
    %v4151 = vadd.s32 %v4146, 4294967288
    %v4152 = vlaneseq
    %v4153 = vshrl.u32 %v4152, 7
    %v4154 = vsub.s32 %v4151, %v4153
    %v4155 = vrot.slane %v4054, %v4154
    %vm4156 = vcmask 130112
    %v4157 = vsel %vm4156, %v4155, %v4150
    %v4158 = vadd.s32 %v4146, 4294967280
    %v4159 = vlaneseq
    %v4160 = vshrl.u32 %v4159, 7
    %v4161 = vsub.s32 %v4158, %v4160
    %v4162 = vrot.slane %v4057, %v4161
    %vm4163 = vcmask 195712
    %v4164 = vsel %vm4163, %v4162, %v4157
    %v4165 = vadd.s32 %v4146, 4294967272
    %v4166 = vlaneseq
    %v4167 = vshrl.u32 %v4166, 7
    %v4168 = vsub.s32 %v4165, %v4167
    %v4169 = vrot.slane %v4060, %v4168
    %vm4170 = vcmask 261312
    %v4171 = vsel %vm4170, %v4169, %v4164
    %v4172 = vadd.s32 %v4146, 4294967264
    %v4173 = vlaneseq
    %v4174 = vshrl.u32 %v4173, 7
    %v4175 = vsub.s32 %v4172, %v4174
    %v4176 = vrot.slane %v4063, %v4175
    %vm4177 = vcmask 326912
    %v4178 = vsel %vm4177, %v4176, %v4171
    %v4179 = vadd.s32 %v4146, 4294967256
    %v4180 = vlaneseq
    %v4181 = vshrl.u32 %v4180, 7
    %v4182 = vsub.s32 %v4179, %v4181
    %v4183 = vrot.slane %v4066, %v4182
    %vm4184 = vcmask 392512
    %v4185 = vsel %vm4184, %v4183, %v4178
    %v4186 = vadd.s32 %v4146, 4294967248
    %v4187 = vlaneseq
    %v4188 = vshrl.u32 %v4187, 7
    %v4189 = vsub.s32 %v4186, %v4188
    %v4190 = vrot.slane %v4069, %v4189
    %vm4191 = vcmask 458112
    %v4192 = vsel %vm4191, %v4190, %v4185
    %v4193 = vadd.s32 %v4146, 4294967240
    %v4194 = vlaneseq
    %v4195 = vshrl.u32 %v4194, 7
    %v4196 = vsub.s32 %v4193, %v4195
    %v4197 = vrot.slane %v4072, %v4196
    %vm4198 = vcmask 523712
    %v4199 = vsel %vm4198, %v4197, %v4192
    %v4200 = vadd.s32 %v4146, 4294967232
    %v4201 = vlaneseq
    %v4202 = vshrl.u32 %v4201, 7
    %v4203 = vsub.s32 %v4200, %v4202
    %v4204 = vrot.slane %v4075, %v4203
    %vm4205 = vcmask 589312
    %v4206 = vsel %vm4205, %v4204, %v4199
    %v4207 = vadd.s32 %v4146, 4294967224
    %v4208 = vlaneseq
    %v4209 = vshrl.u32 %v4208, 7
    %v4210 = vsub.s32 %v4207, %v4209
    %v4211 = vrot.slane %v4078, %v4210
    %vm4212 = vcmask 654912
    %v4213 = vsel %vm4212, %v4211, %v4206
    %v4214 = vadd.s32 %v4146, 4294967216
    %v4215 = vlaneseq
    %v4216 = vshrl.u32 %v4215, 7
    %v4217 = vsub.s32 %v4214, %v4216
    %v4218 = vrot.slane %v4081, %v4217
    %vm4219 = vcmask 720512
    %v4220 = vsel %vm4219, %v4218, %v4213
    %v4221 = vadd.s32 %v4146, 4294967208
    %v4222 = vlaneseq
    %v4223 = vshrl.u32 %v4222, 7
    %v4224 = vsub.s32 %v4221, %v4223
    %v4225 = vrot.slane %v4084, %v4224
    %vm4226 = vcmask 786112
    %v4227 = vsel %vm4226, %v4225, %v4220
    %v4228 = vadd.s32 %v4146, 4294967200
    %v4229 = vlaneseq
    %v4230 = vshrl.u32 %v4229, 7
    %v4231 = vsub.s32 %v4228, %v4230
    %v4232 = vrot.slane %v4087, %v4231
    %vm4233 = vcmask 851712
    %v4234 = vsel %vm4233, %v4232, %v4227
    %v4235 = vadd.s32 %v4146, 4294967192
    %v4236 = vlaneseq
    %v4237 = vshrl.u32 %v4236, 7
    %v4238 = vsub.s32 %v4235, %v4237
    %v4239 = vrot.slane %v4090, %v4238
    %vm4240 = vcmask 917312
    %v4241 = vsel %vm4240, %v4239, %v4234
    %v4242 = vadd.s32 %v4146, 4294967184
    %v4243 = vlaneseq
    %v4244 = vshrl.u32 %v4243, 7
    %v4245 = vsub.s32 %v4242, %v4244
    %v4246 = vrot.slane %v4093, %v4245
    %vm4247 = vcmask 982912
    %v4248 = vsel %vm4247, %v4246, %v4241
    %v4249 = vadd.s32 %v4146, 4294967176
    %v4250 = vlaneseq
    %v4251 = vshrl.u32 %v4250, 7
    %v4252 = vsub.s32 %v4249, %v4251
    %v4253 = vrot.slane %v4096, %v4252
    %vm4254 = vcmask 1048512
    %v4255 = vsel %vm4254, %v4253, %v4248
    %v4256 = vlaneseq
    %v4257 = vshrl.u32 %v4256, 7
    %v4258 = vsub.s32 %v4146, %v4257
    %v4259 = vrot.slane %v4099, %v4258
    %v4260 = vlaneseq
    %v4261 = vshrl.u32 %v4260, 7
    %v4262 = vsub.s32 %v4151, %v4261
    %v4263 = vrot.slane %v4102, %v4262
    %v4264 = vsel %vm4156, %v4263, %v4259
    %v4265 = vlaneseq
    %v4266 = vshrl.u32 %v4265, 7
    %v4267 = vsub.s32 %v4158, %v4266
    %v4268 = vrot.slane %v4105, %v4267
    %v4269 = vsel %vm4163, %v4268, %v4264
    %v4270 = vlaneseq
    %v4271 = vshrl.u32 %v4270, 7
    %v4272 = vsub.s32 %v4165, %v4271
    %v4273 = vrot.slane %v4108, %v4272
    %v4274 = vsel %vm4170, %v4273, %v4269
    %v4275 = vlaneseq
    %v4276 = vshrl.u32 %v4275, 7
    %v4277 = vsub.s32 %v4172, %v4276
    %v4278 = vrot.slane %v4111, %v4277
    %v4279 = vsel %vm4177, %v4278, %v4274
    %v4280 = vlaneseq
    %v4281 = vshrl.u32 %v4280, 7
    %v4282 = vsub.s32 %v4179, %v4281
    %v4283 = vrot.slane %v4114, %v4282
    %v4284 = vsel %vm4184, %v4283, %v4279
    %v4285 = vlaneseq
    %v4286 = vshrl.u32 %v4285, 7
    %v4287 = vsub.s32 %v4186, %v4286
    %v4288 = vrot.slane %v4117, %v4287
    %v4289 = vsel %vm4191, %v4288, %v4284
    %v4290 = vlaneseq
    %v4291 = vshrl.u32 %v4290, 7
    %v4292 = vsub.s32 %v4193, %v4291
    %v4293 = vrot.slane %v4120, %v4292
    %v4294 = vsel %vm4198, %v4293, %v4289
    %v4295 = vlaneseq
    %v4296 = vshrl.u32 %v4295, 7
    %v4297 = vsub.s32 %v4200, %v4296
    %v4298 = vrot.slane %v4123, %v4297
    %v4299 = vsel %vm4205, %v4298, %v4294
    %v4300 = vlaneseq
    %v4301 = vshrl.u32 %v4300, 7
    %v4302 = vsub.s32 %v4207, %v4301
    %v4303 = vrot.slane %v4126, %v4302
    %v4304 = vsel %vm4212, %v4303, %v4299
    %v4305 = vlaneseq
    %v4306 = vshrl.u32 %v4305, 7
    %v4307 = vsub.s32 %v4214, %v4306
    %v4308 = vrot.slane %v4129, %v4307
    %v4309 = vsel %vm4219, %v4308, %v4304
    %v4310 = vlaneseq
    %v4311 = vshrl.u32 %v4310, 7
    %v4312 = vsub.s32 %v4221, %v4311
    %v4313 = vrot.slane %v4132, %v4312
    %v4314 = vsel %vm4226, %v4313, %v4309
    %v4315 = vlaneseq
    %v4316 = vshrl.u32 %v4315, 7
    %v4317 = vsub.s32 %v4228, %v4316
    %v4318 = vrot.slane %v4135, %v4317
    %v4319 = vsel %vm4233, %v4318, %v4314
    %v4320 = vlaneseq
    %v4321 = vshrl.u32 %v4320, 7
    %v4322 = vsub.s32 %v4235, %v4321
    %v4323 = vrot.slane %v4138, %v4322
    %v4324 = vsel %vm4240, %v4323, %v4319
    %v4325 = vlaneseq
    %v4326 = vshrl.u32 %v4325, 7
    %v4327 = vsub.s32 %v4242, %v4326
    %v4328 = vrot.slane %v4141, %v4327
    %v4329 = vsel %vm4247, %v4328, %v4324
    %v4330 = vlaneseq
    %v4331 = vshrl.u32 %v4330, 7
    %v4332 = vsub.s32 %v4249, %v4331
    %v4333 = vrot.slane %v4144, %v4332
    %v4334 = vsel %vm4254, %v4333, %v4329
    %v4335 = vcombine.low %v4255, %v4334
    %v4337 = vunpack.c.l.s4 1966171168
    %v4338 = vunpack.c.0.s8 %v4337
    %v4339 = vlaneseq
    %v4340 = vshrl.u32 %v4339, 7
    %v4341 = vsub.s32 %v4338, %v4340
    %v4342 = vrot.slane %v4335, %v4341
    %v4344 = vunpack.c.l.s4 1966171168
    %v4345 = vunpack.c.0.s8 %v4344
    %v4346 = vlaneseq
    %v4347 = vshrl.u32 %v4346, 7
    %v4348 = vsub.s32 %v4345, %v4347
    %v4349 = vrot.slane %v4342, %v4348
    %v4351 = vlaneseq
    %vm4352 = vcmp.ge.s32.totalorder %v4351, 0
    %vm4353 = vcmp.lt.s32.totalorder %v4351, 256
    %vm4354 = vmand %vm4352, %vm4353
    %4355 = vst.msk [vmem:[#allocation4] sm:$0x3] %vm4354, %v4349
    // Predicated region
    $region34: #{tpu_custom_call.1} parent=1 // pred_check
      _
    $region35: #{tpu_custom_call.1} parent=1 // pred_check_branch
      %4357 = sbr.rel (0) target = $region37
    $region36: #{tpu_custom_call.1} parent=1 // pred_region
      %s4359 = ssub.s32 32, 32
      %4360 = vsyncadd [#allocation5], %s4359
      %s4362 = sshll.u32 [#allocation4], 4
      %s4363 = int_to_ptr.vmem [resolvable:$true] %s4362
      %4365 = dma.vmem_to_hbm [thread:$0]  %s4363, 32, %s8, [#allocation5]
    $region37: #{tpu_custom_call.1} parent=1 // pred_fallthru
      _
    // Predicated region
    $region38: #{tpu_custom_call.1} parent=1 // pred_check
      _
    $region39: #{tpu_custom_call.1} parent=1 // pred_check_branch
      %4367 = sbr.rel (0) target = $region41
    $region40: #{tpu_custom_call.1} parent=1 // pred_region
      %4368 = dma.done [#allocation5], 32
    $region41: #{tpu_custom_call.1} parent=1 // pred_fallthru
      _
    %4369 = vsyncpa [#allocation5], 1

</llo_original>
